<compile_context>
chip_gen: v5e
topology: v5e:2x2
jax: 0.10.0
libtpu: 0.0.40
codegen_flags: <defaults>
</compile_context>

<pallas_src>
import jax
import jax.numpy as jnp
from jax import lax
from jax.experimental import pallas as pl
from jax.experimental.pallas import tpu as pltpu

# ------------------------- model dimensions (small) -------------------------
B = 2            # batch
T = 8            # max sequence length
VOCAB = 100      # synthetic vocab for the BERT stand-in
D_BERT = 128     # BERT hidden size (stand-in for 768)
D_FF = 256       # BERT intermediate size (stand-in for 3072)
LSTM_H = 128     # lstm_hidden_size (module default 128)
NUM_TOPICS = 10
TOPIC_DIM = 32
TOPIC_FC = 64
SENT_FC = 64
OUT = 256        # output_size


def _vspec(shape):
    """Full-array VMEM block spec for a grid=(1,) pallas_call."""
    n = len(shape)
    return pl.BlockSpec(tuple(shape), lambda i: (0,) * n)


# ------------------------------ small helpers -------------------------------
def _layer_norm(x, g, b, eps=1e-12):
    mu = jnp.mean(x, axis=-1, keepdims=True)
    var = jnp.mean(jnp.square(x - mu), axis=-1, keepdims=True)
    return (x - mu) * lax.rsqrt(var + eps) * g + b


def _gelu(x):
    # tanh approximation of GELU (EUP-friendly)
    return 0.5 * x * (1.0 + jnp.tanh(0.7978845608028654 * (x + 0.044715 * x * x * x)))


# --------------------------- fused forward kernel ----------------------------
def _text_branch_kernel(
        # data
        x_ref, bias_ref, stepm_ref, lastm_ref, topic_ref, sent_ref,
        # BERT encoder layer params
        wqkv_ref, bqkv_ref, wo_ref, bo_ref,
        w1_ref, b1_ref, w2_ref, b2_ref,
        g1_ref, be1_ref, g2_ref, be2_ref,
        # LSTM params
        wih_ref, bih_ref, whh_f_ref, whh_b_ref,
        # head params
        topic_w_ref, topic_b_ref, sent_w_ref, sent_b_ref,
        fcw_hf_ref, fcw_hb_ref, fcw_t_ref, fcw_s_ref, fcb_ref,
        # output
        o_ref,
        # scratch
        gx_ref):
    f32 = jnp.float32
    bf16 = jnp.bfloat16

    h = x_ref[...]                               # (T*B, D) f32, t-major rows
    tb, d = h.shape
    hdim = whh_f_ref.shape[0]
    tn, bsz, _ = stepm_ref.shape

    def mm(a, w_ref, b_ref=None):
        out = jnp.dot(a.astype(bf16), w_ref[...], preferred_element_type=f32)
        if b_ref is not None:
            out = out + b_ref[...]
        return out

    # ---------------- BERT stand-in encoder layer (flattened attention) ----------
    qkv = mm(h, wqkv_ref, bqkv_ref)              # (TB, 3D)
    q = qkv[:, 0:d]
    k = qkv[:, d:2 * d]
    v = qkv[:, 2 * d:3 * d]
    # one (TB,D)@(D,TB) score matmul; block-diagonal batch + key-padding mask is
    # pre-folded into bias_ref (additive, -1e9 on invalid pairs).
    scores = lax.dot_general(q.astype(bf16), k.astype(bf16),
                             (((1,), (1,)), ((), ())),
                             preferred_element_type=f32)
    scores = scores * (1.0 / float(d) ** 0.5) + bias_ref[...]
    smax = jnp.max(scores, axis=-1, keepdims=True)
    pexp = jnp.exp(scores - smax)
    attn = pexp * pl.reciprocal(jnp.sum(pexp, axis=-1, keepdims=True), approx=True)
    ctx = jnp.dot(attn.astype(bf16), v.astype(bf16), preferred_element_type=f32)
    h1 = _layer_norm(h + mm(ctx, wo_ref, bo_ref), g1_ref[...], be1_ref[...])
    ff = _gelu(mm(h1, w1_ref, b1_ref))
    h2 = _layer_norm(h1 + mm(ff, w2_ref, b2_ref), g2_ref[...], be2_ref[...])
    # h2: (TB, D) = last_hidden_state, t-major flattened

    # ---------------- bidirectional LSTM (hoisted input projection) --------------
    # One big matmul off the critical path: columns [0:4H] are the forward-direction
    # pre-recurrent gates (i,f,g,o), [4H:8H] the reverse-direction ones.
    gx_ref[...] = mm(h2, wih_ref, bih_ref)       # (TB, 8H)

    def gates(g):
        i = jax.nn.sigmoid(g[:, 0:hdim])
        f = jax.nn.sigmoid(g[:, hdim:2 * hdim])
        c = jnp.tanh(g[:, 2 * hdim:3 * hdim])
        o = jax.nn.sigmoid(g[:, 3 * hdim:4 * hdim])
        return i, f, c, o

    h_f = jnp.zeros((bsz, hdim), f32)
    c_f = jnp.zeros((bsz, hdim), f32)
    h_b = jnp.zeros((bsz, hdim), f32)
    c_b = jnp.zeros((bsz, hdim), f32)
    h_last = jnp.zeros((bsz, hdim), f32)

    # Static unroll (T=8): forward chain advances at t, reverse chain at T-1-t in the
    # same iteration so the two independent recurrences overlap on MXU/EUP.
    for t in range(tn):
        tr = tn - 1 - t
        g_f = gx_ref[t * bsz:(t + 1) * bsz, 0:4 * hdim] + jnp.dot(
            h_f.astype(bf16), whh_f_ref[...], preferred_element_type=f32)
        g_b = gx_ref[tr * bsz:(tr + 1) * bsz, 4 * hdim:8 * hdim] + jnp.dot(
            h_b.astype(bf16), whh_b_ref[...], preferred_element_type=f32)
        i_f, f_f, cand_f, o_f = gates(g_f)
        i_b, f_b, cand_b, o_b = gates(g_b)
        c_f_new = f_f * c_f + i_f * cand_f
        h_f_new = o_f * jnp.tanh(c_f_new)
        c_b_new = f_b * c_b + i_b * cand_b
        h_b_new = o_b * jnp.tanh(c_b_new)
        m_f = stepm_ref[t]                       # (B, H): t  < length
        m_b = stepm_ref[tr]                      # (B, H): tr < length
        lo = lastm_ref[tr]                       # (B, H): tr == length - 1
        h_f = m_f * h_f_new + (1.0 - m_f) * h_f
        c_f = m_f * c_f_new + (1.0 - m_f) * c_f
        h_b = m_b * h_b_new + (1.0 - m_b) * h_b
        c_b = m_b * c_b_new + (1.0 - m_b) * c_b
        # packed reverse-direction output captured at the gathered index (length-1)
        h_last = lo * h_b + (1.0 - lo) * h_last

    # ---------------- fused head: topic_fc + sentiment_fc + final fc -------------
    topic_feat = mm(topic_ref[...], topic_w_ref, topic_b_ref)          # (B, 64)
    sent_feat = sent_ref[...] * sent_w_ref[...] + sent_b_ref[...]      # (B, 64)
    out = (jnp.dot(h_f.astype(bf16), fcw_hf_ref[...], preferred_element_type=f32)
           + jnp.dot(h_last.astype(bf16), fcw_hb_ref[...], preferred_element_type=f32)
           + jnp.dot(topic_feat.astype(bf16), fcw_t_ref[...], preferred_element_type=f32)
           + jnp.dot(sent_feat.astype(bf16), fcw_s_ref[...], preferred_element_type=f32)
           + fcb_ref[...])
    o_ref[...] = out.astype(o_ref.dtype)


# --------------------------------- params ------------------------------------
def init_params(key):
    ks = iter(jax.random.split(key, 24))

    def w(shape, scale=0.02):
        return (scale * jax.random.normal(next(ks), shape)).astype(jnp.float32)

    f32 = jnp.float32
    p = {}
    # BERT stand-in
    p['tok_emb'] = w((VOCAB, D_BERT))
    p['pos_emb'] = w((T, D_BERT))
    p['emb_ln_g'] = jnp.ones((D_BERT,), f32)
    p['emb_ln_b'] = jnp.zeros((D_BERT,), f32)
    p['wqkv'] = w((D_BERT, 3 * D_BERT))          # [Wq | Wk | Wv]
    p['bqkv'] = jnp.zeros((1, 3 * D_BERT), f32)
    p['wo'] = w((D_BERT, D_BERT)); p['bo'] = jnp.zeros((1, D_BERT), f32)
    p['w1'] = w((D_BERT, D_FF));   p['b1'] = jnp.zeros((1, D_FF), f32)
    p['w2'] = w((D_FF, D_BERT));   p['b2'] = jnp.zeros((1, D_BERT), f32)
    p['g1'] = jnp.ones((1, D_BERT), f32); p['be1'] = jnp.zeros((1, D_BERT), f32)
    p['g2'] = jnp.ones((1, D_BERT), f32); p['be2'] = jnp.zeros((1, D_BERT), f32)
    # LSTM: W_ih stored transposed and concatenated over directions (D, 8H);
    # gate order i, f, g, o per direction; bias = bias_ih + bias_hh combined.
    p['wih_cat'] = w((D_BERT, 8 * LSTM_H))
    p['bih_cat'] = jnp.zeros((1, 8 * LSTM_H), f32)
    p['whh_f'] = w((LSTM_H, 4 * LSTM_H))
    p['whh_b'] = w((LSTM_H, 4 * LSTM_H))
    # topic / sentiment / final fc
    p['topic_emb'] = w((NUM_TOPICS, TOPIC_DIM))
    p['topic_w'] = w((TOPIC_DIM, TOPIC_FC)); p['topic_b'] = jnp.zeros((1, TOPIC_FC), f32)
    p['sent_w'] = w((1, SENT_FC));           p['sent_b'] = jnp.zeros((1, SENT_FC), f32)
    p['fc_w'] = w((2 * LSTM_H + TOPIC_FC + SENT_FC, OUT))
    p['fc_b'] = jnp.zeros((1, OUT), f32)
    return p


# --------------------------------- forward -----------------------------------
def text_branch_forward(p, input_ids, attention_mask, lengths, topics, sentiments):
    f32 = jnp.float32
    bf16 = jnp.bfloat16
    b, t = input_ids.shape

    # BERT stand-in embeddings (gather = XLA glue) + embedding LayerNorm
    emb = p['tok_emb'][input_ids] + p['pos_emb'][None, :t, :]
    mu = jnp.mean(emb, axis=-1, keepdims=True)
    var = jnp.mean(jnp.square(emb - mu), axis=-1, keepdims=True)
    emb = (emb - mu) * lax.rsqrt(var + 1e-12) * p['emb_ln_g'] + p['emb_ln_b']
    # t-major flattened layout: row i = t*B + b
    x_flat = jnp.transpose(emb, (1, 0, 2)).reshape(t * b, D_BERT).astype(f32)

    # additive attention mask (TB, TB): 0 where (same batch AND key is not padding),
    # -1e9 elsewhere (implements both the per-batch block-diagonal and padding mask)
    flat_b = jnp.arange(t * b, dtype=jnp.int32) % b
    flat_t = jnp.arange(t * b, dtype=jnp.int32) // b
    key_valid = attention_mask[flat_b, flat_t] > 0                   # (TB,)
    same_batch = flat_b[:, None] == flat_b[None, :]
    attn_bias = jnp.where(same_batch & key_valid[None, :], 0.0, -1e9).astype(f32)

    # LSTM length masks, pre-broadcast to (T, B, H) (lane-dense, no in-loop broadcast)
    t_ids = jnp.arange(t, dtype=lengths.dtype)
    stepm = (t_ids[:, None] < lengths[None, :]).astype(f32)           # (T, B)
    lastm = (t_ids[:, None] == (lengths[None, :] - 1)).astype(f32)    # (T, B)
    stepm_bh = jnp.broadcast_to(stepm[:, :, None], (t, b, LSTM_H))
    lastm_bh = jnp.broadcast_to(lastm[:, :, None], (t, b, LSTM_H))

    topic_emb = p['topic_emb'][topics].astype(f32)                    # (B, 32)
    sent_b64 = jnp.broadcast_to(sentiments.astype(f32)[:, None], (b, SENT_FC))

    # split final fc weight -> concat-free head accumulation into (B, 256)
    fcw = p['fc_w']
    fcw_hf = fcw[0:LSTM_H]                                            # fwd hidden
    fcw_hb = fcw[LSTM_H:2 * LSTM_H]                                   # reverse hidden
    fcw_t = fcw[2 * LSTM_H:2 * LSTM_H + TOPIC_FC]
    fcw_s = fcw[2 * LSTM_H + TOPIC_FC:]

    def bw(x):   # bf16 for MXU operands only
        return x.astype(bf16)

    args = (
        x_flat, attn_bias, stepm_bh, lastm_bh, topic_emb, sent_b64,
        bw(p['wqkv']), p['bqkv'], bw(p['wo']), p['bo'],
        bw(p['w1']), p['b1'], bw(p['w2']), p['b2'],
        p['g1'], p['be1'], p['g2'], p['be2'],
        bw(p['wih_cat']), p['bih_cat'], bw(p['whh_f']), bw(p['whh_b']),
        bw(p['topic_w']), p['topic_b'], p['sent_w'], p['sent_b'],
        bw(fcw_hf), bw(fcw_hb), bw(fcw_t), bw(fcw_s), p['fc_b'],
    )
    return pl.pallas_call(
        _text_branch_kernel,
        out_shape=jax.ShapeDtypeStruct((b, OUT), f32),
        grid=(1,),
        in_specs=[_vspec(a.shape) for a in args],
        out_specs=_vspec((b, OUT)),
        scratch_shapes=[pltpu.VMEM((t * b, 8 * LSTM_H), f32)],
        compiler_params=pltpu.CompilerParams(dimension_semantics=("arbitrary",)),
    )(*args)


if __name__ == "__main__":
    key = jax.random.PRNGKey(0)
    kp, kid, ktp, ksn = jax.random.split(key, 4)

    params = init_params(kp)
    input_ids = jax.random.randint(kid, (B, T), 0, VOCAB, dtype=jnp.int32)
    lengths = jnp.array([T, 5], dtype=jnp.int32)
    attention_mask = (jnp.arange(T, dtype=jnp.int32)[None, :] < lengths[:, None]).astype(jnp.int32)
    topics = jax.random.randint(ktp, (B,), 0, NUM_TOPICS, dtype=jnp.int32)
    sentiments = jax.random.normal(ksn, (B,), dtype=jnp.float32)

    fwd = jax.jit(text_branch_forward)
    out = fwd(params, input_ids, attention_mask, lengths, topics, sentiments)
    out = jax.block_until_ready(out)

    assert out.shape == (B, OUT), out.shape
    assert bool(jnp.all(jnp.isfinite(out)))
    print("KERNEL_OK")
</pallas_src>

<mosaic_0001>
module attributes {stable_mosaic.version = 11 : i64} {
  func.func @_text_branch_kernel(%arg0: i32, %arg1: memref<16x128xf32, #tpu.memory_space<vmem>>, %arg2: memref<16x16xf32, #tpu.memory_space<vmem>>, %arg3: memref<8x2x128xf32, #tpu.memory_space<vmem>>, %arg4: memref<8x2x128xf32, #tpu.memory_space<vmem>>, %arg5: memref<2x32xf32, #tpu.memory_space<vmem>>, %arg6: memref<2x64xf32, #tpu.memory_space<vmem>>, %arg7: memref<128x384xbf16, #tpu.memory_space<vmem>>, %arg8: memref<1x384xf32, #tpu.memory_space<vmem>>, %arg9: memref<128x128xbf16, #tpu.memory_space<vmem>>, %arg10: memref<1x128xf32, #tpu.memory_space<vmem>>, %arg11: memref<128x256xbf16, #tpu.memory_space<vmem>>, %arg12: memref<1x256xf32, #tpu.memory_space<vmem>>, %arg13: memref<256x128xbf16, #tpu.memory_space<vmem>>, %arg14: memref<1x128xf32, #tpu.memory_space<vmem>>, %arg15: memref<1x128xf32, #tpu.memory_space<vmem>>, %arg16: memref<1x128xf32, #tpu.memory_space<vmem>>, %arg17: memref<1x128xf32, #tpu.memory_space<vmem>>, %arg18: memref<1x128xf32, #tpu.memory_space<vmem>>, %arg19: memref<128x1024xbf16, #tpu.memory_space<vmem>>, %arg20: memref<1x1024xf32, #tpu.memory_space<vmem>>, %arg21: memref<128x512xbf16, #tpu.memory_space<vmem>>, %arg22: memref<128x512xbf16, #tpu.memory_space<vmem>>, %arg23: memref<32x64xbf16, #tpu.memory_space<vmem>>, %arg24: memref<1x64xf32, #tpu.memory_space<vmem>>, %arg25: memref<1x64xf32, #tpu.memory_space<vmem>>, %arg26: memref<1x64xf32, #tpu.memory_space<vmem>>, %arg27: memref<128x256xbf16, #tpu.memory_space<vmem>>, %arg28: memref<128x256xbf16, #tpu.memory_space<vmem>>, %arg29: memref<64x256xbf16, #tpu.memory_space<vmem>>, %arg30: memref<64x256xbf16, #tpu.memory_space<vmem>>, %arg31: memref<1x256xf32, #tpu.memory_space<vmem>>, %arg32: memref<2x256xf32, #tpu.memory_space<vmem>>, %arg33: memref<16x1024xf32, #tpu.memory_space<vmem>>) attributes {dimension_semantics = [#tpu.dimension_semantics<arbitrary>], iteration_bounds = array<i64: 1>, scalar_prefetch = 0 : i64, scratch_operands = 1 : i64, tpu.core_type = #tpu.core_type<tc>, window_params = [{pipeline_mode = #tpu.pipeline_mode<synchronous>, transform_indices = @transform_0, window_bounds = array<i64: 16, 128>}, {pipeline_mode = #tpu.pipeline_mode<synchronous>, transform_indices = @transform_1, window_bounds = array<i64: 16, 16>}, {pipeline_mode = #tpu.pipeline_mode<synchronous>, transform_indices = @transform_2, window_bounds = array<i64: 8, 2, 128>}, {pipeline_mode = #tpu.pipeline_mode<synchronous>, transform_indices = @transform_3, window_bounds = array<i64: 8, 2, 128>}, {pipeline_mode = #tpu.pipeline_mode<synchronous>, transform_indices = @transform_4, window_bounds = array<i64: 2, 32>}, {pipeline_mode = #tpu.pipeline_mode<synchronous>, transform_indices = @transform_5, window_bounds = array<i64: 2, 64>}, {pipeline_mode = #tpu.pipeline_mode<synchronous>, transform_indices = @transform_6, window_bounds = array<i64: 128, 384>}, {pipeline_mode = #tpu.pipeline_mode<synchronous>, transform_indices = @transform_7, window_bounds = array<i64: 1, 384>}, {pipeline_mode = #tpu.pipeline_mode<synchronous>, transform_indices = @transform_8, window_bounds = array<i64: 128, 128>}, {pipeline_mode = #tpu.pipeline_mode<synchronous>, transform_indices = @transform_9, window_bounds = array<i64: 1, 128>}, {pipeline_mode = #tpu.pipeline_mode<synchronous>, transform_indices = @transform_10, window_bounds = array<i64: 128, 256>}, {pipeline_mode = #tpu.pipeline_mode<synchronous>, transform_indices = @transform_11, window_bounds = array<i64: 1, 256>}, {pipeline_mode = #tpu.pipeline_mode<synchronous>, transform_indices = @transform_12, window_bounds = array<i64: 256, 128>}, {pipeline_mode = #tpu.pipeline_mode<synchronous>, transform_indices = @transform_13, window_bounds = array<i64: 1, 128>}, {pipeline_mode = #tpu.pipeline_mode<synchronous>, transform_indices = @transform_14, window_bounds = array<i64: 1, 128>}, {pipeline_mode = #tpu.pipeline_mode<synchronous>, transform_indices = @transform_15, window_bounds = array<i64: 1, 128>}, {pipeline_mode = #tpu.pipeline_mode<synchronous>, transform_indices = @transform_16, window_bounds = array<i64: 1, 128>}, {pipeline_mode = #tpu.pipeline_mode<synchronous>, transform_indices = @transform_17, window_bounds = array<i64: 1, 128>}, {pipeline_mode = #tpu.pipeline_mode<synchronous>, transform_indices = @transform_18, window_bounds = array<i64: 128, 1024>}, {pipeline_mode = #tpu.pipeline_mode<synchronous>, transform_indices = @transform_19, window_bounds = array<i64: 1, 1024>}, {pipeline_mode = #tpu.pipeline_mode<synchronous>, transform_indices = @transform_20, window_bounds = array<i64: 128, 512>}, {pipeline_mode = #tpu.pipeline_mode<synchronous>, transform_indices = @transform_21, window_bounds = array<i64: 128, 512>}, {pipeline_mode = #tpu.pipeline_mode<synchronous>, transform_indices = @transform_22, window_bounds = array<i64: 32, 64>}, {pipeline_mode = #tpu.pipeline_mode<synchronous>, transform_indices = @transform_23, window_bounds = array<i64: 1, 64>}, {pipeline_mode = #tpu.pipeline_mode<synchronous>, transform_indices = @transform_24, window_bounds = array<i64: 1, 64>}, {pipeline_mode = #tpu.pipeline_mode<synchronous>, transform_indices = @transform_25, window_bounds = array<i64: 1, 64>}, {pipeline_mode = #tpu.pipeline_mode<synchronous>, transform_indices = @transform_26, window_bounds = array<i64: 128, 256>}, {pipeline_mode = #tpu.pipeline_mode<synchronous>, transform_indices = @transform_27, window_bounds = array<i64: 128, 256>}, {pipeline_mode = #tpu.pipeline_mode<synchronous>, transform_indices = @transform_28, window_bounds = array<i64: 64, 256>}, {pipeline_mode = #tpu.pipeline_mode<synchronous>, transform_indices = @transform_29, window_bounds = array<i64: 64, 256>}, {pipeline_mode = #tpu.pipeline_mode<synchronous>, transform_indices = @transform_30, window_bounds = array<i64: 1, 256>}, {pipeline_mode = #tpu.pipeline_mode<synchronous>, transform_indices = @transform_31, window_bounds = array<i64: 2, 256>}]} {
    %c0 = arith.constant 0 : index
    %c0_0 = arith.constant 0 : index
    %0 = vector.load %arg1[%c0, %c0_0] : memref<16x128xf32, #tpu.memory_space<vmem>>, vector<16x128xf32>
    %1 = arith.truncf %0 : vector<16x128xf32> to vector<16x128xbf16>
    %c0_1 = arith.constant 0 : index
    %c0_2 = arith.constant 0 : index
    %2 = vector.load %arg7[%c0_1, %c0_2] : memref<128x384xbf16, #tpu.memory_space<vmem>>, vector<128x384xbf16>
    %cst = arith.constant dense<0.000000e+00> : vector<16x384xf32>
    %3 = tpu.matmul %1, %2, %cst {dimension_numbers = #tpu.dot_dimension_numbers<[1], [0], [0], [1], [0, 0, 1, 1], [], []>} : vector<16x128xbf16>, vector<128x384xbf16>, vector<16x384xf32> -> vector<16x384xf32>
    %c0_3 = arith.constant 0 : index
    %c0_4 = arith.constant 0 : index
    %4 = vector.load %arg8[%c0_3, %c0_4] : memref<1x384xf32, #tpu.memory_space<vmem>>, vector<1x384xf32>
    %5 = vector.broadcast %4 : vector<1x384xf32> to vector<16x384xf32>
    %6 = arith.addf %3, %5 : vector<16x384xf32>
    %7 = vector.extract_strided_slice %6 {offsets = [0, 0], sizes = [16, 128], strides = [1, 1]} : vector<16x384xf32> to vector<16x128xf32>
    %8 = vector.extract_strided_slice %6 {offsets = [0, 128], sizes = [16, 128], strides = [1, 1]} : vector<16x384xf32> to vector<16x128xf32>
    %9 = vector.extract_strided_slice %6 {offsets = [0, 256], sizes = [16, 128], strides = [1, 1]} : vector<16x384xf32> to vector<16x128xf32>
    %10 = arith.truncf %7 : vector<16x128xf32> to vector<16x128xbf16>
    %11 = arith.truncf %8 : vector<16x128xf32> to vector<16x128xbf16>
    %cst_5 = arith.constant dense<0.000000e+00> : vector<16x16xf32>
    %12 = tpu.matmul %10, %11, %cst_5 {dimension_numbers = #tpu.dot_dimension_numbers<[1], [1], [0], [0], [0, 0, 1, 0], [], []>} : vector<16x128xbf16>, vector<16x128xbf16>, vector<16x16xf32> -> vector<16x16xf32>
    %cst_6 = arith.constant 0.0883883461 : f32
    %13 = vector.broadcast %cst_6 : f32 to vector<16x16xf32>
    %14 = arith.mulf %12, %13 : vector<16x16xf32>
    %c0_7 = arith.constant 0 : index
    %c0_8 = arith.constant 0 : index
    %15 = vector.load %arg2[%c0_7, %c0_8] : memref<16x16xf32, #tpu.memory_space<vmem>>, vector<16x16xf32>
    %16 = arith.addf %14, %15 : vector<16x16xf32>
    %cst_9 = arith.constant dense<0xFF800000> : vector<16xf32>
    %17 = vector.multi_reduction <maximumf>, %16, %cst_9 [1] : vector<16x16xf32> to vector<16xf32>
    %18 = vector.shape_cast %17 : vector<16xf32> to vector<16x1xf32>
    %19 = vector.broadcast %18 : vector<16x1xf32> to vector<16x16xf32>
    %20 = arith.subf %16, %19 : vector<16x16xf32>
    %21 = math.exp %20 : vector<16x16xf32>
    %cst_10 = arith.constant dense<0.000000e+00> : vector<16xf32>
    %22 = vector.multi_reduction <add>, %21, %cst_10 [1] : vector<16x16xf32> to vector<16xf32>
    %23 = vector.shape_cast %22 : vector<16xf32> to vector<16x1xf32>
    %24 = tpu.reciprocal %23 {approx = true} : vector<16x1xf32> -> vector<16x1xf32>
    %25 = vector.broadcast %24 : vector<16x1xf32> to vector<16x16xf32>
    %26 = arith.mulf %21, %25 : vector<16x16xf32>
    %27 = arith.truncf %26 : vector<16x16xf32> to vector<16x16xbf16>
    %28 = arith.truncf %9 : vector<16x128xf32> to vector<16x128xbf16>
    %cst_11 = arith.constant dense<0.000000e+00> : vector<16x128xf32>
    %29 = tpu.matmul %27, %28, %cst_11 {dimension_numbers = #tpu.dot_dimension_numbers<[1], [0], [0], [1], [0, 0, 1, 1], [], []>} : vector<16x16xbf16>, vector<16x128xbf16>, vector<16x128xf32> -> vector<16x128xf32>
    %30 = arith.truncf %29 : vector<16x128xf32> to vector<16x128xbf16>
    %c0_12 = arith.constant 0 : index
    %c0_13 = arith.constant 0 : index
    %31 = vector.load %arg9[%c0_12, %c0_13] : memref<128x128xbf16, #tpu.memory_space<vmem>>, vector<128x128xbf16>
    %cst_14 = arith.constant dense<0.000000e+00> : vector<16x128xf32>
    %32 = tpu.matmul %30, %31, %cst_14 {dimension_numbers = #tpu.dot_dimension_numbers<[1], [0], [0], [1], [0, 0, 1, 1], [], []>} : vector<16x128xbf16>, vector<128x128xbf16>, vector<16x128xf32> -> vector<16x128xf32>
    %c0_15 = arith.constant 0 : index
    %c0_16 = arith.constant 0 : index
    %33 = vector.load %arg10[%c0_15, %c0_16] : memref<1x128xf32, #tpu.memory_space<vmem>>, vector<1x128xf32>
    %34 = vector.broadcast %33 : vector<1x128xf32> to vector<16x128xf32>
    %35 = arith.addf %32, %34 : vector<16x128xf32>
    %36 = arith.addf %0, %35 : vector<16x128xf32>
    %c0_17 = arith.constant 0 : index
    %c0_18 = arith.constant 0 : index
    %37 = vector.load %arg15[%c0_17, %c0_18] : memref<1x128xf32, #tpu.memory_space<vmem>>, vector<1x128xf32>
    %c0_19 = arith.constant 0 : index
    %c0_20 = arith.constant 0 : index
    %38 = vector.load %arg16[%c0_19, %c0_20] : memref<1x128xf32, #tpu.memory_space<vmem>>, vector<1x128xf32>
    %cst_21 = arith.constant dense<0.000000e+00> : vector<16xf32>
    %39 = vector.multi_reduction <add>, %36, %cst_21 [1] : vector<16x128xf32> to vector<16xf32>
    %40 = vector.shape_cast %39 : vector<16xf32> to vector<16x1xf32>
    %cst_22 = arith.constant 1.280000e+02 : f32
    %41 = vector.broadcast %cst_22 : f32 to vector<16x1xf32>
    %42 = arith.divf %40, %41 : vector<16x1xf32>
    %43 = vector.broadcast %42 : vector<16x1xf32> to vector<16x128xf32>
    %44 = arith.subf %36, %43 : vector<16x128xf32>
    %45 = arith.mulf %44, %44 : vector<16x128xf32>
    %cst_23 = arith.constant dense<0.000000e+00> : vector<16xf32>
    %46 = vector.multi_reduction <add>, %45, %cst_23 [1] : vector<16x128xf32> to vector<16xf32>
    %47 = vector.shape_cast %46 : vector<16xf32> to vector<16x1xf32>
    %cst_24 = arith.constant 1.280000e+02 : f32
    %48 = vector.broadcast %cst_24 : f32 to vector<16x1xf32>
    %49 = arith.divf %47, %48 : vector<16x1xf32>
    %50 = vector.broadcast %42 : vector<16x1xf32> to vector<16x128xf32>
    %51 = arith.subf %36, %50 : vector<16x128xf32>
    %cst_25 = arith.constant 9.99999996E-13 : f32
    %52 = vector.broadcast %cst_25 : f32 to vector<16x1xf32>
    %53 = arith.addf %49, %52 : vector<16x1xf32>
    %54 = math.rsqrt %53 : vector<16x1xf32>
    %55 = vector.broadcast %54 : vector<16x1xf32> to vector<16x128xf32>
    %56 = arith.mulf %51, %55 : vector<16x128xf32>
    %57 = vector.broadcast %37 : vector<1x128xf32> to vector<16x128xf32>
    %58 = arith.mulf %56, %57 : vector<16x128xf32>
    %59 = vector.broadcast %38 : vector<1x128xf32> to vector<16x128xf32>
    %60 = arith.addf %58, %59 : vector<16x128xf32>
    %61 = arith.truncf %60 : vector<16x128xf32> to vector<16x128xbf16>
    %c0_26 = arith.constant 0 : index
    %c0_27 = arith.constant 0 : index
    %62 = vector.load %arg11[%c0_26, %c0_27] : memref<128x256xbf16, #tpu.memory_space<vmem>>, vector<128x256xbf16>
    %cst_28 = arith.constant dense<0.000000e+00> : vector<16x256xf32>
    %63 = tpu.matmul %61, %62, %cst_28 {dimension_numbers = #tpu.dot_dimension_numbers<[1], [0], [0], [1], [0, 0, 1, 1], [], []>} : vector<16x128xbf16>, vector<128x256xbf16>, vector<16x256xf32> -> vector<16x256xf32>
    %c0_29 = arith.constant 0 : index
    %c0_30 = arith.constant 0 : index
    %64 = vector.load %arg12[%c0_29, %c0_30] : memref<1x256xf32, #tpu.memory_space<vmem>>, vector<1x256xf32>
    %65 = vector.broadcast %64 : vector<1x256xf32> to vector<16x256xf32>
    %66 = arith.addf %63, %65 : vector<16x256xf32>
    %cst_31 = arith.constant 5.000000e-01 : f32
    %67 = vector.broadcast %cst_31 : f32 to vector<16x256xf32>
    %68 = arith.mulf %67, %66 : vector<16x256xf32>
    %cst_32 = arith.constant 4.471500e-02 : f32
    %69 = vector.broadcast %cst_32 : f32 to vector<16x256xf32>
    %70 = arith.mulf %69, %66 : vector<16x256xf32>
    %71 = arith.mulf %70, %66 : vector<16x256xf32>
    %72 = arith.mulf %71, %66 : vector<16x256xf32>
    %73 = arith.addf %66, %72 : vector<16x256xf32>
    %cst_33 = arith.constant 0.797884583 : f32
    %74 = vector.broadcast %cst_33 : f32 to vector<16x256xf32>
    %75 = arith.mulf %74, %73 : vector<16x256xf32>
    %76 = math.tanh %75 : vector<16x256xf32>
    %cst_34 = arith.constant 1.000000e+00 : f32
    %77 = vector.broadcast %cst_34 : f32 to vector<16x256xf32>
    %78 = arith.addf %77, %76 : vector<16x256xf32>
    %79 = arith.mulf %68, %78 : vector<16x256xf32>
    %80 = arith.truncf %79 : vector<16x256xf32> to vector<16x256xbf16>
    %c0_35 = arith.constant 0 : index
    %c0_36 = arith.constant 0 : index
    %81 = vector.load %arg13[%c0_35, %c0_36] : memref<256x128xbf16, #tpu.memory_space<vmem>>, vector<256x128xbf16>
    %cst_37 = arith.constant dense<0.000000e+00> : vector<16x128xf32>
    %82 = tpu.matmul %80, %81, %cst_37 {dimension_numbers = #tpu.dot_dimension_numbers<[1], [0], [0], [1], [0, 0, 1, 1], [], []>} : vector<16x256xbf16>, vector<256x128xbf16>, vector<16x128xf32> -> vector<16x128xf32>
    %c0_38 = arith.constant 0 : index
    %c0_39 = arith.constant 0 : index
    %83 = vector.load %arg14[%c0_38, %c0_39] : memref<1x128xf32, #tpu.memory_space<vmem>>, vector<1x128xf32>
    %84 = vector.broadcast %83 : vector<1x128xf32> to vector<16x128xf32>
    %85 = arith.addf %82, %84 : vector<16x128xf32>
    %86 = arith.addf %60, %85 : vector<16x128xf32>
    %c0_40 = arith.constant 0 : index
    %c0_41 = arith.constant 0 : index
    %87 = vector.load %arg17[%c0_40, %c0_41] : memref<1x128xf32, #tpu.memory_space<vmem>>, vector<1x128xf32>
    %c0_42 = arith.constant 0 : index
    %c0_43 = arith.constant 0 : index
    %88 = vector.load %arg18[%c0_42, %c0_43] : memref<1x128xf32, #tpu.memory_space<vmem>>, vector<1x128xf32>
    %cst_44 = arith.constant dense<0.000000e+00> : vector<16xf32>
    %89 = vector.multi_reduction <add>, %86, %cst_44 [1] : vector<16x128xf32> to vector<16xf32>
    %90 = vector.shape_cast %89 : vector<16xf32> to vector<16x1xf32>
    %cst_45 = arith.constant 1.280000e+02 : f32
    %91 = vector.broadcast %cst_45 : f32 to vector<16x1xf32>
    %92 = arith.divf %90, %91 : vector<16x1xf32>
    %93 = vector.broadcast %92 : vector<16x1xf32> to vector<16x128xf32>
    %94 = arith.subf %86, %93 : vector<16x128xf32>
    %95 = arith.mulf %94, %94 : vector<16x128xf32>
    %cst_46 = arith.constant dense<0.000000e+00> : vector<16xf32>
    %96 = vector.multi_reduction <add>, %95, %cst_46 [1] : vector<16x128xf32> to vector<16xf32>
    %97 = vector.shape_cast %96 : vector<16xf32> to vector<16x1xf32>
    %cst_47 = arith.constant 1.280000e+02 : f32
    %98 = vector.broadcast %cst_47 : f32 to vector<16x1xf32>
    %99 = arith.divf %97, %98 : vector<16x1xf32>
    %100 = vector.broadcast %92 : vector<16x1xf32> to vector<16x128xf32>
    %101 = arith.subf %86, %100 : vector<16x128xf32>
    %cst_48 = arith.constant 9.99999996E-13 : f32
    %102 = vector.broadcast %cst_48 : f32 to vector<16x1xf32>
    %103 = arith.addf %99, %102 : vector<16x1xf32>
    %104 = math.rsqrt %103 : vector<16x1xf32>
    %105 = vector.broadcast %104 : vector<16x1xf32> to vector<16x128xf32>
    %106 = arith.mulf %101, %105 : vector<16x128xf32>
    %107 = vector.broadcast %87 : vector<1x128xf32> to vector<16x128xf32>
    %108 = arith.mulf %106, %107 : vector<16x128xf32>
    %109 = vector.broadcast %88 : vector<1x128xf32> to vector<16x128xf32>
    %110 = arith.addf %108, %109 : vector<16x128xf32>
    %111 = arith.truncf %110 : vector<16x128xf32> to vector<16x128xbf16>
    %c0_49 = arith.constant 0 : index
    %c0_50 = arith.constant 0 : index
    %112 = vector.load %arg19[%c0_49, %c0_50] : memref<128x1024xbf16, #tpu.memory_space<vmem>>, vector<128x1024xbf16>
    %cst_51 = arith.constant dense<0.000000e+00> : vector<16x1024xf32>
    %113 = tpu.matmul %111, %112, %cst_51 {dimension_numbers = #tpu.dot_dimension_numbers<[1], [0], [0], [1], [0, 0, 1, 1], [], []>} : vector<16x128xbf16>, vector<128x1024xbf16>, vector<16x1024xf32> -> vector<16x1024xf32>
    %c0_52 = arith.constant 0 : index
    %c0_53 = arith.constant 0 : index
    %114 = vector.load %arg20[%c0_52, %c0_53] : memref<1x1024xf32, #tpu.memory_space<vmem>>, vector<1x1024xf32>
    %115 = vector.broadcast %114 : vector<1x1024xf32> to vector<16x1024xf32>
    %116 = arith.addf %113, %115 : vector<16x1024xf32>
    %c0_54 = arith.constant 0 : index
    %c0_55 = arith.constant 0 : index
    %117 = vector.load %arg33[%c0_54, %c0_55] : memref<16x1024xf32, #tpu.memory_space<vmem>>, vector<16x1024xf32>
    tpu.vector_store %arg33[%c0_54, %c0_55], %116 {strides = array<i32>} : memref<16x1024xf32, #tpu.memory_space<vmem>>, vector<16x1024xf32>,
    %cst_56 = arith.constant 0.000000e+00 : f32
    %118 = vector.broadcast %cst_56 : f32 to vector<2x128xf32>
    %cst_57 = arith.constant 0.000000e+00 : f32
    %119 = vector.broadcast %cst_57 : f32 to vector<2x128xf32>
    %cst_58 = arith.constant 0.000000e+00 : f32
    %120 = vector.broadcast %cst_58 : f32 to vector<2x128xf32>
    %cst_59 = arith.constant 0.000000e+00 : f32
    %121 = vector.broadcast %cst_59 : f32 to vector<2x128xf32>
    %cst_60 = arith.constant 0.000000e+00 : f32
    %122 = vector.broadcast %cst_60 : f32 to vector<2x128xf32>
    %c0_61 = arith.constant 0 : index
    %c0_62 = arith.constant 0 : index
    %123 = vector.load %arg33[%c0_61, %c0_62] : memref<16x1024xf32, #tpu.memory_space<vmem>>, vector<2x512xf32>
    %124 = arith.truncf %118 : vector<2x128xf32> to vector<2x128xbf16>
    %c0_63 = arith.constant 0 : index
    %c0_64 = arith.constant 0 : index
    %125 = vector.load %arg21[%c0_63, %c0_64] : memref<128x512xbf16, #tpu.memory_space<vmem>>, vector<128x512xbf16>
    %cst_65 = arith.constant dense<0.000000e+00> : vector<2x512xf32>
    %126 = tpu.matmul %124, %125, %cst_65 {dimension_numbers = #tpu.dot_dimension_numbers<[1], [0], [0], [1], [0, 0, 1, 1], [], []>} : vector<2x128xbf16>, vector<128x512xbf16>, vector<2x512xf32> -> vector<2x512xf32>
    %127 = arith.addf %123, %126 : vector<2x512xf32>
    %c14 = arith.constant 14 : index
    %c512 = arith.constant 512 : index
    %128 = vector.load %arg33[%c14, %c512] : memref<16x1024xf32, #tpu.memory_space<vmem>>, vector<2x512xf32>
    %129 = arith.truncf %120 : vector<2x128xf32> to vector<2x128xbf16>
    %c0_66 = arith.constant 0 : index
    %c0_67 = arith.constant 0 : index
    %130 = vector.load %arg22[%c0_66, %c0_67] : memref<128x512xbf16, #tpu.memory_space<vmem>>, vector<128x512xbf16>
    %cst_68 = arith.constant dense<0.000000e+00> : vector<2x512xf32>
    %131 = tpu.matmul %129, %130, %cst_68 {dimension_numbers = #tpu.dot_dimension_numbers<[1], [0], [0], [1], [0, 0, 1, 1], [], []>} : vector<2x128xbf16>, vector<128x512xbf16>, vector<2x512xf32> -> vector<2x512xf32>
    %132 = arith.addf %128, %131 : vector<2x512xf32>
    %133 = vector.extract_strided_slice %127 {offsets = [0, 0], sizes = [2, 128], strides = [1, 1]} : vector<2x512xf32> to vector<2x128xf32>
    %134 = arith.negf %133 : vector<2x128xf32>
    %135 = math.exp %134 : vector<2x128xf32>
    %cst_69 = arith.constant 1.000000e+00 : f32
    %136 = vector.broadcast %cst_69 : f32 to vector<2x128xf32>
    %137 = arith.addf %136, %135 : vector<2x128xf32>
    %138 = arith.divf %136, %137 : vector<2x128xf32>
    %139 = vector.extract_strided_slice %127 {offsets = [0, 128], sizes = [2, 128], strides = [1, 1]} : vector<2x512xf32> to vector<2x128xf32>
    %140 = arith.negf %139 : vector<2x128xf32>
    %141 = math.exp %140 : vector<2x128xf32>
    %cst_70 = arith.constant 1.000000e+00 : f32
    %142 = vector.broadcast %cst_70 : f32 to vector<2x128xf32>
    %143 = arith.addf %142, %141 : vector<2x128xf32>
    %144 = arith.divf %142, %143 : vector<2x128xf32>
    %145 = vector.extract_strided_slice %127 {offsets = [0, 256], sizes = [2, 128], strides = [1, 1]} : vector<2x512xf32> to vector<2x128xf32>
    %146 = math.tanh %145 : vector<2x128xf32>
    %147 = vector.extract_strided_slice %127 {offsets = [0, 384], sizes = [2, 128], strides = [1, 1]} : vector<2x512xf32> to vector<2x128xf32>
    %148 = arith.negf %147 : vector<2x128xf32>
    %149 = math.exp %148 : vector<2x128xf32>
    %cst_71 = arith.constant 1.000000e+00 : f32
    %150 = vector.broadcast %cst_71 : f32 to vector<2x128xf32>
    %151 = arith.addf %150, %149 : vector<2x128xf32>
    %152 = arith.divf %150, %151 : vector<2x128xf32>
    %153 = vector.extract_strided_slice %132 {offsets = [0, 0], sizes = [2, 128], strides = [1, 1]} : vector<2x512xf32> to vector<2x128xf32>
    %154 = arith.negf %153 : vector<2x128xf32>
    %155 = math.exp %154 : vector<2x128xf32>
    %cst_72 = arith.constant 1.000000e+00 : f32
    %156 = vector.broadcast %cst_72 : f32 to vector<2x128xf32>
    %157 = arith.addf %156, %155 : vector<2x128xf32>
    %158 = arith.divf %156, %157 : vector<2x128xf32>
    %159 = vector.extract_strided_slice %132 {offsets = [0, 128], sizes = [2, 128], strides = [1, 1]} : vector<2x512xf32> to vector<2x128xf32>
    %160 = arith.negf %159 : vector<2x128xf32>
    %161 = math.exp %160 : vector<2x128xf32>
    %cst_73 = arith.constant 1.000000e+00 : f32
    %162 = vector.broadcast %cst_73 : f32 to vector<2x128xf32>
    %163 = arith.addf %162, %161 : vector<2x128xf32>
    %164 = arith.divf %162, %163 : vector<2x128xf32>
    %165 = vector.extract_strided_slice %132 {offsets = [0, 256], sizes = [2, 128], strides = [1, 1]} : vector<2x512xf32> to vector<2x128xf32>
    %166 = math.tanh %165 : vector<2x128xf32>
    %167 = vector.extract_strided_slice %132 {offsets = [0, 384], sizes = [2, 128], strides = [1, 1]} : vector<2x512xf32> to vector<2x128xf32>
    %168 = arith.negf %167 : vector<2x128xf32>
    %169 = math.exp %168 : vector<2x128xf32>
    %cst_74 = arith.constant 1.000000e+00 : f32
    %170 = vector.broadcast %cst_74 : f32 to vector<2x128xf32>
    %171 = arith.addf %170, %169 : vector<2x128xf32>
    %172 = arith.divf %170, %171 : vector<2x128xf32>
    %173 = arith.mulf %144, %119 : vector<2x128xf32>
    %174 = arith.mulf %138, %146 : vector<2x128xf32>
    %175 = arith.addf %173, %174 : vector<2x128xf32>
    %176 = math.tanh %175 : vector<2x128xf32>
    %177 = arith.mulf %152, %176 : vector<2x128xf32>
    %178 = arith.mulf %164, %121 : vector<2x128xf32>
    %179 = arith.mulf %158, %166 : vector<2x128xf32>
    %180 = arith.addf %178, %179 : vector<2x128xf32>
    %181 = math.tanh %180 : vector<2x128xf32>
    %182 = arith.mulf %172, %181 : vector<2x128xf32>
    %c0_75 = arith.constant 0 : index
    %c0_76 = arith.constant 0 : index
    %c0_77 = arith.constant 0 : index
    %183 = vector.load %arg3[%c0_75, %c0_76, %c0_77] : memref<8x2x128xf32, #tpu.memory_space<vmem>>, vector<1x2x128xf32>
    %184 = vector.shape_cast %183 : vector<1x2x128xf32> to vector<2x128xf32>
    %c7 = arith.constant 7 : index
    %c0_78 = arith.constant 0 : index
    %c0_79 = arith.constant 0 : index
    %185 = vector.load %arg3[%c7, %c0_78, %c0_79] : memref<8x2x128xf32, #tpu.memory_space<vmem>>, vector<1x2x128xf32>
    %186 = vector.shape_cast %185 : vector<1x2x128xf32> to vector<2x128xf32>
    %c7_80 = arith.constant 7 : index
    %c0_81 = arith.constant 0 : index
    %c0_82 = arith.constant 0 : index
    %187 = vector.load %arg4[%c7_80, %c0_81, %c0_82] : memref<8x2x128xf32, #tpu.memory_space<vmem>>, vector<1x2x128xf32>
    %188 = vector.shape_cast %187 : vector<1x2x128xf32> to vector<2x128xf32>
    %189 = arith.mulf %184, %177 : vector<2x128xf32>
    %cst_83 = arith.constant 1.000000e+00 : f32
    %190 = vector.broadcast %cst_83 : f32 to vector<2x128xf32>
    %191 = arith.subf %190, %184 : vector<2x128xf32>
    %192 = arith.mulf %191, %118 : vector<2x128xf32>
    %193 = arith.addf %189, %192 : vector<2x128xf32>
    %194 = arith.mulf %184, %175 : vector<2x128xf32>
    %cst_84 = arith.constant 1.000000e+00 : f32
    %195 = vector.broadcast %cst_84 : f32 to vector<2x128xf32>
    %196 = arith.subf %195, %184 : vector<2x128xf32>
    %197 = arith.mulf %196, %119 : vector<2x128xf32>
    %198 = arith.addf %194, %197 : vector<2x128xf32>
    %199 = arith.mulf %186, %182 : vector<2x128xf32>
    %cst_85 = arith.constant 1.000000e+00 : f32
    %200 = vector.broadcast %cst_85 : f32 to vector<2x128xf32>
    %201 = arith.subf %200, %186 : vector<2x128xf32>
    %202 = arith.mulf %201, %120 : vector<2x128xf32>
    %203 = arith.addf %199, %202 : vector<2x128xf32>
    %204 = arith.mulf %186, %180 : vector<2x128xf32>
    %cst_86 = arith.constant 1.000000e+00 : f32
    %205 = vector.broadcast %cst_86 : f32 to vector<2x128xf32>
    %206 = arith.subf %205, %186 : vector<2x128xf32>
    %207 = arith.mulf %206, %121 : vector<2x128xf32>
    %208 = arith.addf %204, %207 : vector<2x128xf32>
    %209 = arith.mulf %188, %203 : vector<2x128xf32>
    %cst_87 = arith.constant 1.000000e+00 : f32
    %210 = vector.broadcast %cst_87 : f32 to vector<2x128xf32>
    %211 = arith.subf %210, %188 : vector<2x128xf32>
    %212 = arith.mulf %211, %122 : vector<2x128xf32>
    %213 = arith.addf %209, %212 : vector<2x128xf32>
    %c2 = arith.constant 2 : index
    %c0_88 = arith.constant 0 : index
    %214 = vector.load %arg33[%c2, %c0_88] : memref<16x1024xf32, #tpu.memory_space<vmem>>, vector<2x512xf32>
    %215 = arith.truncf %193 : vector<2x128xf32> to vector<2x128xbf16>
    %c0_89 = arith.constant 0 : index
    %c0_90 = arith.constant 0 : index
    %216 = vector.load %arg21[%c0_89, %c0_90] : memref<128x512xbf16, #tpu.memory_space<vmem>>, vector<128x512xbf16>
    %cst_91 = arith.constant dense<0.000000e+00> : vector<2x512xf32>
    %217 = tpu.matmul %215, %216, %cst_91 {dimension_numbers = #tpu.dot_dimension_numbers<[1], [0], [0], [1], [0, 0, 1, 1], [], []>} : vector<2x128xbf16>, vector<128x512xbf16>, vector<2x512xf32> -> vector<2x512xf32>
    %218 = arith.addf %214, %217 : vector<2x512xf32>
    %c12 = arith.constant 12 : index
    %c512_92 = arith.constant 512 : index
    %219 = vector.load %arg33[%c12, %c512_92] : memref<16x1024xf32, #tpu.memory_space<vmem>>, vector<2x512xf32>
    %220 = arith.truncf %203 : vector<2x128xf32> to vector<2x128xbf16>
    %c0_93 = arith.constant 0 : index
    %c0_94 = arith.constant 0 : index
    %221 = vector.load %arg22[%c0_93, %c0_94] : memref<128x512xbf16, #tpu.memory_space<vmem>>, vector<128x512xbf16>
    %cst_95 = arith.constant dense<0.000000e+00> : vector<2x512xf32>
    %222 = tpu.matmul %220, %221, %cst_95 {dimension_numbers = #tpu.dot_dimension_numbers<[1], [0], [0], [1], [0, 0, 1, 1], [], []>} : vector<2x128xbf16>, vector<128x512xbf16>, vector<2x512xf32> -> vector<2x512xf32>
    %223 = arith.addf %219, %222 : vector<2x512xf32>
    %224 = vector.extract_strided_slice %218 {offsets = [0, 0], sizes = [2, 128], strides = [1, 1]} : vector<2x512xf32> to vector<2x128xf32>
    %225 = arith.negf %224 : vector<2x128xf32>
    %226 = math.exp %225 : vector<2x128xf32>
    %cst_96 = arith.constant 1.000000e+00 : f32
    %227 = vector.broadcast %cst_96 : f32 to vector<2x128xf32>
    %228 = arith.addf %227, %226 : vector<2x128xf32>
    %229 = arith.divf %227, %228 : vector<2x128xf32>
    %230 = vector.extract_strided_slice %218 {offsets = [0, 128], sizes = [2, 128], strides = [1, 1]} : vector<2x512xf32> to vector<2x128xf32>
    %231 = arith.negf %230 : vector<2x128xf32>
    %232 = math.exp %231 : vector<2x128xf32>
    %cst_97 = arith.constant 1.000000e+00 : f32
    %233 = vector.broadcast %cst_97 : f32 to vector<2x128xf32>
    %234 = arith.addf %233, %232 : vector<2x128xf32>
    %235 = arith.divf %233, %234 : vector<2x128xf32>
    %236 = vector.extract_strided_slice %218 {offsets = [0, 256], sizes = [2, 128], strides = [1, 1]} : vector<2x512xf32> to vector<2x128xf32>
    %237 = math.tanh %236 : vector<2x128xf32>
    %238 = vector.extract_strided_slice %218 {offsets = [0, 384], sizes = [2, 128], strides = [1, 1]} : vector<2x512xf32> to vector<2x128xf32>
    %239 = arith.negf %238 : vector<2x128xf32>
    %240 = math.exp %239 : vector<2x128xf32>
    %cst_98 = arith.constant 1.000000e+00 : f32
    %241 = vector.broadcast %cst_98 : f32 to vector<2x128xf32>
    %242 = arith.addf %241, %240 : vector<2x128xf32>
    %243 = arith.divf %241, %242 : vector<2x128xf32>
    %244 = vector.extract_strided_slice %223 {offsets = [0, 0], sizes = [2, 128], strides = [1, 1]} : vector<2x512xf32> to vector<2x128xf32>
    %245 = arith.negf %244 : vector<2x128xf32>
    %246 = math.exp %245 : vector<2x128xf32>
    %cst_99 = arith.constant 1.000000e+00 : f32
    %247 = vector.broadcast %cst_99 : f32 to vector<2x128xf32>
    %248 = arith.addf %247, %246 : vector<2x128xf32>
    %249 = arith.divf %247, %248 : vector<2x128xf32>
    %250 = vector.extract_strided_slice %223 {offsets = [0, 128], sizes = [2, 128], strides = [1, 1]} : vector<2x512xf32> to vector<2x128xf32>
    %251 = arith.negf %250 : vector<2x128xf32>
    %252 = math.exp %251 : vector<2x128xf32>
    %cst_100 = arith.constant 1.000000e+00 : f32
    %253 = vector.broadcast %cst_100 : f32 to vector<2x128xf32>
    %254 = arith.addf %253, %252 : vector<2x128xf32>
    %255 = arith.divf %253, %254 : vector<2x128xf32>
    %256 = vector.extract_strided_slice %223 {offsets = [0, 256], sizes = [2, 128], strides = [1, 1]} : vector<2x512xf32> to vector<2x128xf32>
    %257 = math.tanh %256 : vector<2x128xf32>
    %258 = vector.extract_strided_slice %223 {offsets = [0, 384], sizes = [2, 128], strides = [1, 1]} : vector<2x512xf32> to vector<2x128xf32>
    %259 = arith.negf %258 : vector<2x128xf32>
    %260 = math.exp %259 : vector<2x128xf32>
    %cst_101 = arith.constant 1.000000e+00 : f32
    %261 = vector.broadcast %cst_101 : f32 to vector<2x128xf32>
    %262 = arith.addf %261, %260 : vector<2x128xf32>
    %263 = arith.divf %261, %262 : vector<2x128xf32>
    %264 = arith.mulf %235, %198 : vector<2x128xf32>
    %265 = arith.mulf %229, %237 : vector<2x128xf32>
    %266 = arith.addf %264, %265 : vector<2x128xf32>
    %267 = math.tanh %266 : vector<2x128xf32>
    %268 = arith.mulf %243, %267 : vector<2x128xf32>
    %269 = arith.mulf %255, %208 : vector<2x128xf32>
    %270 = arith.mulf %249, %257 : vector<2x128xf32>
    %271 = arith.addf %269, %270 : vector<2x128xf32>
    %272 = math.tanh %271 : vector<2x128xf32>
    %273 = arith.mulf %263, %272 : vector<2x128xf32>
    %c1 = arith.constant 1 : index
    %c0_102 = arith.constant 0 : index
    %c0_103 = arith.constant 0 : index
    %274 = vector.load %arg3[%c1, %c0_102, %c0_103] : memref<8x2x128xf32, #tpu.memory_space<vmem>>, vector<1x2x128xf32>
    %275 = vector.shape_cast %274 : vector<1x2x128xf32> to vector<2x128xf32>
    %c6 = arith.constant 6 : index
    %c0_104 = arith.constant 0 : index
    %c0_105 = arith.constant 0 : index
    %276 = vector.load %arg3[%c6, %c0_104, %c0_105] : memref<8x2x128xf32, #tpu.memory_space<vmem>>, vector<1x2x128xf32>
    %277 = vector.shape_cast %276 : vector<1x2x128xf32> to vector<2x128xf32>
    %c6_106 = arith.constant 6 : index
    %c0_107 = arith.constant 0 : index
    %c0_108 = arith.constant 0 : index
    %278 = vector.load %arg4[%c6_106, %c0_107, %c0_108] : memref<8x2x128xf32, #tpu.memory_space<vmem>>, vector<1x2x128xf32>
    %279 = vector.shape_cast %278 : vector<1x2x128xf32> to vector<2x128xf32>
    %280 = arith.mulf %275, %268 : vector<2x128xf32>
    %cst_109 = arith.constant 1.000000e+00 : f32
    %281 = vector.broadcast %cst_109 : f32 to vector<2x128xf32>
    %282 = arith.subf %281, %275 : vector<2x128xf32>
    %283 = arith.mulf %282, %193 : vector<2x128xf32>
    %284 = arith.addf %280, %283 : vector<2x128xf32>
    %285 = arith.mulf %275, %266 : vector<2x128xf32>
    %cst_110 = arith.constant 1.000000e+00 : f32
    %286 = vector.broadcast %cst_110 : f32 to vector<2x128xf32>
    %287 = arith.subf %286, %275 : vector<2x128xf32>
    %288 = arith.mulf %287, %198 : vector<2x128xf32>
    %289 = arith.addf %285, %288 : vector<2x128xf32>
    %290 = arith.mulf %277, %273 : vector<2x128xf32>
    %cst_111 = arith.constant 1.000000e+00 : f32
    %291 = vector.broadcast %cst_111 : f32 to vector<2x128xf32>
    %292 = arith.subf %291, %277 : vector<2x128xf32>
    %293 = arith.mulf %292, %203 : vector<2x128xf32>
    %294 = arith.addf %290, %293 : vector<2x128xf32>
    %295 = arith.mulf %277, %271 : vector<2x128xf32>
    %cst_112 = arith.constant 1.000000e+00 : f32
    %296 = vector.broadcast %cst_112 : f32 to vector<2x128xf32>
    %297 = arith.subf %296, %277 : vector<2x128xf32>
    %298 = arith.mulf %297, %208 : vector<2x128xf32>
    %299 = arith.addf %295, %298 : vector<2x128xf32>
    %300 = arith.mulf %279, %294 : vector<2x128xf32>
    %cst_113 = arith.constant 1.000000e+00 : f32
    %301 = vector.broadcast %cst_113 : f32 to vector<2x128xf32>
    %302 = arith.subf %301, %279 : vector<2x128xf32>
    %303 = arith.mulf %302, %213 : vector<2x128xf32>
    %304 = arith.addf %300, %303 : vector<2x128xf32>
    %c4 = arith.constant 4 : index
    %c0_114 = arith.constant 0 : index
    %305 = vector.load %arg33[%c4, %c0_114] : memref<16x1024xf32, #tpu.memory_space<vmem>>, vector<2x512xf32>
    %306 = arith.truncf %284 : vector<2x128xf32> to vector<2x128xbf16>
    %c0_115 = arith.constant 0 : index
    %c0_116 = arith.constant 0 : index
    %307 = vector.load %arg21[%c0_115, %c0_116] : memref<128x512xbf16, #tpu.memory_space<vmem>>, vector<128x512xbf16>
    %cst_117 = arith.constant dense<0.000000e+00> : vector<2x512xf32>
    %308 = tpu.matmul %306, %307, %cst_117 {dimension_numbers = #tpu.dot_dimension_numbers<[1], [0], [0], [1], [0, 0, 1, 1], [], []>} : vector<2x128xbf16>, vector<128x512xbf16>, vector<2x512xf32> -> vector<2x512xf32>
    %309 = arith.addf %305, %308 : vector<2x512xf32>
    %c10 = arith.constant 10 : index
    %c512_118 = arith.constant 512 : index
    %310 = vector.load %arg33[%c10, %c512_118] : memref<16x1024xf32, #tpu.memory_space<vmem>>, vector<2x512xf32>
    %311 = arith.truncf %294 : vector<2x128xf32> to vector<2x128xbf16>
    %c0_119 = arith.constant 0 : index
    %c0_120 = arith.constant 0 : index
    %312 = vector.load %arg22[%c0_119, %c0_120] : memref<128x512xbf16, #tpu.memory_space<vmem>>, vector<128x512xbf16>
    %cst_121 = arith.constant dense<0.000000e+00> : vector<2x512xf32>
    %313 = tpu.matmul %311, %312, %cst_121 {dimension_numbers = #tpu.dot_dimension_numbers<[1], [0], [0], [1], [0, 0, 1, 1], [], []>} : vector<2x128xbf16>, vector<128x512xbf16>, vector<2x512xf32> -> vector<2x512xf32>
    %314 = arith.addf %310, %313 : vector<2x512xf32>
    %315 = vector.extract_strided_slice %309 {offsets = [0, 0], sizes = [2, 128], strides = [1, 1]} : vector<2x512xf32> to vector<2x128xf32>
    %316 = arith.negf %315 : vector<2x128xf32>
    %317 = math.exp %316 : vector<2x128xf32>
    %cst_122 = arith.constant 1.000000e+00 : f32
    %318 = vector.broadcast %cst_122 : f32 to vector<2x128xf32>
    %319 = arith.addf %318, %317 : vector<2x128xf32>
    %320 = arith.divf %318, %319 : vector<2x128xf32>
    %321 = vector.extract_strided_slice %309 {offsets = [0, 128], sizes = [2, 128], strides = [1, 1]} : vector<2x512xf32> to vector<2x128xf32>
    %322 = arith.negf %321 : vector<2x128xf32>
    %323 = math.exp %322 : vector<2x128xf32>
    %cst_123 = arith.constant 1.000000e+00 : f32
    %324 = vector.broadcast %cst_123 : f32 to vector<2x128xf32>
    %325 = arith.addf %324, %323 : vector<2x128xf32>
    %326 = arith.divf %324, %325 : vector<2x128xf32>
    %327 = vector.extract_strided_slice %309 {offsets = [0, 256], sizes = [2, 128], strides = [1, 1]} : vector<2x512xf32> to vector<2x128xf32>
    %328 = math.tanh %327 : vector<2x128xf32>
    %329 = vector.extract_strided_slice %309 {offsets = [0, 384], sizes = [2, 128], strides = [1, 1]} : vector<2x512xf32> to vector<2x128xf32>
    %330 = arith.negf %329 : vector<2x128xf32>
    %331 = math.exp %330 : vector<2x128xf32>
    %cst_124 = arith.constant 1.000000e+00 : f32
    %332 = vector.broadcast %cst_124 : f32 to vector<2x128xf32>
    %333 = arith.addf %332, %331 : vector<2x128xf32>
    %334 = arith.divf %332, %333 : vector<2x128xf32>
    %335 = vector.extract_strided_slice %314 {offsets = [0, 0], sizes = [2, 128], strides = [1, 1]} : vector<2x512xf32> to vector<2x128xf32>
    %336 = arith.negf %335 : vector<2x128xf32>
    %337 = math.exp %336 : vector<2x128xf32>
    %cst_125 = arith.constant 1.000000e+00 : f32
    %338 = vector.broadcast %cst_125 : f32 to vector<2x128xf32>
    %339 = arith.addf %338, %337 : vector<2x128xf32>
    %340 = arith.divf %338, %339 : vector<2x128xf32>
    %341 = vector.extract_strided_slice %314 {offsets = [0, 128], sizes = [2, 128], strides = [1, 1]} : vector<2x512xf32> to vector<2x128xf32>
    %342 = arith.negf %341 : vector<2x128xf32>
    %343 = math.exp %342 : vector<2x128xf32>
    %cst_126 = arith.constant 1.000000e+00 : f32
    %344 = vector.broadcast %cst_126 : f32 to vector<2x128xf32>
    %345 = arith.addf %344, %343 : vector<2x128xf32>
    %346 = arith.divf %344, %345 : vector<2x128xf32>
    %347 = vector.extract_strided_slice %314 {offsets = [0, 256], sizes = [2, 128], strides = [1, 1]} : vector<2x512xf32> to vector<2x128xf32>
    %348 = math.tanh %347 : vector<2x128xf32>
    %349 = vector.extract_strided_slice %314 {offsets = [0, 384], sizes = [2, 128], strides = [1, 1]} : vector<2x512xf32> to vector<2x128xf32>
    %350 = arith.negf %349 : vector<2x128xf32>
    %351 = math.exp %350 : vector<2x128xf32>
    %cst_127 = arith.constant 1.000000e+00 : f32
    %352 = vector.broadcast %cst_127 : f32 to vector<2x128xf32>
    %353 = arith.addf %352, %351 : vector<2x128xf32>
    %354 = arith.divf %352, %353 : vector<2x128xf32>
    %355 = arith.mulf %326, %289 : vector<2x128xf32>
    %356 = arith.mulf %320, %328 : vector<2x128xf32>
    %357 = arith.addf %355, %356 : vector<2x128xf32>
    %358 = math.tanh %357 : vector<2x128xf32>
    %359 = arith.mulf %334, %358 : vector<2x128xf32>
    %360 = arith.mulf %346, %299 : vector<2x128xf32>
    %361 = arith.mulf %340, %348 : vector<2x128xf32>
    %362 = arith.addf %360, %361 : vector<2x128xf32>
    %363 = math.tanh %362 : vector<2x128xf32>
    %364 = arith.mulf %354, %363 : vector<2x128xf32>
    %c2_128 = arith.constant 2 : index
    %c0_129 = arith.constant 0 : index
    %c0_130 = arith.constant 0 : index
    %365 = vector.load %arg3[%c2_128, %c0_129, %c0_130] : memref<8x2x128xf32, #tpu.memory_space<vmem>>, vector<1x2x128xf32>
    %366 = vector.shape_cast %365 : vector<1x2x128xf32> to vector<2x128xf32>
    %c5 = arith.constant 5 : index
    %c0_131 = arith.constant 0 : index
    %c0_132 = arith.constant 0 : index
    %367 = vector.load %arg3[%c5, %c0_131, %c0_132] : memref<8x2x128xf32, #tpu.memory_space<vmem>>, vector<1x2x128xf32>
    %368 = vector.shape_cast %367 : vector<1x2x128xf32> to vector<2x128xf32>
    %c5_133 = arith.constant 5 : index
    %c0_134 = arith.constant 0 : index
    %c0_135 = arith.constant 0 : index
    %369 = vector.load %arg4[%c5_133, %c0_134, %c0_135] : memref<8x2x128xf32, #tpu.memory_space<vmem>>, vector<1x2x128xf32>
    %370 = vector.shape_cast %369 : vector<1x2x128xf32> to vector<2x128xf32>
    %371 = arith.mulf %366, %359 : vector<2x128xf32>
    %cst_136 = arith.constant 1.000000e+00 : f32
    %372 = vector.broadcast %cst_136 : f32 to vector<2x128xf32>
    %373 = arith.subf %372, %366 : vector<2x128xf32>
    %374 = arith.mulf %373, %284 : vector<2x128xf32>
    %375 = arith.addf %371, %374 : vector<2x128xf32>
    %376 = arith.mulf %366, %357 : vector<2x128xf32>
    %cst_137 = arith.constant 1.000000e+00 : f32
    %377 = vector.broadcast %cst_137 : f32 to vector<2x128xf32>
    %378 = arith.subf %377, %366 : vector<2x128xf32>
    %379 = arith.mulf %378, %289 : vector<2x128xf32>
    %380 = arith.addf %376, %379 : vector<2x128xf32>
    %381 = arith.mulf %368, %364 : vector<2x128xf32>
    %cst_138 = arith.constant 1.000000e+00 : f32
    %382 = vector.broadcast %cst_138 : f32 to vector<2x128xf32>
    %383 = arith.subf %382, %368 : vector<2x128xf32>
    %384 = arith.mulf %383, %294 : vector<2x128xf32>
    %385 = arith.addf %381, %384 : vector<2x128xf32>
    %386 = arith.mulf %368, %362 : vector<2x128xf32>
    %cst_139 = arith.constant 1.000000e+00 : f32
    %387 = vector.broadcast %cst_139 : f32 to vector<2x128xf32>
    %388 = arith.subf %387, %368 : vector<2x128xf32>
    %389 = arith.mulf %388, %299 : vector<2x128xf32>
    %390 = arith.addf %386, %389 : vector<2x128xf32>
    %391 = arith.mulf %370, %385 : vector<2x128xf32>
    %cst_140 = arith.constant 1.000000e+00 : f32
    %392 = vector.broadcast %cst_140 : f32 to vector<2x128xf32>
    %393 = arith.subf %392, %370 : vector<2x128xf32>
    %394 = arith.mulf %393, %304 : vector<2x128xf32>
    %395 = arith.addf %391, %394 : vector<2x128xf32>
    %c6_141 = arith.constant 6 : index
    %c0_142 = arith.constant 0 : index
    %396 = vector.load %arg33[%c6_141, %c0_142] : memref<16x1024xf32, #tpu.memory_space<vmem>>, vector<2x512xf32>
    %397 = arith.truncf %375 : vector<2x128xf32> to vector<2x128xbf16>
    %c0_143 = arith.constant 0 : index
    %c0_144 = arith.constant 0 : index
    %398 = vector.load %arg21[%c0_143, %c0_144] : memref<128x512xbf16, #tpu.memory_space<vmem>>, vector<128x512xbf16>
    %cst_145 = arith.constant dense<0.000000e+00> : vector<2x512xf32>
    %399 = tpu.matmul %397, %398, %cst_145 {dimension_numbers = #tpu.dot_dimension_numbers<[1], [0], [0], [1], [0, 0, 1, 1], [], []>} : vector<2x128xbf16>, vector<128x512xbf16>, vector<2x512xf32> -> vector<2x512xf32>
    %400 = arith.addf %396, %399 : vector<2x512xf32>
    %c8 = arith.constant 8 : index
    %c512_146 = arith.constant 512 : index
    %401 = vector.load %arg33[%c8, %c512_146] : memref<16x1024xf32, #tpu.memory_space<vmem>>, vector<2x512xf32>
    %402 = arith.truncf %385 : vector<2x128xf32> to vector<2x128xbf16>
    %c0_147 = arith.constant 0 : index
    %c0_148 = arith.constant 0 : index
    %403 = vector.load %arg22[%c0_147, %c0_148] : memref<128x512xbf16, #tpu.memory_space<vmem>>, vector<128x512xbf16>
    %cst_149 = arith.constant dense<0.000000e+00> : vector<2x512xf32>
    %404 = tpu.matmul %402, %403, %cst_149 {dimension_numbers = #tpu.dot_dimension_numbers<[1], [0], [0], [1], [0, 0, 1, 1], [], []>} : vector<2x128xbf16>, vector<128x512xbf16>, vector<2x512xf32> -> vector<2x512xf32>
    %405 = arith.addf %401, %404 : vector<2x512xf32>
    %406 = vector.extract_strided_slice %400 {offsets = [0, 0], sizes = [2, 128], strides = [1, 1]} : vector<2x512xf32> to vector<2x128xf32>
    %407 = arith.negf %406 : vector<2x128xf32>
    %408 = math.exp %407 : vector<2x128xf32>
    %cst_150 = arith.constant 1.000000e+00 : f32
    %409 = vector.broadcast %cst_150 : f32 to vector<2x128xf32>
    %410 = arith.addf %409, %408 : vector<2x128xf32>
    %411 = arith.divf %409, %410 : vector<2x128xf32>
    %412 = vector.extract_strided_slice %400 {offsets = [0, 128], sizes = [2, 128], strides = [1, 1]} : vector<2x512xf32> to vector<2x128xf32>
    %413 = arith.negf %412 : vector<2x128xf32>
    %414 = math.exp %413 : vector<2x128xf32>
    %cst_151 = arith.constant 1.000000e+00 : f32
    %415 = vector.broadcast %cst_151 : f32 to vector<2x128xf32>
    %416 = arith.addf %415, %414 : vector<2x128xf32>
    %417 = arith.divf %415, %416 : vector<2x128xf32>
    %418 = vector.extract_strided_slice %400 {offsets = [0, 256], sizes = [2, 128], strides = [1, 1]} : vector<2x512xf32> to vector<2x128xf32>
    %419 = math.tanh %418 : vector<2x128xf32>
    %420 = vector.extract_strided_slice %400 {offsets = [0, 384], sizes = [2, 128], strides = [1, 1]} : vector<2x512xf32> to vector<2x128xf32>
    %421 = arith.negf %420 : vector<2x128xf32>
    %422 = math.exp %421 : vector<2x128xf32>
    %cst_152 = arith.constant 1.000000e+00 : f32
    %423 = vector.broadcast %cst_152 : f32 to vector<2x128xf32>
    %424 = arith.addf %423, %422 : vector<2x128xf32>
    %425 = arith.divf %423, %424 : vector<2x128xf32>
    %426 = vector.extract_strided_slice %405 {offsets = [0, 0], sizes = [2, 128], strides = [1, 1]} : vector<2x512xf32> to vector<2x128xf32>
    %427 = arith.negf %426 : vector<2x128xf32>
    %428 = math.exp %427 : vector<2x128xf32>
    %cst_153 = arith.constant 1.000000e+00 : f32
    %429 = vector.broadcast %cst_153 : f32 to vector<2x128xf32>
    %430 = arith.addf %429, %428 : vector<2x128xf32>
    %431 = arith.divf %429, %430 : vector<2x128xf32>
    %432 = vector.extract_strided_slice %405 {offsets = [0, 128], sizes = [2, 128], strides = [1, 1]} : vector<2x512xf32> to vector<2x128xf32>
    %433 = arith.negf %432 : vector<2x128xf32>
    %434 = math.exp %433 : vector<2x128xf32>
    %cst_154 = arith.constant 1.000000e+00 : f32
    %435 = vector.broadcast %cst_154 : f32 to vector<2x128xf32>
    %436 = arith.addf %435, %434 : vector<2x128xf32>
    %437 = arith.divf %435, %436 : vector<2x128xf32>
    %438 = vector.extract_strided_slice %405 {offsets = [0, 256], sizes = [2, 128], strides = [1, 1]} : vector<2x512xf32> to vector<2x128xf32>
    %439 = math.tanh %438 : vector<2x128xf32>
    %440 = vector.extract_strided_slice %405 {offsets = [0, 384], sizes = [2, 128], strides = [1, 1]} : vector<2x512xf32> to vector<2x128xf32>
    %441 = arith.negf %440 : vector<2x128xf32>
    %442 = math.exp %441 : vector<2x128xf32>
    %cst_155 = arith.constant 1.000000e+00 : f32
    %443 = vector.broadcast %cst_155 : f32 to vector<2x128xf32>
    %444 = arith.addf %443, %442 : vector<2x128xf32>
    %445 = arith.divf %443, %444 : vector<2x128xf32>
    %446 = arith.mulf %417, %380 : vector<2x128xf32>
    %447 = arith.mulf %411, %419 : vector<2x128xf32>
    %448 = arith.addf %446, %447 : vector<2x128xf32>
    %449 = math.tanh %448 : vector<2x128xf32>
    %450 = arith.mulf %425, %449 : vector<2x128xf32>
    %451 = arith.mulf %437, %390 : vector<2x128xf32>
    %452 = arith.mulf %431, %439 : vector<2x128xf32>
    %453 = arith.addf %451, %452 : vector<2x128xf32>
    %454 = math.tanh %453 : vector<2x128xf32>
    %455 = arith.mulf %445, %454 : vector<2x128xf32>
    %c3 = arith.constant 3 : index
    %c0_156 = arith.constant 0 : index
    %c0_157 = arith.constant 0 : index
    %456 = vector.load %arg3[%c3, %c0_156, %c0_157] : memref<8x2x128xf32, #tpu.memory_space<vmem>>, vector<1x2x128xf32>
    %457 = vector.shape_cast %456 : vector<1x2x128xf32> to vector<2x128xf32>
    %c4_158 = arith.constant 4 : index
    %c0_159 = arith.constant 0 : index
    %c0_160 = arith.constant 0 : index
    %458 = vector.load %arg3[%c4_158, %c0_159, %c0_160] : memref<8x2x128xf32, #tpu.memory_space<vmem>>, vector<1x2x128xf32>
    %459 = vector.shape_cast %458 : vector<1x2x128xf32> to vector<2x128xf32>
    %c4_161 = arith.constant 4 : index
    %c0_162 = arith.constant 0 : index
    %c0_163 = arith.constant 0 : index
    %460 = vector.load %arg4[%c4_161, %c0_162, %c0_163] : memref<8x2x128xf32, #tpu.memory_space<vmem>>, vector<1x2x128xf32>
    %461 = vector.shape_cast %460 : vector<1x2x128xf32> to vector<2x128xf32>
    %462 = arith.mulf %457, %450 : vector<2x128xf32>
    %cst_164 = arith.constant 1.000000e+00 : f32
    %463 = vector.broadcast %cst_164 : f32 to vector<2x128xf32>
    %464 = arith.subf %463, %457 : vector<2x128xf32>
    %465 = arith.mulf %464, %375 : vector<2x128xf32>
    %466 = arith.addf %462, %465 : vector<2x128xf32>
    %467 = arith.mulf %457, %448 : vector<2x128xf32>
    %cst_165 = arith.constant 1.000000e+00 : f32
    %468 = vector.broadcast %cst_165 : f32 to vector<2x128xf32>
    %469 = arith.subf %468, %457 : vector<2x128xf32>
    %470 = arith.mulf %469, %380 : vector<2x128xf32>
    %471 = arith.addf %467, %470 : vector<2x128xf32>
    %472 = arith.mulf %459, %455 : vector<2x128xf32>
    %cst_166 = arith.constant 1.000000e+00 : f32
    %473 = vector.broadcast %cst_166 : f32 to vector<2x128xf32>
    %474 = arith.subf %473, %459 : vector<2x128xf32>
    %475 = arith.mulf %474, %385 : vector<2x128xf32>
    %476 = arith.addf %472, %475 : vector<2x128xf32>
    %477 = arith.mulf %459, %453 : vector<2x128xf32>
    %cst_167 = arith.constant 1.000000e+00 : f32
    %478 = vector.broadcast %cst_167 : f32 to vector<2x128xf32>
    %479 = arith.subf %478, %459 : vector<2x128xf32>
    %480 = arith.mulf %479, %390 : vector<2x128xf32>
    %481 = arith.addf %477, %480 : vector<2x128xf32>
    %482 = arith.mulf %461, %476 : vector<2x128xf32>
    %cst_168 = arith.constant 1.000000e+00 : f32
    %483 = vector.broadcast %cst_168 : f32 to vector<2x128xf32>
    %484 = arith.subf %483, %461 : vector<2x128xf32>
    %485 = arith.mulf %484, %395 : vector<2x128xf32>
    %486 = arith.addf %482, %485 : vector<2x128xf32>
    %c8_169 = arith.constant 8 : index
    %c0_170 = arith.constant 0 : index
    %487 = vector.load %arg33[%c8_169, %c0_170] : memref<16x1024xf32, #tpu.memory_space<vmem>>, vector<2x512xf32>
    %488 = arith.truncf %466 : vector<2x128xf32> to vector<2x128xbf16>
    %c0_171 = arith.constant 0 : index
    %c0_172 = arith.constant 0 : index
    %489 = vector.load %arg21[%c0_171, %c0_172] : memref<128x512xbf16, #tpu.memory_space<vmem>>, vector<128x512xbf16>
    %cst_173 = arith.constant dense<0.000000e+00> : vector<2x512xf32>
    %490 = tpu.matmul %488, %489, %cst_173 {dimension_numbers = #tpu.dot_dimension_numbers<[1], [0], [0], [1], [0, 0, 1, 1], [], []>} : vector<2x128xbf16>, vector<128x512xbf16>, vector<2x512xf32> -> vector<2x512xf32>
    %491 = arith.addf %487, %490 : vector<2x512xf32>
    %c6_174 = arith.constant 6 : index
    %c512_175 = arith.constant 512 : index
    %492 = vector.load %arg33[%c6_174, %c512_175] : memref<16x1024xf32, #tpu.memory_space<vmem>>, vector<2x512xf32>
    %493 = arith.truncf %476 : vector<2x128xf32> to vector<2x128xbf16>
    %c0_176 = arith.constant 0 : index
    %c0_177 = arith.constant 0 : index
    %494 = vector.load %arg22[%c0_176, %c0_177] : memref<128x512xbf16, #tpu.memory_space<vmem>>, vector<128x512xbf16>
    %cst_178 = arith.constant dense<0.000000e+00> : vector<2x512xf32>
    %495 = tpu.matmul %493, %494, %cst_178 {dimension_numbers = #tpu.dot_dimension_numbers<[1], [0], [0], [1], [0, 0, 1, 1], [], []>} : vector<2x128xbf16>, vector<128x512xbf16>, vector<2x512xf32> -> vector<2x512xf32>
    %496 = arith.addf %492, %495 : vector<2x512xf32>
    %497 = vector.extract_strided_slice %491 {offsets = [0, 0], sizes = [2, 128], strides = [1, 1]} : vector<2x512xf32> to vector<2x128xf32>
    %498 = arith.negf %497 : vector<2x128xf32>
    %499 = math.exp %498 : vector<2x128xf32>
    %cst_179 = arith.constant 1.000000e+00 : f32
    %500 = vector.broadcast %cst_179 : f32 to vector<2x128xf32>
    %501 = arith.addf %500, %499 : vector<2x128xf32>
    %502 = arith.divf %500, %501 : vector<2x128xf32>
    %503 = vector.extract_strided_slice %491 {offsets = [0, 128], sizes = [2, 128], strides = [1, 1]} : vector<2x512xf32> to vector<2x128xf32>
    %504 = arith.negf %503 : vector<2x128xf32>
    %505 = math.exp %504 : vector<2x128xf32>
    %cst_180 = arith.constant 1.000000e+00 : f32
    %506 = vector.broadcast %cst_180 : f32 to vector<2x128xf32>
    %507 = arith.addf %506, %505 : vector<2x128xf32>
    %508 = arith.divf %506, %507 : vector<2x128xf32>
    %509 = vector.extract_strided_slice %491 {offsets = [0, 256], sizes = [2, 128], strides = [1, 1]} : vector<2x512xf32> to vector<2x128xf32>
    %510 = math.tanh %509 : vector<2x128xf32>
    %511 = vector.extract_strided_slice %491 {offsets = [0, 384], sizes = [2, 128], strides = [1, 1]} : vector<2x512xf32> to vector<2x128xf32>
    %512 = arith.negf %511 : vector<2x128xf32>
    %513 = math.exp %512 : vector<2x128xf32>
    %cst_181 = arith.constant 1.000000e+00 : f32
    %514 = vector.broadcast %cst_181 : f32 to vector<2x128xf32>
    %515 = arith.addf %514, %513 : vector<2x128xf32>
    %516 = arith.divf %514, %515 : vector<2x128xf32>
    %517 = vector.extract_strided_slice %496 {offsets = [0, 0], sizes = [2, 128], strides = [1, 1]} : vector<2x512xf32> to vector<2x128xf32>
    %518 = arith.negf %517 : vector<2x128xf32>
    %519 = math.exp %518 : vector<2x128xf32>
    %cst_182 = arith.constant 1.000000e+00 : f32
    %520 = vector.broadcast %cst_182 : f32 to vector<2x128xf32>
    %521 = arith.addf %520, %519 : vector<2x128xf32>
    %522 = arith.divf %520, %521 : vector<2x128xf32>
    %523 = vector.extract_strided_slice %496 {offsets = [0, 128], sizes = [2, 128], strides = [1, 1]} : vector<2x512xf32> to vector<2x128xf32>
    %524 = arith.negf %523 : vector<2x128xf32>
    %525 = math.exp %524 : vector<2x128xf32>
    %cst_183 = arith.constant 1.000000e+00 : f32
    %526 = vector.broadcast %cst_183 : f32 to vector<2x128xf32>
    %527 = arith.addf %526, %525 : vector<2x128xf32>
    %528 = arith.divf %526, %527 : vector<2x128xf32>
    %529 = vector.extract_strided_slice %496 {offsets = [0, 256], sizes = [2, 128], strides = [1, 1]} : vector<2x512xf32> to vector<2x128xf32>
    %530 = math.tanh %529 : vector<2x128xf32>
    %531 = vector.extract_strided_slice %496 {offsets = [0, 384], sizes = [2, 128], strides = [1, 1]} : vector<2x512xf32> to vector<2x128xf32>
    %532 = arith.negf %531 : vector<2x128xf32>
    %533 = math.exp %532 : vector<2x128xf32>
    %cst_184 = arith.constant 1.000000e+00 : f32
    %534 = vector.broadcast %cst_184 : f32 to vector<2x128xf32>
    %535 = arith.addf %534, %533 : vector<2x128xf32>
    %536 = arith.divf %534, %535 : vector<2x128xf32>
    %537 = arith.mulf %508, %471 : vector<2x128xf32>
    %538 = arith.mulf %502, %510 : vector<2x128xf32>
    %539 = arith.addf %537, %538 : vector<2x128xf32>
    %540 = math.tanh %539 : vector<2x128xf32>
    %541 = arith.mulf %516, %540 : vector<2x128xf32>
    %542 = arith.mulf %528, %481 : vector<2x128xf32>
    %543 = arith.mulf %522, %530 : vector<2x128xf32>
    %544 = arith.addf %542, %543 : vector<2x128xf32>
    %545 = math.tanh %544 : vector<2x128xf32>
    %546 = arith.mulf %536, %545 : vector<2x128xf32>
    %c4_185 = arith.constant 4 : index
    %c0_186 = arith.constant 0 : index
    %c0_187 = arith.constant 0 : index
    %547 = vector.load %arg3[%c4_185, %c0_186, %c0_187] : memref<8x2x128xf32, #tpu.memory_space<vmem>>, vector<1x2x128xf32>
    %548 = vector.shape_cast %547 : vector<1x2x128xf32> to vector<2x128xf32>
    %c3_188 = arith.constant 3 : index
    %c0_189 = arith.constant 0 : index
    %c0_190 = arith.constant 0 : index
    %549 = vector.load %arg3[%c3_188, %c0_189, %c0_190] : memref<8x2x128xf32, #tpu.memory_space<vmem>>, vector<1x2x128xf32>
    %550 = vector.shape_cast %549 : vector<1x2x128xf32> to vector<2x128xf32>
    %c3_191 = arith.constant 3 : index
    %c0_192 = arith.constant 0 : index
    %c0_193 = arith.constant 0 : index
    %551 = vector.load %arg4[%c3_191, %c0_192, %c0_193] : memref<8x2x128xf32, #tpu.memory_space<vmem>>, vector<1x2x128xf32>
    %552 = vector.shape_cast %551 : vector<1x2x128xf32> to vector<2x128xf32>
    %553 = arith.mulf %548, %541 : vector<2x128xf32>
    %cst_194 = arith.constant 1.000000e+00 : f32
    %554 = vector.broadcast %cst_194 : f32 to vector<2x128xf32>
    %555 = arith.subf %554, %548 : vector<2x128xf32>
    %556 = arith.mulf %555, %466 : vector<2x128xf32>
    %557 = arith.addf %553, %556 : vector<2x128xf32>
    %558 = arith.mulf %548, %539 : vector<2x128xf32>
    %cst_195 = arith.constant 1.000000e+00 : f32
    %559 = vector.broadcast %cst_195 : f32 to vector<2x128xf32>
    %560 = arith.subf %559, %548 : vector<2x128xf32>
    %561 = arith.mulf %560, %471 : vector<2x128xf32>
    %562 = arith.addf %558, %561 : vector<2x128xf32>
    %563 = arith.mulf %550, %546 : vector<2x128xf32>
    %cst_196 = arith.constant 1.000000e+00 : f32
    %564 = vector.broadcast %cst_196 : f32 to vector<2x128xf32>
    %565 = arith.subf %564, %550 : vector<2x128xf32>
    %566 = arith.mulf %565, %476 : vector<2x128xf32>
    %567 = arith.addf %563, %566 : vector<2x128xf32>
    %568 = arith.mulf %550, %544 : vector<2x128xf32>
    %cst_197 = arith.constant 1.000000e+00 : f32
    %569 = vector.broadcast %cst_197 : f32 to vector<2x128xf32>
    %570 = arith.subf %569, %550 : vector<2x128xf32>
    %571 = arith.mulf %570, %481 : vector<2x128xf32>
    %572 = arith.addf %568, %571 : vector<2x128xf32>
    %573 = arith.mulf %552, %567 : vector<2x128xf32>
    %cst_198 = arith.constant 1.000000e+00 : f32
    %574 = vector.broadcast %cst_198 : f32 to vector<2x128xf32>
    %575 = arith.subf %574, %552 : vector<2x128xf32>
    %576 = arith.mulf %575, %486 : vector<2x128xf32>
    %577 = arith.addf %573, %576 : vector<2x128xf32>
    %c10_199 = arith.constant 10 : index
    %c0_200 = arith.constant 0 : index
    %578 = vector.load %arg33[%c10_199, %c0_200] : memref<16x1024xf32, #tpu.memory_space<vmem>>, vector<2x512xf32>
    %579 = arith.truncf %557 : vector<2x128xf32> to vector<2x128xbf16>
    %c0_201 = arith.constant 0 : index
    %c0_202 = arith.constant 0 : index
    %580 = vector.load %arg21[%c0_201, %c0_202] : memref<128x512xbf16, #tpu.memory_space<vmem>>, vector<128x512xbf16>
    %cst_203 = arith.constant dense<0.000000e+00> : vector<2x512xf32>
    %581 = tpu.matmul %579, %580, %cst_203 {dimension_numbers = #tpu.dot_dimension_numbers<[1], [0], [0], [1], [0, 0, 1, 1], [], []>} : vector<2x128xbf16>, vector<128x512xbf16>, vector<2x512xf32> -> vector<2x512xf32>
    %582 = arith.addf %578, %581 : vector<2x512xf32>
    %c4_204 = arith.constant 4 : index
    %c512_205 = arith.constant 512 : index
    %583 = vector.load %arg33[%c4_204, %c512_205] : memref<16x1024xf32, #tpu.memory_space<vmem>>, vector<2x512xf32>
    %584 = arith.truncf %567 : vector<2x128xf32> to vector<2x128xbf16>
    %c0_206 = arith.constant 0 : index
    %c0_207 = arith.constant 0 : index
    %585 = vector.load %arg22[%c0_206, %c0_207] : memref<128x512xbf16, #tpu.memory_space<vmem>>, vector<128x512xbf16>
    %cst_208 = arith.constant dense<0.000000e+00> : vector<2x512xf32>
    %586 = tpu.matmul %584, %585, %cst_208 {dimension_numbers = #tpu.dot_dimension_numbers<[1], [0], [0], [1], [0, 0, 1, 1], [], []>} : vector<2x128xbf16>, vector<128x512xbf16>, vector<2x512xf32> -> vector<2x512xf32>
    %587 = arith.addf %583, %586 : vector<2x512xf32>
    %588 = vector.extract_strided_slice %582 {offsets = [0, 0], sizes = [2, 128], strides = [1, 1]} : vector<2x512xf32> to vector<2x128xf32>
    %589 = arith.negf %588 : vector<2x128xf32>
    %590 = math.exp %589 : vector<2x128xf32>
    %cst_209 = arith.constant 1.000000e+00 : f32
    %591 = vector.broadcast %cst_209 : f32 to vector<2x128xf32>
    %592 = arith.addf %591, %590 : vector<2x128xf32>
    %593 = arith.divf %591, %592 : vector<2x128xf32>
    %594 = vector.extract_strided_slice %582 {offsets = [0, 128], sizes = [2, 128], strides = [1, 1]} : vector<2x512xf32> to vector<2x128xf32>
    %595 = arith.negf %594 : vector<2x128xf32>
    %596 = math.exp %595 : vector<2x128xf32>
    %cst_210 = arith.constant 1.000000e+00 : f32
    %597 = vector.broadcast %cst_210 : f32 to vector<2x128xf32>
    %598 = arith.addf %597, %596 : vector<2x128xf32>
    %599 = arith.divf %597, %598 : vector<2x128xf32>
    %600 = vector.extract_strided_slice %582 {offsets = [0, 256], sizes = [2, 128], strides = [1, 1]} : vector<2x512xf32> to vector<2x128xf32>
    %601 = math.tanh %600 : vector<2x128xf32>
    %602 = vector.extract_strided_slice %582 {offsets = [0, 384], sizes = [2, 128], strides = [1, 1]} : vector<2x512xf32> to vector<2x128xf32>
    %603 = arith.negf %602 : vector<2x128xf32>
    %604 = math.exp %603 : vector<2x128xf32>
    %cst_211 = arith.constant 1.000000e+00 : f32
    %605 = vector.broadcast %cst_211 : f32 to vector<2x128xf32>
    %606 = arith.addf %605, %604 : vector<2x128xf32>
    %607 = arith.divf %605, %606 : vector<2x128xf32>
    %608 = vector.extract_strided_slice %587 {offsets = [0, 0], sizes = [2, 128], strides = [1, 1]} : vector<2x512xf32> to vector<2x128xf32>
    %609 = arith.negf %608 : vector<2x128xf32>
    %610 = math.exp %609 : vector<2x128xf32>
    %cst_212 = arith.constant 1.000000e+00 : f32
    %611 = vector.broadcast %cst_212 : f32 to vector<2x128xf32>
    %612 = arith.addf %611, %610 : vector<2x128xf32>
    %613 = arith.divf %611, %612 : vector<2x128xf32>
    %614 = vector.extract_strided_slice %587 {offsets = [0, 128], sizes = [2, 128], strides = [1, 1]} : vector<2x512xf32> to vector<2x128xf32>
    %615 = arith.negf %614 : vector<2x128xf32>
    %616 = math.exp %615 : vector<2x128xf32>
    %cst_213 = arith.constant 1.000000e+00 : f32
    %617 = vector.broadcast %cst_213 : f32 to vector<2x128xf32>
    %618 = arith.addf %617, %616 : vector<2x128xf32>
    %619 = arith.divf %617, %618 : vector<2x128xf32>
    %620 = vector.extract_strided_slice %587 {offsets = [0, 256], sizes = [2, 128], strides = [1, 1]} : vector<2x512xf32> to vector<2x128xf32>
    %621 = math.tanh %620 : vector<2x128xf32>
    %622 = vector.extract_strided_slice %587 {offsets = [0, 384], sizes = [2, 128], strides = [1, 1]} : vector<2x512xf32> to vector<2x128xf32>
    %623 = arith.negf %622 : vector<2x128xf32>
    %624 = math.exp %623 : vector<2x128xf32>
    %cst_214 = arith.constant 1.000000e+00 : f32
    %625 = vector.broadcast %cst_214 : f32 to vector<2x128xf32>
    %626 = arith.addf %625, %624 : vector<2x128xf32>
    %627 = arith.divf %625, %626 : vector<2x128xf32>
    %628 = arith.mulf %599, %562 : vector<2x128xf32>
    %629 = arith.mulf %593, %601 : vector<2x128xf32>
    %630 = arith.addf %628, %629 : vector<2x128xf32>
    %631 = math.tanh %630 : vector<2x128xf32>
    %632 = arith.mulf %607, %631 : vector<2x128xf32>
    %633 = arith.mulf %619, %572 : vector<2x128xf32>
    %634 = arith.mulf %613, %621 : vector<2x128xf32>
    %635 = arith.addf %633, %634 : vector<2x128xf32>
    %636 = math.tanh %635 : vector<2x128xf32>
    %637 = arith.mulf %627, %636 : vector<2x128xf32>
    %c5_215 = arith.constant 5 : index
    %c0_216 = arith.constant 0 : index
    %c0_217 = arith.constant 0 : index
    %638 = vector.load %arg3[%c5_215, %c0_216, %c0_217] : memref<8x2x128xf32, #tpu.memory_space<vmem>>, vector<1x2x128xf32>
    %639 = vector.shape_cast %638 : vector<1x2x128xf32> to vector<2x128xf32>
    %c2_218 = arith.constant 2 : index
    %c0_219 = arith.constant 0 : index
    %c0_220 = arith.constant 0 : index
    %640 = vector.load %arg3[%c2_218, %c0_219, %c0_220] : memref<8x2x128xf32, #tpu.memory_space<vmem>>, vector<1x2x128xf32>
    %641 = vector.shape_cast %640 : vector<1x2x128xf32> to vector<2x128xf32>
    %c2_221 = arith.constant 2 : index
    %c0_222 = arith.constant 0 : index
    %c0_223 = arith.constant 0 : index
    %642 = vector.load %arg4[%c2_221, %c0_222, %c0_223] : memref<8x2x128xf32, #tpu.memory_space<vmem>>, vector<1x2x128xf32>
    %643 = vector.shape_cast %642 : vector<1x2x128xf32> to vector<2x128xf32>
    %644 = arith.mulf %639, %632 : vector<2x128xf32>
    %cst_224 = arith.constant 1.000000e+00 : f32
    %645 = vector.broadcast %cst_224 : f32 to vector<2x128xf32>
    %646 = arith.subf %645, %639 : vector<2x128xf32>
    %647 = arith.mulf %646, %557 : vector<2x128xf32>
    %648 = arith.addf %644, %647 : vector<2x128xf32>
    %649 = arith.mulf %639, %630 : vector<2x128xf32>
    %cst_225 = arith.constant 1.000000e+00 : f32
    %650 = vector.broadcast %cst_225 : f32 to vector<2x128xf32>
    %651 = arith.subf %650, %639 : vector<2x128xf32>
    %652 = arith.mulf %651, %562 : vector<2x128xf32>
    %653 = arith.addf %649, %652 : vector<2x128xf32>
    %654 = arith.mulf %641, %637 : vector<2x128xf32>
    %cst_226 = arith.constant 1.000000e+00 : f32
    %655 = vector.broadcast %cst_226 : f32 to vector<2x128xf32>
    %656 = arith.subf %655, %641 : vector<2x128xf32>
    %657 = arith.mulf %656, %567 : vector<2x128xf32>
    %658 = arith.addf %654, %657 : vector<2x128xf32>
    %659 = arith.mulf %641, %635 : vector<2x128xf32>
    %cst_227 = arith.constant 1.000000e+00 : f32
    %660 = vector.broadcast %cst_227 : f32 to vector<2x128xf32>
    %661 = arith.subf %660, %641 : vector<2x128xf32>
    %662 = arith.mulf %661, %572 : vector<2x128xf32>
    %663 = arith.addf %659, %662 : vector<2x128xf32>
    %664 = arith.mulf %643, %658 : vector<2x128xf32>
    %cst_228 = arith.constant 1.000000e+00 : f32
    %665 = vector.broadcast %cst_228 : f32 to vector<2x128xf32>
    %666 = arith.subf %665, %643 : vector<2x128xf32>
    %667 = arith.mulf %666, %577 : vector<2x128xf32>
    %668 = arith.addf %664, %667 : vector<2x128xf32>
    %c12_229 = arith.constant 12 : index
    %c0_230 = arith.constant 0 : index
    %669 = vector.load %arg33[%c12_229, %c0_230] : memref<16x1024xf32, #tpu.memory_space<vmem>>, vector<2x512xf32>
    %670 = arith.truncf %648 : vector<2x128xf32> to vector<2x128xbf16>
    %c0_231 = arith.constant 0 : index
    %c0_232 = arith.constant 0 : index
    %671 = vector.load %arg21[%c0_231, %c0_232] : memref<128x512xbf16, #tpu.memory_space<vmem>>, vector<128x512xbf16>
    %cst_233 = arith.constant dense<0.000000e+00> : vector<2x512xf32>
    %672 = tpu.matmul %670, %671, %cst_233 {dimension_numbers = #tpu.dot_dimension_numbers<[1], [0], [0], [1], [0, 0, 1, 1], [], []>} : vector<2x128xbf16>, vector<128x512xbf16>, vector<2x512xf32> -> vector<2x512xf32>
    %673 = arith.addf %669, %672 : vector<2x512xf32>
    %c2_234 = arith.constant 2 : index
    %c512_235 = arith.constant 512 : index
    %674 = vector.load %arg33[%c2_234, %c512_235] : memref<16x1024xf32, #tpu.memory_space<vmem>>, vector<2x512xf32>
    %675 = arith.truncf %658 : vector<2x128xf32> to vector<2x128xbf16>
    %c0_236 = arith.constant 0 : index
    %c0_237 = arith.constant 0 : index
    %676 = vector.load %arg22[%c0_236, %c0_237] : memref<128x512xbf16, #tpu.memory_space<vmem>>, vector<128x512xbf16>
    %cst_238 = arith.constant dense<0.000000e+00> : vector<2x512xf32>
    %677 = tpu.matmul %675, %676, %cst_238 {dimension_numbers = #tpu.dot_dimension_numbers<[1], [0], [0], [1], [0, 0, 1, 1], [], []>} : vector<2x128xbf16>, vector<128x512xbf16>, vector<2x512xf32> -> vector<2x512xf32>
    %678 = arith.addf %674, %677 : vector<2x512xf32>
    %679 = vector.extract_strided_slice %673 {offsets = [0, 0], sizes = [2, 128], strides = [1, 1]} : vector<2x512xf32> to vector<2x128xf32>
    %680 = arith.negf %679 : vector<2x128xf32>
    %681 = math.exp %680 : vector<2x128xf32>
    %cst_239 = arith.constant 1.000000e+00 : f32
    %682 = vector.broadcast %cst_239 : f32 to vector<2x128xf32>
    %683 = arith.addf %682, %681 : vector<2x128xf32>
    %684 = arith.divf %682, %683 : vector<2x128xf32>
    %685 = vector.extract_strided_slice %673 {offsets = [0, 128], sizes = [2, 128], strides = [1, 1]} : vector<2x512xf32> to vector<2x128xf32>
    %686 = arith.negf %685 : vector<2x128xf32>
    %687 = math.exp %686 : vector<2x128xf32>
    %cst_240 = arith.constant 1.000000e+00 : f32
    %688 = vector.broadcast %cst_240 : f32 to vector<2x128xf32>
    %689 = arith.addf %688, %687 : vector<2x128xf32>
    %690 = arith.divf %688, %689 : vector<2x128xf32>
    %691 = vector.extract_strided_slice %673 {offsets = [0, 256], sizes = [2, 128], strides = [1, 1]} : vector<2x512xf32> to vector<2x128xf32>
    %692 = math.tanh %691 : vector<2x128xf32>
    %693 = vector.extract_strided_slice %673 {offsets = [0, 384], sizes = [2, 128], strides = [1, 1]} : vector<2x512xf32> to vector<2x128xf32>
    %694 = arith.negf %693 : vector<2x128xf32>
    %695 = math.exp %694 : vector<2x128xf32>
    %cst_241 = arith.constant 1.000000e+00 : f32
    %696 = vector.broadcast %cst_241 : f32 to vector<2x128xf32>
    %697 = arith.addf %696, %695 : vector<2x128xf32>
    %698 = arith.divf %696, %697 : vector<2x128xf32>
    %699 = vector.extract_strided_slice %678 {offsets = [0, 0], sizes = [2, 128], strides = [1, 1]} : vector<2x512xf32> to vector<2x128xf32>
    %700 = arith.negf %699 : vector<2x128xf32>
    %701 = math.exp %700 : vector<2x128xf32>
    %cst_242 = arith.constant 1.000000e+00 : f32
    %702 = vector.broadcast %cst_242 : f32 to vector<2x128xf32>
    %703 = arith.addf %702, %701 : vector<2x128xf32>
    %704 = arith.divf %702, %703 : vector<2x128xf32>
    %705 = vector.extract_strided_slice %678 {offsets = [0, 128], sizes = [2, 128], strides = [1, 1]} : vector<2x512xf32> to vector<2x128xf32>
    %706 = arith.negf %705 : vector<2x128xf32>
    %707 = math.exp %706 : vector<2x128xf32>
    %cst_243 = arith.constant 1.000000e+00 : f32
    %708 = vector.broadcast %cst_243 : f32 to vector<2x128xf32>
    %709 = arith.addf %708, %707 : vector<2x128xf32>
    %710 = arith.divf %708, %709 : vector<2x128xf32>
    %711 = vector.extract_strided_slice %678 {offsets = [0, 256], sizes = [2, 128], strides = [1, 1]} : vector<2x512xf32> to vector<2x128xf32>
    %712 = math.tanh %711 : vector<2x128xf32>
    %713 = vector.extract_strided_slice %678 {offsets = [0, 384], sizes = [2, 128], strides = [1, 1]} : vector<2x512xf32> to vector<2x128xf32>
    %714 = arith.negf %713 : vector<2x128xf32>
    %715 = math.exp %714 : vector<2x128xf32>
    %cst_244 = arith.constant 1.000000e+00 : f32
    %716 = vector.broadcast %cst_244 : f32 to vector<2x128xf32>
    %717 = arith.addf %716, %715 : vector<2x128xf32>
    %718 = arith.divf %716, %717 : vector<2x128xf32>
    %719 = arith.mulf %690, %653 : vector<2x128xf32>
    %720 = arith.mulf %684, %692 : vector<2x128xf32>
    %721 = arith.addf %719, %720 : vector<2x128xf32>
    %722 = math.tanh %721 : vector<2x128xf32>
    %723 = arith.mulf %698, %722 : vector<2x128xf32>
    %724 = arith.mulf %710, %663 : vector<2x128xf32>
    %725 = arith.mulf %704, %712 : vector<2x128xf32>
    %726 = arith.addf %724, %725 : vector<2x128xf32>
    %727 = math.tanh %726 : vector<2x128xf32>
    %728 = arith.mulf %718, %727 : vector<2x128xf32>
    %c6_245 = arith.constant 6 : index
    %c0_246 = arith.constant 0 : index
    %c0_247 = arith.constant 0 : index
    %729 = vector.load %arg3[%c6_245, %c0_246, %c0_247] : memref<8x2x128xf32, #tpu.memory_space<vmem>>, vector<1x2x128xf32>
    %730 = vector.shape_cast %729 : vector<1x2x128xf32> to vector<2x128xf32>
    %c1_248 = arith.constant 1 : index
    %c0_249 = arith.constant 0 : index
    %c0_250 = arith.constant 0 : index
    %731 = vector.load %arg3[%c1_248, %c0_249, %c0_250] : memref<8x2x128xf32, #tpu.memory_space<vmem>>, vector<1x2x128xf32>
    %732 = vector.shape_cast %731 : vector<1x2x128xf32> to vector<2x128xf32>
    %c1_251 = arith.constant 1 : index
    %c0_252 = arith.constant 0 : index
    %c0_253 = arith.constant 0 : index
    %733 = vector.load %arg4[%c1_251, %c0_252, %c0_253] : memref<8x2x128xf32, #tpu.memory_space<vmem>>, vector<1x2x128xf32>
    %734 = vector.shape_cast %733 : vector<1x2x128xf32> to vector<2x128xf32>
    %735 = arith.mulf %730, %723 : vector<2x128xf32>
    %cst_254 = arith.constant 1.000000e+00 : f32
    %736 = vector.broadcast %cst_254 : f32 to vector<2x128xf32>
    %737 = arith.subf %736, %730 : vector<2x128xf32>
    %738 = arith.mulf %737, %648 : vector<2x128xf32>
    %739 = arith.addf %735, %738 : vector<2x128xf32>
    %740 = arith.mulf %730, %721 : vector<2x128xf32>
    %cst_255 = arith.constant 1.000000e+00 : f32
    %741 = vector.broadcast %cst_255 : f32 to vector<2x128xf32>
    %742 = arith.subf %741, %730 : vector<2x128xf32>
    %743 = arith.mulf %742, %653 : vector<2x128xf32>
    %744 = arith.addf %740, %743 : vector<2x128xf32>
    %745 = arith.mulf %732, %728 : vector<2x128xf32>
    %cst_256 = arith.constant 1.000000e+00 : f32
    %746 = vector.broadcast %cst_256 : f32 to vector<2x128xf32>
    %747 = arith.subf %746, %732 : vector<2x128xf32>
    %748 = arith.mulf %747, %658 : vector<2x128xf32>
    %749 = arith.addf %745, %748 : vector<2x128xf32>
    %750 = arith.mulf %732, %726 : vector<2x128xf32>
    %cst_257 = arith.constant 1.000000e+00 : f32
    %751 = vector.broadcast %cst_257 : f32 to vector<2x128xf32>
    %752 = arith.subf %751, %732 : vector<2x128xf32>
    %753 = arith.mulf %752, %663 : vector<2x128xf32>
    %754 = arith.addf %750, %753 : vector<2x128xf32>
    %755 = arith.mulf %734, %749 : vector<2x128xf32>
    %cst_258 = arith.constant 1.000000e+00 : f32
    %756 = vector.broadcast %cst_258 : f32 to vector<2x128xf32>
    %757 = arith.subf %756, %734 : vector<2x128xf32>
    %758 = arith.mulf %757, %668 : vector<2x128xf32>
    %759 = arith.addf %755, %758 : vector<2x128xf32>
    %c14_259 = arith.constant 14 : index
    %c0_260 = arith.constant 0 : index
    %760 = vector.load %arg33[%c14_259, %c0_260] : memref<16x1024xf32, #tpu.memory_space<vmem>>, vector<2x512xf32>
    %761 = arith.truncf %739 : vector<2x128xf32> to vector<2x128xbf16>
    %c0_261 = arith.constant 0 : index
    %c0_262 = arith.constant 0 : index
    %762 = vector.load %arg21[%c0_261, %c0_262] : memref<128x512xbf16, #tpu.memory_space<vmem>>, vector<128x512xbf16>
    %cst_263 = arith.constant dense<0.000000e+00> : vector<2x512xf32>
    %763 = tpu.matmul %761, %762, %cst_263 {dimension_numbers = #tpu.dot_dimension_numbers<[1], [0], [0], [1], [0, 0, 1, 1], [], []>} : vector<2x128xbf16>, vector<128x512xbf16>, vector<2x512xf32> -> vector<2x512xf32>
    %764 = arith.addf %760, %763 : vector<2x512xf32>
    %c0_264 = arith.constant 0 : index
    %c512_265 = arith.constant 512 : index
    %765 = vector.load %arg33[%c0_264, %c512_265] : memref<16x1024xf32, #tpu.memory_space<vmem>>, vector<2x512xf32>
    %766 = arith.truncf %749 : vector<2x128xf32> to vector<2x128xbf16>
    %c0_266 = arith.constant 0 : index
    %c0_267 = arith.constant 0 : index
    %767 = vector.load %arg22[%c0_266, %c0_267] : memref<128x512xbf16, #tpu.memory_space<vmem>>, vector<128x512xbf16>
    %cst_268 = arith.constant dense<0.000000e+00> : vector<2x512xf32>
    %768 = tpu.matmul %766, %767, %cst_268 {dimension_numbers = #tpu.dot_dimension_numbers<[1], [0], [0], [1], [0, 0, 1, 1], [], []>} : vector<2x128xbf16>, vector<128x512xbf16>, vector<2x512xf32> -> vector<2x512xf32>
    %769 = arith.addf %765, %768 : vector<2x512xf32>
    %770 = vector.extract_strided_slice %764 {offsets = [0, 0], sizes = [2, 128], strides = [1, 1]} : vector<2x512xf32> to vector<2x128xf32>
    %771 = arith.negf %770 : vector<2x128xf32>
    %772 = math.exp %771 : vector<2x128xf32>
    %cst_269 = arith.constant 1.000000e+00 : f32
    %773 = vector.broadcast %cst_269 : f32 to vector<2x128xf32>
    %774 = arith.addf %773, %772 : vector<2x128xf32>
    %775 = arith.divf %773, %774 : vector<2x128xf32>
    %776 = vector.extract_strided_slice %764 {offsets = [0, 128], sizes = [2, 128], strides = [1, 1]} : vector<2x512xf32> to vector<2x128xf32>
    %777 = arith.negf %776 : vector<2x128xf32>
    %778 = math.exp %777 : vector<2x128xf32>
    %cst_270 = arith.constant 1.000000e+00 : f32
    %779 = vector.broadcast %cst_270 : f32 to vector<2x128xf32>
    %780 = arith.addf %779, %778 : vector<2x128xf32>
    %781 = arith.divf %779, %780 : vector<2x128xf32>
    %782 = vector.extract_strided_slice %764 {offsets = [0, 256], sizes = [2, 128], strides = [1, 1]} : vector<2x512xf32> to vector<2x128xf32>
    %783 = math.tanh %782 : vector<2x128xf32>
    %784 = vector.extract_strided_slice %764 {offsets = [0, 384], sizes = [2, 128], strides = [1, 1]} : vector<2x512xf32> to vector<2x128xf32>
    %785 = arith.negf %784 : vector<2x128xf32>
    %786 = math.exp %785 : vector<2x128xf32>
    %cst_271 = arith.constant 1.000000e+00 : f32
    %787 = vector.broadcast %cst_271 : f32 to vector<2x128xf32>
    %788 = arith.addf %787, %786 : vector<2x128xf32>
    %789 = arith.divf %787, %788 : vector<2x128xf32>
    %790 = vector.extract_strided_slice %769 {offsets = [0, 0], sizes = [2, 128], strides = [1, 1]} : vector<2x512xf32> to vector<2x128xf32>
    %791 = arith.negf %790 : vector<2x128xf32>
    %792 = math.exp %791 : vector<2x128xf32>
    %cst_272 = arith.constant 1.000000e+00 : f32
    %793 = vector.broadcast %cst_272 : f32 to vector<2x128xf32>
    %794 = arith.addf %793, %792 : vector<2x128xf32>
    %795 = arith.divf %793, %794 : vector<2x128xf32>
    %796 = vector.extract_strided_slice %769 {offsets = [0, 128], sizes = [2, 128], strides = [1, 1]} : vector<2x512xf32> to vector<2x128xf32>
    %797 = arith.negf %796 : vector<2x128xf32>
    %798 = math.exp %797 : vector<2x128xf32>
    %cst_273 = arith.constant 1.000000e+00 : f32
    %799 = vector.broadcast %cst_273 : f32 to vector<2x128xf32>
    %800 = arith.addf %799, %798 : vector<2x128xf32>
    %801 = arith.divf %799, %800 : vector<2x128xf32>
    %802 = vector.extract_strided_slice %769 {offsets = [0, 256], sizes = [2, 128], strides = [1, 1]} : vector<2x512xf32> to vector<2x128xf32>
    %803 = math.tanh %802 : vector<2x128xf32>
    %804 = vector.extract_strided_slice %769 {offsets = [0, 384], sizes = [2, 128], strides = [1, 1]} : vector<2x512xf32> to vector<2x128xf32>
    %805 = arith.negf %804 : vector<2x128xf32>
    %806 = math.exp %805 : vector<2x128xf32>
    %cst_274 = arith.constant 1.000000e+00 : f32
    %807 = vector.broadcast %cst_274 : f32 to vector<2x128xf32>
    %808 = arith.addf %807, %806 : vector<2x128xf32>
    %809 = arith.divf %807, %808 : vector<2x128xf32>
    %810 = arith.mulf %781, %744 : vector<2x128xf32>
    %811 = arith.mulf %775, %783 : vector<2x128xf32>
    %812 = arith.addf %810, %811 : vector<2x128xf32>
    %813 = math.tanh %812 : vector<2x128xf32>
    %814 = arith.mulf %789, %813 : vector<2x128xf32>
    %815 = arith.mulf %801, %754 : vector<2x128xf32>
    %816 = arith.mulf %795, %803 : vector<2x128xf32>
    %817 = arith.addf %815, %816 : vector<2x128xf32>
    %818 = math.tanh %817 : vector<2x128xf32>
    %819 = arith.mulf %809, %818 : vector<2x128xf32>
    %c7_275 = arith.constant 7 : index
    %c0_276 = arith.constant 0 : index
    %c0_277 = arith.constant 0 : index
    %820 = vector.load %arg3[%c7_275, %c0_276, %c0_277] : memref<8x2x128xf32, #tpu.memory_space<vmem>>, vector<1x2x128xf32>
    %821 = vector.shape_cast %820 : vector<1x2x128xf32> to vector<2x128xf32>
    %c0_278 = arith.constant 0 : index
    %c0_279 = arith.constant 0 : index
    %c0_280 = arith.constant 0 : index
    %822 = vector.load %arg3[%c0_278, %c0_279, %c0_280] : memref<8x2x128xf32, #tpu.memory_space<vmem>>, vector<1x2x128xf32>
    %823 = vector.shape_cast %822 : vector<1x2x128xf32> to vector<2x128xf32>
    %c0_281 = arith.constant 0 : index
    %c0_282 = arith.constant 0 : index
    %c0_283 = arith.constant 0 : index
    %824 = vector.load %arg4[%c0_281, %c0_282, %c0_283] : memref<8x2x128xf32, #tpu.memory_space<vmem>>, vector<1x2x128xf32>
    %825 = vector.shape_cast %824 : vector<1x2x128xf32> to vector<2x128xf32>
    %826 = arith.mulf %821, %814 : vector<2x128xf32>
    %cst_284 = arith.constant 1.000000e+00 : f32
    %827 = vector.broadcast %cst_284 : f32 to vector<2x128xf32>
    %828 = arith.subf %827, %821 : vector<2x128xf32>
    %829 = arith.mulf %828, %739 : vector<2x128xf32>
    %830 = arith.addf %826, %829 : vector<2x128xf32>
    %831 = arith.mulf %823, %819 : vector<2x128xf32>
    %cst_285 = arith.constant 1.000000e+00 : f32
    %832 = vector.broadcast %cst_285 : f32 to vector<2x128xf32>
    %833 = arith.subf %832, %823 : vector<2x128xf32>
    %834 = arith.mulf %833, %749 : vector<2x128xf32>
    %835 = arith.addf %831, %834 : vector<2x128xf32>
    %836 = arith.mulf %825, %835 : vector<2x128xf32>
    %cst_286 = arith.constant 1.000000e+00 : f32
    %837 = vector.broadcast %cst_286 : f32 to vector<2x128xf32>
    %838 = arith.subf %837, %825 : vector<2x128xf32>
    %839 = arith.mulf %838, %759 : vector<2x128xf32>
    %840 = arith.addf %836, %839 : vector<2x128xf32>
    %c0_287 = arith.constant 0 : index
    %c0_288 = arith.constant 0 : index
    %841 = vector.load %arg5[%c0_287, %c0_288] : memref<2x32xf32, #tpu.memory_space<vmem>>, vector<2x32xf32>
    %842 = arith.truncf %841 : vector<2x32xf32> to vector<2x32xbf16>
    %c0_289 = arith.constant 0 : index
    %c0_290 = arith.constant 0 : index
    %843 = vector.load %arg23[%c0_289, %c0_290] : memref<32x64xbf16, #tpu.memory_space<vmem>>, vector<32x64xbf16>
    %cst_291 = arith.constant dense<0.000000e+00> : vector<2x64xf32>
    %844 = tpu.matmul %842, %843, %cst_291 {dimension_numbers = #tpu.dot_dimension_numbers<[1], [0], [0], [1], [0, 0, 1, 1], [], []>} : vector<2x32xbf16>, vector<32x64xbf16>, vector<2x64xf32> -> vector<2x64xf32>
    %c0_292 = arith.constant 0 : index
    %c0_293 = arith.constant 0 : index
    %845 = vector.load %arg24[%c0_292, %c0_293] : memref<1x64xf32, #tpu.memory_space<vmem>>, vector<1x64xf32>
    %846 = vector.broadcast %845 : vector<1x64xf32> to vector<2x64xf32>
    %847 = arith.addf %844, %846 : vector<2x64xf32>
    %c0_294 = arith.constant 0 : index
    %c0_295 = arith.constant 0 : index
    %848 = vector.load %arg6[%c0_294, %c0_295] : memref<2x64xf32, #tpu.memory_space<vmem>>, vector<2x64xf32>
    %c0_296 = arith.constant 0 : index
    %c0_297 = arith.constant 0 : index
    %849 = vector.load %arg25[%c0_296, %c0_297] : memref<1x64xf32, #tpu.memory_space<vmem>>, vector<1x64xf32>
    %850 = vector.broadcast %849 : vector<1x64xf32> to vector<2x64xf32>
    %851 = arith.mulf %848, %850 : vector<2x64xf32>
    %c0_298 = arith.constant 0 : index
    %c0_299 = arith.constant 0 : index
    %852 = vector.load %arg26[%c0_298, %c0_299] : memref<1x64xf32, #tpu.memory_space<vmem>>, vector<1x64xf32>
    %853 = vector.broadcast %852 : vector<1x64xf32> to vector<2x64xf32>
    %854 = arith.addf %851, %853 : vector<2x64xf32>
    %855 = arith.truncf %830 : vector<2x128xf32> to vector<2x128xbf16>
    %c0_300 = arith.constant 0 : index
    %c0_301 = arith.constant 0 : index
    %856 = vector.load %arg27[%c0_300, %c0_301] : memref<128x256xbf16, #tpu.memory_space<vmem>>, vector<128x256xbf16>
    %cst_302 = arith.constant dense<0.000000e+00> : vector<2x256xf32>
    %857 = tpu.matmul %855, %856, %cst_302 {dimension_numbers = #tpu.dot_dimension_numbers<[1], [0], [0], [1], [0, 0, 1, 1], [], []>} : vector<2x128xbf16>, vector<128x256xbf16>, vector<2x256xf32> -> vector<2x256xf32>
    %858 = arith.truncf %840 : vector<2x128xf32> to vector<2x128xbf16>
    %c0_303 = arith.constant 0 : index
    %c0_304 = arith.constant 0 : index
    %859 = vector.load %arg28[%c0_303, %c0_304] : memref<128x256xbf16, #tpu.memory_space<vmem>>, vector<128x256xbf16>
    %cst_305 = arith.constant dense<0.000000e+00> : vector<2x256xf32>
    %860 = tpu.matmul %858, %859, %cst_305 {dimension_numbers = #tpu.dot_dimension_numbers<[1], [0], [0], [1], [0, 0, 1, 1], [], []>} : vector<2x128xbf16>, vector<128x256xbf16>, vector<2x256xf32> -> vector<2x256xf32>
    %861 = arith.addf %857, %860 : vector<2x256xf32>
    %862 = arith.truncf %847 : vector<2x64xf32> to vector<2x64xbf16>
    %c0_306 = arith.constant 0 : index
    %c0_307 = arith.constant 0 : index
    %863 = vector.load %arg29[%c0_306, %c0_307] : memref<64x256xbf16, #tpu.memory_space<vmem>>, vector<64x256xbf16>
    %cst_308 = arith.constant dense<0.000000e+00> : vector<2x256xf32>
    %864 = tpu.matmul %862, %863, %cst_308 {dimension_numbers = #tpu.dot_dimension_numbers<[1], [0], [0], [1], [0, 0, 1, 1], [], []>} : vector<2x64xbf16>, vector<64x256xbf16>, vector<2x256xf32> -> vector<2x256xf32>
    %865 = arith.addf %861, %864 : vector<2x256xf32>
    %866 = arith.truncf %854 : vector<2x64xf32> to vector<2x64xbf16>
    %c0_309 = arith.constant 0 : index
    %c0_310 = arith.constant 0 : index
    %867 = vector.load %arg30[%c0_309, %c0_310] : memref<64x256xbf16, #tpu.memory_space<vmem>>, vector<64x256xbf16>
    %cst_311 = arith.constant dense<0.000000e+00> : vector<2x256xf32>
    %868 = tpu.matmul %866, %867, %cst_311 {dimension_numbers = #tpu.dot_dimension_numbers<[1], [0], [0], [1], [0, 0, 1, 1], [], []>} : vector<2x64xbf16>, vector<64x256xbf16>, vector<2x256xf32> -> vector<2x256xf32>
    %869 = arith.addf %865, %868 : vector<2x256xf32>
    %c0_312 = arith.constant 0 : index
    %c0_313 = arith.constant 0 : index
    %870 = vector.load %arg31[%c0_312, %c0_313] : memref<1x256xf32, #tpu.memory_space<vmem>>, vector<1x256xf32>
    %871 = vector.broadcast %870 : vector<1x256xf32> to vector<2x256xf32>
    %872 = arith.addf %869, %871 : vector<2x256xf32>
    %c0_314 = arith.constant 0 : index
    %c0_315 = arith.constant 0 : index
    %873 = vector.load %arg32[%c0_314, %c0_315] : memref<2x256xf32, #tpu.memory_space<vmem>>, vector<2x256xf32>
    tpu.vector_store %arg32[%c0_314, %c0_315], %872 {strides = array<i32>} : memref<2x256xf32, #tpu.memory_space<vmem>>, vector<2x256xf32>,
    return
  }
  func.func @transform_0(%arg0: i32) -> (i32, i32) {
    %c0_i32 = arith.constant 0 : i32
    %c0_i32_0 = arith.constant 0 : i32
    %c0_i32_1 = arith.constant 0 : i32
    return %c0_i32, %c0_i32_0 : i32, i32
  }
  func.func @transform_1(%arg0: i32) -> (i32, i32) {
    %c0_i32 = arith.constant 0 : i32
    %c0_i32_0 = arith.constant 0 : i32
    %c0_i32_1 = arith.constant 0 : i32
    return %c0_i32, %c0_i32_0 : i32, i32
  }
  func.func @transform_2(%arg0: i32) -> (i32, i32, i32) {
    %c0_i32 = arith.constant 0 : i32
    %c0_i32_0 = arith.constant 0 : i32
    %c0_i32_1 = arith.constant 0 : i32
    %c0_i32_2 = arith.constant 0 : i32
    return %c0_i32, %c0_i32_0, %c0_i32_1 : i32, i32, i32
  }
  func.func @transform_3(%arg0: i32) -> (i32, i32, i32) {
    %c0_i32 = arith.constant 0 : i32
    %c0_i32_0 = arith.constant 0 : i32
    %c0_i32_1 = arith.constant 0 : i32
    %c0_i32_2 = arith.constant 0 : i32
    return %c0_i32, %c0_i32_0, %c0_i32_1 : i32, i32, i32
  }
  func.func @transform_4(%arg0: i32) -> (i32, i32) {
    %c0_i32 = arith.constant 0 : i32
    %c0_i32_0 = arith.constant 0 : i32
    %c0_i32_1 = arith.constant 0 : i32
    return %c0_i32, %c0_i32_0 : i32, i32
  }
  func.func @transform_5(%arg0: i32) -> (i32, i32) {
    %c0_i32 = arith.constant 0 : i32
    %c0_i32_0 = arith.constant 0 : i32
    %c0_i32_1 = arith.constant 0 : i32
    return %c0_i32, %c0_i32_0 : i32, i32
  }
  func.func @transform_6(%arg0: i32) -> (i32, i32) {
    %c0_i32 = arith.constant 0 : i32
    %c0_i32_0 = arith.constant 0 : i32
    %c0_i32_1 = arith.constant 0 : i32
    return %c0_i32, %c0_i32_0 : i32, i32
  }
  func.func @transform_7(%arg0: i32) -> (i32, i32) {
    %c0_i32 = arith.constant 0 : i32
    %c0_i32_0 = arith.constant 0 : i32
    %c0_i32_1 = arith.constant 0 : i32
    return %c0_i32, %c0_i32_0 : i32, i32
  }
  func.func @transform_8(%arg0: i32) -> (i32, i32) {
    %c0_i32 = arith.constant 0 : i32
    %c0_i32_0 = arith.constant 0 : i32
    %c0_i32_1 = arith.constant 0 : i32
    return %c0_i32, %c0_i32_0 : i32, i32
  }
  func.func @transform_9(%arg0: i32) -> (i32, i32) {
    %c0_i32 = arith.constant 0 : i32
    %c0_i32_0 = arith.constant 0 : i32
    %c0_i32_1 = arith.constant 0 : i32
    return %c0_i32, %c0_i32_0 : i32, i32
  }
  func.func @transform_10(%arg0: i32) -> (i32, i32) {
    %c0_i32 = arith.constant 0 : i32
    %c0_i32_0 = arith.constant 0 : i32
    %c0_i32_1 = arith.constant 0 : i32
    return %c0_i32, %c0_i32_0 : i32, i32
  }
  func.func @transform_11(%arg0: i32) -> (i32, i32) {
    %c0_i32 = arith.constant 0 : i32
    %c0_i32_0 = arith.constant 0 : i32
    %c0_i32_1 = arith.constant 0 : i32
    return %c0_i32, %c0_i32_0 : i32, i32
  }
  func.func @transform_12(%arg0: i32) -> (i32, i32) {
    %c0_i32 = arith.constant 0 : i32
    %c0_i32_0 = arith.constant 0 : i32
    %c0_i32_1 = arith.constant 0 : i32
    return %c0_i32, %c0_i32_0 : i32, i32
  }
  func.func @transform_13(%arg0: i32) -> (i32, i32) {
    %c0_i32 = arith.constant 0 : i32
    %c0_i32_0 = arith.constant 0 : i32
    %c0_i32_1 = arith.constant 0 : i32
    return %c0_i32, %c0_i32_0 : i32, i32
  }
  func.func @transform_14(%arg0: i32) -> (i32, i32) {
    %c0_i32 = arith.constant 0 : i32
    %c0_i32_0 = arith.constant 0 : i32
    %c0_i32_1 = arith.constant 0 : i32
    return %c0_i32, %c0_i32_0 : i32, i32
  }
  func.func @transform_15(%arg0: i32) -> (i32, i32) {
    %c0_i32 = arith.constant 0 : i32
    %c0_i32_0 = arith.constant 0 : i32
    %c0_i32_1 = arith.constant 0 : i32
    return %c0_i32, %c0_i32_0 : i32, i32
  }
  func.func @transform_16(%arg0: i32) -> (i32, i32) {
    %c0_i32 = arith.constant 0 : i32
    %c0_i32_0 = arith.constant 0 : i32
    %c0_i32_1 = arith.constant 0 : i32
    return %c0_i32, %c0_i32_0 : i32, i32
  }
  func.func @transform_17(%arg0: i32) -> (i32, i32) {
    %c0_i32 = arith.constant 0 : i32
    %c0_i32_0 = arith.constant 0 : i32
    %c0_i32_1 = arith.constant 0 : i32
    return %c0_i32, %c0_i32_0 : i32, i32
  }
  func.func @transform_18(%arg0: i32) -> (i32, i32) {
    %c0_i32 = arith.constant 0 : i32
    %c0_i32_0 = arith.constant 0 : i32
    %c0_i32_1 = arith.constant 0 : i32
    return %c0_i32, %c0_i32_0 : i32, i32
  }
  func.func @transform_19(%arg0: i32) -> (i32, i32) {
    %c0_i32 = arith.constant 0 : i32
    %c0_i32_0 = arith.constant 0 : i32
    %c0_i32_1 = arith.constant 0 : i32
    return %c0_i32, %c0_i32_0 : i32, i32
  }
  func.func @transform_20(%arg0: i32) -> (i32, i32) {
    %c0_i32 = arith.constant 0 : i32
    %c0_i32_0 = arith.constant 0 : i32
    %c0_i32_1 = arith.constant 0 : i32
    return %c0_i32, %c0_i32_0 : i32, i32
  }
  func.func @transform_21(%arg0: i32) -> (i32, i32) {
    %c0_i32 = arith.constant 0 : i32
    %c0_i32_0 = arith.constant 0 : i32
    %c0_i32_1 = arith.constant 0 : i32
    return %c0_i32, %c0_i32_0 : i32, i32
  }
  func.func @transform_22(%arg0: i32) -> (i32, i32) {
    %c0_i32 = arith.constant 0 : i32
    %c0_i32_0 = arith.constant 0 : i32
    %c0_i32_1 = arith.constant 0 : i32
    return %c0_i32, %c0_i32_0 : i32, i32
  }
  func.func @transform_23(%arg0: i32) -> (i32, i32) {
    %c0_i32 = arith.constant 0 : i32
    %c0_i32_0 = arith.constant 0 : i32
    %c0_i32_1 = arith.constant 0 : i32
    return %c0_i32, %c0_i32_0 : i32, i32
  }
  func.func @transform_24(%arg0: i32) -> (i32, i32) {
    %c0_i32 = arith.constant 0 : i32
    %c0_i32_0 = arith.constant 0 : i32
    %c0_i32_1 = arith.constant 0 : i32
    return %c0_i32, %c0_i32_0 : i32, i32
  }
  func.func @transform_25(%arg0: i32) -> (i32, i32) {
    %c0_i32 = arith.constant 0 : i32
    %c0_i32_0 = arith.constant 0 : i32
    %c0_i32_1 = arith.constant 0 : i32
    return %c0_i32, %c0_i32_0 : i32, i32
  }
  func.func @transform_26(%arg0: i32) -> (i32, i32) {
    %c0_i32 = arith.constant 0 : i32
    %c0_i32_0 = arith.constant 0 : i32
    %c0_i32_1 = arith.constant 0 : i32
    return %c0_i32, %c0_i32_0 : i32, i32
  }
  func.func @transform_27(%arg0: i32) -> (i32, i32) {
    %c0_i32 = arith.constant 0 : i32
    %c0_i32_0 = arith.constant 0 : i32
    %c0_i32_1 = arith.constant 0 : i32
    return %c0_i32, %c0_i32_0 : i32, i32
  }
  func.func @transform_28(%arg0: i32) -> (i32, i32) {
    %c0_i32 = arith.constant 0 : i32
    %c0_i32_0 = arith.constant 0 : i32
    %c0_i32_1 = arith.constant 0 : i32
    return %c0_i32, %c0_i32_0 : i32, i32
  }
  func.func @transform_29(%arg0: i32) -> (i32, i32) {
    %c0_i32 = arith.constant 0 : i32
    %c0_i32_0 = arith.constant 0 : i32
    %c0_i32_1 = arith.constant 0 : i32
    return %c0_i32, %c0_i32_0 : i32, i32
  }
  func.func @transform_30(%arg0: i32) -> (i32, i32) {
    %c0_i32 = arith.constant 0 : i32
    %c0_i32_0 = arith.constant 0 : i32
    %c0_i32_1 = arith.constant 0 : i32
    return %c0_i32, %c0_i32_0 : i32, i32
  }
  func.func @transform_31(%arg0: i32) -> (i32, i32) {
    %c0_i32 = arith.constant 0 : i32
    %c0_i32_0 = arith.constant 0 : i32
    %c0_i32_1 = arith.constant 0 : i32
    return %c0_i32, %c0_i32_0 : i32, i32
  }
}

</mosaic_0001>

<llo_original>
// kernel: text_branch_forward.1
$region0: #{text_branch_forward.1}
  #allocation0 [shape = 'u32[]', space=smem, size = 0x4, offset = 0x4, fixed_abs, tag = 'smem constant byte address 0x4 - core index']
  #allocation1 [shape = 'u32[72,128]{1,0:T(1,128)}', space=vmem, size = 0x9000, scoped, tag = 'internal scratch']
  #allocation2 [shape = 'f32[16,1024]{1,0:T(8,128)}', space=vmem, size = 0x10000, scoped, tag = 'scratch operand']
  %s0 = inlined_call_operand.smem [shape: u32[32], index: -1, kind: input, shape index: {}]
  %s1 = sld [smem:[%s0]]
  %s2 = scalar_lea.smem %s0, 1
  %s3 = sld [smem:[%s2]]
  %s4 = scalar_lea.smem %s0, 2
  %s5 = sld [smem:[%s4]]
  %s6 = scalar_lea.smem %s0, 3
  %s7 = sld [smem:[%s6]]
  %s8 = scalar_lea.smem %s0, 4
  %s9 = sld [smem:[%s8]]
  %s10 = scalar_lea.smem %s0, 5
  %s11 = sld [smem:[%s10]]
  %s12 = scalar_lea.smem %s0, 6
  %s13 = sld [smem:[%s12]]
  %s14 = scalar_lea.smem %s0, 7
  %s15 = sld [smem:[%s14]]
  %s16 = scalar_lea.smem %s0, 8
  %s17 = sld [smem:[%s16]]
  %s18 = scalar_lea.smem %s0, 9
  %s19 = sld [smem:[%s18]]
  %s20 = scalar_lea.smem %s0, 10
  %s21 = sld [smem:[%s20]]
  %s22 = scalar_lea.smem %s0, 11
  %s23 = sld [smem:[%s22]]
  %s24 = scalar_lea.smem %s0, 12
  %s25 = sld [smem:[%s24]]
  %s26 = scalar_lea.smem %s0, 13
  %s27 = sld [smem:[%s26]]
  %s28 = scalar_lea.smem %s0, 14
  %s29 = sld [smem:[%s28]]
  %s30 = scalar_lea.smem %s0, 15
  %s31 = sld [smem:[%s30]]
  %s32 = scalar_lea.smem %s0, 16
  %s33 = sld [smem:[%s32]]
  %s34 = scalar_lea.smem %s0, 17
  %s35 = sld [smem:[%s34]]
  %s36 = scalar_lea.smem %s0, 18
  %s37 = sld [smem:[%s36]]
  %s38 = scalar_lea.smem %s0, 19
  %s39 = sld [smem:[%s38]]
  %s40 = scalar_lea.smem %s0, 20
  %s41 = sld [smem:[%s40]]
  %s42 = scalar_lea.smem %s0, 21
  %s43 = sld [smem:[%s42]]
  %s44 = scalar_lea.smem %s0, 22
  %s45 = sld [smem:[%s44]]
  %s46 = scalar_lea.smem %s0, 23
  %s47 = sld [smem:[%s46]]
  %s48 = scalar_lea.smem %s0, 24
  %s49 = sld [smem:[%s48]]
  %s50 = scalar_lea.smem %s0, 25
  %s51 = sld [smem:[%s50]]
  %s52 = scalar_lea.smem %s0, 26
  %s53 = sld [smem:[%s52]]
  %s54 = scalar_lea.smem %s0, 27
  %s55 = sld [smem:[%s54]]
  %s56 = scalar_lea.smem %s0, 28
  %s57 = sld [smem:[%s56]]
  %s58 = scalar_lea.smem %s0, 29
  %s59 = sld [smem:[%s58]]
  %s60 = scalar_lea.smem %s0, 30
  %s61 = sld [smem:[%s60]]
  %s62 = scalar_lea.smem %s0, 31
  %s63 = sld [smem:[%s62]]
  %s64 = sld [smem:[#allocation0]]
  $region134: #{text_branch_forward.1} parent=0
    _
  %s66 = ssub.s32 1, %s64
  %s67 = scalar_select 0, %s66, %s64
  $region1: #{text_branch_forward.1} parent=0
    #allocation3 [shape = 'u8[2048]{0}', space=vmem, size = 0x800, scoped, tag = 'output window, operand 0, single buffered']
    #allocation4 [shape = 's32[1]{0}', space=sflag, size = 0x4, scoped, tag = 'scoped memory for text_branch_forward.1']
    %68 = vsyncpa [#allocation4], 0
    // Predicated region
    $region2: #{text_branch_forward.1} parent=1 // pred_check
      _
    $region3: #{text_branch_forward.1} parent=1 // pred_check_branch
      %70 = sbr.rel (0) target = $region5
    $region4: #{text_branch_forward.1} parent=1 // pred_region
      _
    $region5: #{text_branch_forward.1} parent=1 // pred_fallthru
      _
    // Predicated region
    $region6: #{text_branch_forward.1} parent=1 // pred_check
      _
    $region7: #{text_branch_forward.1} parent=1 // pred_check_branch
      %72 = sbr.rel (0) target = $region9
    $region8: #{text_branch_forward.1} parent=1 // pred_region
      _
    $region9: #{text_branch_forward.1} parent=1 // pred_fallthru
      _
    // Predicated region
    $region10: #{text_branch_forward.1} parent=1 // pred_check
      _
    $region11: #{text_branch_forward.1} parent=1 // pred_check_branch
      %74 = sbr.rel (0) target = $region13
    $region12: #{text_branch_forward.1} parent=1 // pred_region
      _
    $region13: #{text_branch_forward.1} parent=1 // pred_fallthru
      _
    // Predicated region
    $region14: #{text_branch_forward.1} parent=1 // pred_check
      _
    $region15: #{text_branch_forward.1} parent=1 // pred_check_branch
      %76 = sbr.rel (0) target = $region17
    $region16: #{text_branch_forward.1} parent=1 // pred_region
      _
    $region17: #{text_branch_forward.1} parent=1 // pred_fallthru
      _
    // Predicated region
    $region18: #{text_branch_forward.1} parent=1 // pred_check
      _
    $region19: #{text_branch_forward.1} parent=1 // pred_check_branch
      %78 = sbr.rel (0) target = $region21
    $region20: #{text_branch_forward.1} parent=1 // pred_region
      _
    $region21: #{text_branch_forward.1} parent=1 // pred_fallthru
      _
    // Predicated region
    $region22: #{text_branch_forward.1} parent=1 // pred_check
      _
    $region23: #{text_branch_forward.1} parent=1 // pred_check_branch
      %80 = sbr.rel (0) target = $region25
    $region24: #{text_branch_forward.1} parent=1 // pred_region
      _
    $region25: #{text_branch_forward.1} parent=1 // pred_fallthru
      _
    // Predicated region
    $region26: #{text_branch_forward.1} parent=1 // pred_check
      _
    $region27: #{text_branch_forward.1} parent=1 // pred_check_branch
      %82 = sbr.rel (0) target = $region29
    $region28: #{text_branch_forward.1} parent=1 // pred_region
      _
    $region29: #{text_branch_forward.1} parent=1 // pred_fallthru
      _
    // Predicated region
    $region30: #{text_branch_forward.1} parent=1 // pred_check
      _
    $region31: #{text_branch_forward.1} parent=1 // pred_check_branch
      %84 = sbr.rel (0) target = $region33
    $region32: #{text_branch_forward.1} parent=1 // pred_region
      _
    $region33: #{text_branch_forward.1} parent=1 // pred_fallthru
      _
    // Predicated region
    $region34: #{text_branch_forward.1} parent=1 // pred_check
      _
    $region35: #{text_branch_forward.1} parent=1 // pred_check_branch
      %86 = sbr.rel (0) target = $region37
    $region36: #{text_branch_forward.1} parent=1 // pred_region
      _
    $region37: #{text_branch_forward.1} parent=1 // pred_fallthru
      _
    // Predicated region
    $region38: #{text_branch_forward.1} parent=1 // pred_check
      _
    $region39: #{text_branch_forward.1} parent=1 // pred_check_branch
      %88 = sbr.rel (0) target = $region41
    $region40: #{text_branch_forward.1} parent=1 // pred_region
      _
    $region41: #{text_branch_forward.1} parent=1 // pred_fallthru
      _
    // Predicated region
    $region42: #{text_branch_forward.1} parent=1 // pred_check
      _
    $region43: #{text_branch_forward.1} parent=1 // pred_check_branch
      %90 = sbr.rel (0) target = $region45
    $region44: #{text_branch_forward.1} parent=1 // pred_region
      _
    $region45: #{text_branch_forward.1} parent=1 // pred_fallthru
      _
    // Predicated region
    $region46: #{text_branch_forward.1} parent=1 // pred_check
      _
    $region47: #{text_branch_forward.1} parent=1 // pred_check_branch
      %92 = sbr.rel (0) target = $region49
    $region48: #{text_branch_forward.1} parent=1 // pred_region
      _
    $region49: #{text_branch_forward.1} parent=1 // pred_fallthru
      _
    // Predicated region
    $region50: #{text_branch_forward.1} parent=1 // pred_check
      _
    $region51: #{text_branch_forward.1} parent=1 // pred_check_branch
      %94 = sbr.rel (0) target = $region53
    $region52: #{text_branch_forward.1} parent=1 // pred_region
      _
    $region53: #{text_branch_forward.1} parent=1 // pred_fallthru
      _
    // Predicated region
    $region54: #{text_branch_forward.1} parent=1 // pred_check
      _
    $region55: #{text_branch_forward.1} parent=1 // pred_check_branch
      %96 = sbr.rel (0) target = $region57
    $region56: #{text_branch_forward.1} parent=1 // pred_region
      _
    $region57: #{text_branch_forward.1} parent=1 // pred_fallthru
      _
    // Predicated region
    $region58: #{text_branch_forward.1} parent=1 // pred_check
      _
    $region59: #{text_branch_forward.1} parent=1 // pred_check_branch
      %98 = sbr.rel (0) target = $region61
    $region60: #{text_branch_forward.1} parent=1 // pred_region
      _
    $region61: #{text_branch_forward.1} parent=1 // pred_fallthru
      _
    // Predicated region
    $region62: #{text_branch_forward.1} parent=1 // pred_check
      _
    $region63: #{text_branch_forward.1} parent=1 // pred_check_branch
      %100 = sbr.rel (0) target = $region65
    $region64: #{text_branch_forward.1} parent=1 // pred_region
      _
    $region65: #{text_branch_forward.1} parent=1 // pred_fallthru
      _
    // Predicated region
    $region66: #{text_branch_forward.1} parent=1 // pred_check
      _
    $region67: #{text_branch_forward.1} parent=1 // pred_check_branch
      %102 = sbr.rel (0) target = $region69
    $region68: #{text_branch_forward.1} parent=1 // pred_region
      _
    $region69: #{text_branch_forward.1} parent=1 // pred_fallthru
      _
    // Predicated region
    $region70: #{text_branch_forward.1} parent=1 // pred_check
      _
    $region71: #{text_branch_forward.1} parent=1 // pred_check_branch
      %104 = sbr.rel (0) target = $region73
    $region72: #{text_branch_forward.1} parent=1 // pred_region
      _
    $region73: #{text_branch_forward.1} parent=1 // pred_fallthru
      _
    // Predicated region
    $region74: #{text_branch_forward.1} parent=1 // pred_check
      _
    $region75: #{text_branch_forward.1} parent=1 // pred_check_branch
      %106 = sbr.rel (0) target = $region77
    $region76: #{text_branch_forward.1} parent=1 // pred_region
      _
    $region77: #{text_branch_forward.1} parent=1 // pred_fallthru
      _
    // Predicated region
    $region78: #{text_branch_forward.1} parent=1 // pred_check
      _
    $region79: #{text_branch_forward.1} parent=1 // pred_check_branch
      %108 = sbr.rel (0) target = $region81
    $region80: #{text_branch_forward.1} parent=1 // pred_region
      _
    $region81: #{text_branch_forward.1} parent=1 // pred_fallthru
      _
    // Predicated region
    $region82: #{text_branch_forward.1} parent=1 // pred_check
      _
    $region83: #{text_branch_forward.1} parent=1 // pred_check_branch
      %110 = sbr.rel (0) target = $region85
    $region84: #{text_branch_forward.1} parent=1 // pred_region
      _
    $region85: #{text_branch_forward.1} parent=1 // pred_fallthru
      _
    // Predicated region
    $region86: #{text_branch_forward.1} parent=1 // pred_check
      _
    $region87: #{text_branch_forward.1} parent=1 // pred_check_branch
      %112 = sbr.rel (0) target = $region89
    $region88: #{text_branch_forward.1} parent=1 // pred_region
      _
    $region89: #{text_branch_forward.1} parent=1 // pred_fallthru
      _
    // Predicated region
    $region90: #{text_branch_forward.1} parent=1 // pred_check
      _
    $region91: #{text_branch_forward.1} parent=1 // pred_check_branch
      %114 = sbr.rel (0) target = $region93
    $region92: #{text_branch_forward.1} parent=1 // pred_region
      _
    $region93: #{text_branch_forward.1} parent=1 // pred_fallthru
      _
    // Predicated region
    $region94: #{text_branch_forward.1} parent=1 // pred_check
      _
    $region95: #{text_branch_forward.1} parent=1 // pred_check_branch
      %116 = sbr.rel (0) target = $region97
    $region96: #{text_branch_forward.1} parent=1 // pred_region
      _
    $region97: #{text_branch_forward.1} parent=1 // pred_fallthru
      _
    // Predicated region
    $region98: #{text_branch_forward.1} parent=1 // pred_check
      _
    $region99: #{text_branch_forward.1} parent=1 // pred_check_branch
      %118 = sbr.rel (0) target = $region101
    $region100: #{text_branch_forward.1} parent=1 // pred_region
      _
    $region101: #{text_branch_forward.1} parent=1 // pred_fallthru
      _
    // Predicated region
    $region102: #{text_branch_forward.1} parent=1 // pred_check
      _
    $region103: #{text_branch_forward.1} parent=1 // pred_check_branch
      %120 = sbr.rel (0) target = $region105
    $region104: #{text_branch_forward.1} parent=1 // pred_region
      _
    $region105: #{text_branch_forward.1} parent=1 // pred_fallthru
      _
    // Predicated region
    $region106: #{text_branch_forward.1} parent=1 // pred_check
      _
    $region107: #{text_branch_forward.1} parent=1 // pred_check_branch
      %122 = sbr.rel (0) target = $region109
    $region108: #{text_branch_forward.1} parent=1 // pred_region
      _
    $region109: #{text_branch_forward.1} parent=1 // pred_fallthru
      _
    // Predicated region
    $region110: #{text_branch_forward.1} parent=1 // pred_check
      _
    $region111: #{text_branch_forward.1} parent=1 // pred_check_branch
      %124 = sbr.rel (0) target = $region113
    $region112: #{text_branch_forward.1} parent=1 // pred_region
      _
    $region113: #{text_branch_forward.1} parent=1 // pred_fallthru
      _
    // Predicated region
    $region114: #{text_branch_forward.1} parent=1 // pred_check
      _
    $region115: #{text_branch_forward.1} parent=1 // pred_check_branch
      %126 = sbr.rel (0) target = $region117
    $region116: #{text_branch_forward.1} parent=1 // pred_region
      _
    $region117: #{text_branch_forward.1} parent=1 // pred_fallthru
      _
    // Predicated region
    $region118: #{text_branch_forward.1} parent=1 // pred_check
      _
    $region119: #{text_branch_forward.1} parent=1 // pred_check_branch
      %128 = sbr.rel (0) target = $region121
    $region120: #{text_branch_forward.1} parent=1 // pred_region
      _
    $region121: #{text_branch_forward.1} parent=1 // pred_fallthru
      _
    // Predicated region
    $region122: #{text_branch_forward.1} parent=1 // pred_check
      _
    $region123: #{text_branch_forward.1} parent=1 // pred_check_branch
      %130 = sbr.rel (0) target = $region125
    $region124: #{text_branch_forward.1} parent=1 // pred_region
      _
    $region125: #{text_branch_forward.1} parent=1 // pred_fallthru
      _
    %v132 = vld [vmem:[%s1] sm:$0xff]
    %v133 = vld [vmem:[%s1 + $0x8] sm:$0xff]
    %v134 = vpack.c.bf16 %v133, %v132
    %v135 = vld [vmem:[%s13] sm:$0xff]
    %v136 = vld [vmem:[%s13 + $0x8] sm:$0xf]
    %v137 = vld [vmem:[%s13 + $0xc] sm:$0xff]
    %v138 = vld [vmem:[%s13 + $0x14] sm:$0xf]
    %v139 = vld [vmem:[%s13 + $0x18] sm:$0xff]
    %v140 = vld [vmem:[%s13 + $0x20] sm:$0xf]
    %v141 = vld [vmem:[%s13 + $0x24] sm:$0xff]
    %v142 = vld [vmem:[%s13 + $0x2c] sm:$0xf]
    %v143 = vld [vmem:[%s13 + $0x30] sm:$0xff]
    %v144 = vld [vmem:[%s13 + $0x38] sm:$0xf]
    %v145 = vld [vmem:[%s13 + $0x3c] sm:$0xff]
    %v146 = vld [vmem:[%s13 + $0x44] sm:$0xf]
    %v147 = vld [vmem:[%s13 + $0x48] sm:$0xff]
    %v148 = vld [vmem:[%s13 + $0x50] sm:$0xf]
    %v149 = vld [vmem:[%s13 + $0x54] sm:$0xff]
    %v150 = vld [vmem:[%s13 + $0x5c] sm:$0xf]
    %v151 = vld [vmem:[%s13 + $0x60] sm:$0xff]
    %v152 = vld [vmem:[%s13 + $0x68] sm:$0xf]
    %v153 = vld [vmem:[%s13 + $0x6c] sm:$0xff]
    %v154 = vld [vmem:[%s13 + $0x74] sm:$0xf]
    %v155 = vld [vmem:[%s13 + $0x78] sm:$0xff]
    %v156 = vld [vmem:[%s13 + $0x80] sm:$0xf]
    %v157 = vld [vmem:[%s13 + $0x84] sm:$0xff]
    %v158 = vld [vmem:[%s13 + $0x8c] sm:$0xf]
    %v159 = vld [vmem:[%s13 + $0x90] sm:$0xff]
    %v160 = vld [vmem:[%s13 + $0x98] sm:$0xf]
    %v161 = vld [vmem:[%s13 + $0x9c] sm:$0xff]
    %v162 = vld [vmem:[%s13 + $0xa4] sm:$0xf]
    %v163 = vld [vmem:[%s13 + $0xa8] sm:$0xff]
    %v164 = vld [vmem:[%s13 + $0xb0] sm:$0xf]
    %v165 = vld [vmem:[%s13 + $0xb4] sm:$0xff]
    %v166 = vld [vmem:[%s13 + $0xbc] sm:$0xf]
    %v167 = vld [vmem:[%s15] sm:$0x7]
    %v169 = vperm.slane %v167, 0
    %v170 = vperm.slane %v167, 1
    %v171 = vperm.slane %v167, 2
    %v207 = vunpack.c.l.b16 %v135
    %v208 = vunpack.c.h.b16 %v135
    %v209 = vunpack.c.l.b16 %v136
    %v210 = vunpack.c.l.b16 %v137
    %v211 = vunpack.c.h.b16 %v137
    %v212 = vunpack.c.l.b16 %v138
    %v213 = vunpack.c.l.b16 %v139
    %v214 = vunpack.c.h.b16 %v139
    %v215 = vunpack.c.l.b16 %v140
    %v216 = vunpack.c.l.b16 %v141
    %v217 = vunpack.c.h.b16 %v141
    %v218 = vunpack.c.l.b16 %v142
    %v219 = vunpack.c.l.b16 %v143
    %v220 = vunpack.c.h.b16 %v143
    %v221 = vunpack.c.l.b16 %v144
    %v222 = vunpack.c.l.b16 %v145
    %v223 = vunpack.c.h.b16 %v145
    %v224 = vunpack.c.l.b16 %v146
    %v225 = vunpack.c.l.b16 %v147
    %v226 = vunpack.c.h.b16 %v147
    %v227 = vunpack.c.l.b16 %v148
    %v228 = vunpack.c.l.b16 %v149
    %v229 = vunpack.c.h.b16 %v149
    %v230 = vunpack.c.l.b16 %v150
    %v231 = vunpack.c.l.b16 %v151
    %v232 = vunpack.c.h.b16 %v151
    %v233 = vunpack.c.l.b16 %v152
    %v234 = vunpack.c.l.b16 %v153
    %v235 = vunpack.c.h.b16 %v153
    %v236 = vunpack.c.l.b16 %v154
    %v237 = vunpack.c.l.b16 %v155
    %v238 = vunpack.c.h.b16 %v155
    %v239 = vunpack.c.l.b16 %v156
    %v240 = vunpack.c.l.b16 %v157
    %v241 = vunpack.c.h.b16 %v157
    %v242 = vunpack.c.l.b16 %v158
    %v243 = vunpack.c.l.b16 %v159
    %v244 = vunpack.c.h.b16 %v159
    %v245 = vunpack.c.l.b16 %v160
    %v246 = vunpack.c.l.b16 %v161
    %v247 = vunpack.c.h.b16 %v161
    %v248 = vunpack.c.l.b16 %v162
    %v249 = vunpack.c.l.b16 %v163
    %v250 = vunpack.c.h.b16 %v163
    %v251 = vunpack.c.l.b16 %v164
    %v252 = vunpack.c.l.b16 %v165
    %v253 = vunpack.c.h.b16 %v165
    %v254 = vunpack.c.l.b16 %v166
    %v255 = vpack.c.b16 %v210, %v207
    %v256 = vpack.c.b16 %v211, %v208
    %v257 = vpack.c.b16 %v212, %v209
    %v258 = vpack.c.b16 %v216, %v213
    %v259 = vpack.c.b16 %v217, %v214
    %v260 = vpack.c.b16 %v218, %v215
    %v261 = vpack.c.b16 %v222, %v219
    %v262 = vpack.c.b16 %v223, %v220
    %v263 = vpack.c.b16 %v224, %v221
    %v264 = vpack.c.b16 %v228, %v225
    %v265 = vpack.c.b16 %v229, %v226
    %v266 = vpack.c.b16 %v230, %v227
    %v267 = vpack.c.b16 %v234, %v231
    %v268 = vpack.c.b16 %v235, %v232
    %v269 = vpack.c.b16 %v236, %v233
    %v270 = vpack.c.b16 %v240, %v237
    %v271 = vpack.c.b16 %v241, %v238
    %v272 = vpack.c.b16 %v242, %v239
    %v273 = vpack.c.b16 %v246, %v243
    %v274 = vpack.c.b16 %v247, %v244
    %v275 = vpack.c.b16 %v248, %v245
    %v276 = vpack.c.b16 %v252, %v249
    %v277 = vpack.c.b16 %v253, %v250
    %v278 = vpack.c.b16 %v254, %v251
    %303 = vmatpush.bf16.msra.mxu0 %v276
    %304 = vmatpush.bf16.msra.mxu0 %v273
    %305 = vmatpush.bf16.msra.mxu0 %v270
    %306 = vmatpush.bf16.msra.mxu0 %v267
    %307 = vmatpush.bf16.msra.mxu0 %v264
    %308 = vmatpush.bf16.msra.mxu0 %v261
    %309 = vmatpush.bf16.msra.mxu0 %v258
    %310 = vmatpush.bf16.msra.mxu0 %v255
    %311 = vmatmul.bf16.gmra.mxu0 %v134
    %v312 = vpop.f32.mrf.mxu0
    %v313 = vadd.f32 %v169, %v312
    %v314 = vpop.f32.mrf.mxu0
    %v315 = vadd.f32 %v169, %v314
    %316 = vdwg.mxu0
    %317 = vmatpush.bf16.msra.mxu0 %v277
    %318 = vmatpush.bf16.msra.mxu0 %v274
    %319 = vmatpush.bf16.msra.mxu0 %v271
    %320 = vmatpush.bf16.msra.mxu0 %v268
    %321 = vmatpush.bf16.msra.mxu0 %v265
    %322 = vmatpush.bf16.msra.mxu0 %v262
    %323 = vmatpush.bf16.msra.mxu0 %v259
    %324 = vmatpush.bf16.msra.mxu0 %v256
    %325 = vmatmul.bf16.gmra.mxu0 %v134
    %v326 = vpop.f32.mrf.mxu0
    %v327 = vadd.f32 %v170, %v326
    %v328 = vpop.f32.mrf.mxu0
    %v329 = vadd.f32 %v170, %v328
    %330 = vdwg.mxu0
    %331 = vmatpush.bf16.msra.mxu0 %v278
    %332 = vmatpush.bf16.msra.mxu0 %v275
    %333 = vmatpush.bf16.msra.mxu0 %v272
    %334 = vmatpush.bf16.msra.mxu0 %v269
    %335 = vmatpush.bf16.msra.mxu0 %v266
    %336 = vmatpush.bf16.msra.mxu0 %v263
    %337 = vmatpush.bf16.msra.mxu0 %v260
    %338 = vmatpush.bf16.msra.mxu0 %v257
    %339 = vmatmul.bf16.gmra.mxu0 %v134
    %v340 = vpop.f32.mrf.mxu0
    %v341 = vadd.f32 %v171, %v340
    %v342 = vpop.f32.mrf.mxu0
    %v343 = vadd.f32 %v171, %v342
    %344 = vdwg.mxu0
    %v345 = vpack.c.bf16 %v315, %v313
    %v346 = vpack.c.bf16 %v329, %v327
    %347 = vmatpush.bf16.xpose.msra.mxu0 0
    %348 = vmatpush.bf16.xpose.msra.mxu0 0
    %349 = vmatpush.bf16.xpose.msra.mxu0 0
    %350 = vmatpush.bf16.xpose.msra.mxu0 0
    %351 = vmatpush.bf16.xpose.msra.mxu0 0
    %352 = vmatpush.bf16.xpose.msra.mxu0 0
    %353 = vmatpush.bf16.xpose.msra.mxu0 0
    %354 = vmatpush.bf16.xpose.msra.mxu0 %v346
    %355 = vmatmul.bf16.gmra.mxu0 %v345
    %v356 = vpop.f32.mrf.mxu0
    %v357 = vadd.f32 0.0, %v356
    %v358 = vpop.f32.mrf.mxu0
    %v359 = vadd.f32 0.0, %v358
    %360 = vdwg.mxu0
    %v361 = vmul.f32 %v357, 0.088388346
    %v362 = vmul.f32 %v359, 0.088388346
    %v363 = vld [vmem:[%s3] sm:$0xff]
    %v364 = vld [vmem:[%s3 + $0x8] sm:$0xff]
    %v365 = vadd.f32 %v361, %v363
    %v366 = vadd.f32 %v362, %v364
    %vm367 = vcmask 130048
    %v368 = vsel %vm367, %v365, -inf
    %369 = vmax.xlane.f32.xlu0 %v368
    %v370 = vpop.xlane.xlu0 %369
    %v371 = vsel %vm367, %v366, -inf
    %372 = vmax.xlane.f32.xlu0 %v371
    %v373 = vpop.xlane.xlu0 %372
    %v374 = vsub.f32 %v365, %v370
    %v375 = vsub.f32 %v366, %v373
    %v376 = vmul.f32 %v374, 1.442695
    %v377 = vpow.pop %v376
    %v378 = vmul.f32 %v375, 1.442695
    %v379 = vpow.pop %v378
    %v380 = vsel %vm367, %v377, 0.0
    %381 = vadd.xlane.f32.xlu0 %v380
    %v382 = vpop.xlane.xlu0 %381
    %v383 = vsel %vm367, %v379, 0.0
    %384 = vadd.xlane.f32.xlu0 %v383
    %v385 = vpop.xlane.xlu0 %384
    %v386 = vrcp.pop %v382
    %v387 = vrcp.pop %v385
    %v388 = vmul.f32 %v377, %v386
    %v389 = vmul.f32 %v379, %v387
    %v390 = vpack.c.bf16 %v389, %v388
    %v391 = vpack.c.bf16 %v343, %v341
    %v393 = vsel %vm367, %v390, 0
    %395 = vmatpush.bf16.msra.mxu0 0
    %396 = vmatpush.bf16.msra.mxu0 0
    %397 = vmatpush.bf16.msra.mxu0 0
    %398 = vmatpush.bf16.msra.mxu0 0
    %399 = vmatpush.bf16.msra.mxu0 0
    %400 = vmatpush.bf16.msra.mxu0 0
    %401 = vmatpush.bf16.msra.mxu0 0
    %402 = vmatpush.bf16.msra.mxu0 %v391
    %403 = vmatmul.bf16.gmra.mxu0 %v393
    %v404 = vpop.f32.mrf.mxu0
    %v405 = vadd.f32 0.0, %v404
    %v406 = vpop.f32.mrf.mxu0
    %v407 = vadd.f32 0.0, %v406
    %408 = vdwg.mxu0
    %v409 = vpack.c.bf16 %v407, %v405
    %v410 = vld [vmem:[%s17] sm:$0xf]
    %v411 = vld [vmem:[%s17 + $0x4] sm:$0xf]
    %v412 = vld [vmem:[%s17 + $0x8] sm:$0xf]
    %v413 = vld [vmem:[%s17 + $0xc] sm:$0xf]
    %v414 = vld [vmem:[%s17 + $0x10] sm:$0xf]
    %v415 = vld [vmem:[%s17 + $0x14] sm:$0xf]
    %v416 = vld [vmem:[%s17 + $0x18] sm:$0xf]
    %v417 = vld [vmem:[%s17 + $0x1c] sm:$0xf]
    %v418 = vld [vmem:[%s17 + $0x20] sm:$0xf]
    %v419 = vld [vmem:[%s17 + $0x24] sm:$0xf]
    %v420 = vld [vmem:[%s17 + $0x28] sm:$0xf]
    %v421 = vld [vmem:[%s17 + $0x2c] sm:$0xf]
    %v422 = vld [vmem:[%s17 + $0x30] sm:$0xf]
    %v423 = vld [vmem:[%s17 + $0x34] sm:$0xf]
    %v424 = vld [vmem:[%s17 + $0x38] sm:$0xf]
    %v425 = vld [vmem:[%s17 + $0x3c] sm:$0xf]
    %v426 = vld [vmem:[%s19] sm:$0x1]
    %v428 = vperm.slane %v426, 0
    %v446 = vunpack.c.l.b16 %v410
    %v447 = vunpack.c.l.b16 %v411
    %v448 = vunpack.c.l.b16 %v412
    %v449 = vunpack.c.l.b16 %v413
    %v450 = vunpack.c.l.b16 %v414
    %v451 = vunpack.c.l.b16 %v415
    %v452 = vunpack.c.l.b16 %v416
    %v453 = vunpack.c.l.b16 %v417
    %v454 = vunpack.c.l.b16 %v418
    %v455 = vunpack.c.l.b16 %v419
    %v456 = vunpack.c.l.b16 %v420
    %v457 = vunpack.c.l.b16 %v421
    %v458 = vunpack.c.l.b16 %v422
    %v459 = vunpack.c.l.b16 %v423
    %v460 = vunpack.c.l.b16 %v424
    %v461 = vunpack.c.l.b16 %v425
    %v462 = vpack.c.b16 %v447, %v446
    %v463 = vpack.c.b16 %v449, %v448
    %v464 = vpack.c.b16 %v451, %v450
    %v465 = vpack.c.b16 %v453, %v452
    %v466 = vpack.c.b16 %v455, %v454
    %v467 = vpack.c.b16 %v457, %v456
    %v468 = vpack.c.b16 %v459, %v458
    %v469 = vpack.c.b16 %v461, %v460
    %478 = vmatpush.bf16.msra.mxu0 %v469
    %479 = vmatpush.bf16.msra.mxu0 %v468
    %480 = vmatpush.bf16.msra.mxu0 %v467
    %481 = vmatpush.bf16.msra.mxu0 %v466
    %482 = vmatpush.bf16.msra.mxu0 %v465
    %483 = vmatpush.bf16.msra.mxu0 %v464
    %484 = vmatpush.bf16.msra.mxu0 %v463
    %485 = vmatpush.bf16.msra.mxu0 %v462
    %486 = vmatmul.bf16.gmra.mxu0 %v409
    %v487 = vpop.f32.mrf.mxu0
    %v488 = vadd.f32 %v428, %v487
    %v489 = vpop.f32.mrf.mxu0
    %v490 = vadd.f32 %v428, %v489
    %491 = vdwg.mxu0
    %v492 = vadd.f32 %v132, %v488
    %v493 = vadd.f32 %v133, %v490
    %v494 = vld [vmem:[%s29] sm:$0x1]
    %v495 = vld [vmem:[%s31] sm:$0x1]
    %496 = vadd.xlane.f32.xlu0 %v492
    %v497 = vpop.xlane.xlu0 %496
    %498 = vadd.xlane.f32.xlu0 %v493
    %v499 = vpop.xlane.xlu0 %498
    %v500 = vrcp.pop 128.0
    %v501 = vmul.f32 128.0, %v500
    %v502 = vsub.f32 1.0, %v501
    %v503 = vmul.f32 %v500, %v502
    %v504 = vadd.f32 %v500, %v503
    %vm505 = vweird.f32 %v500
    %v506 = vsel %vm505, %v500, %v504
    %v507 = vmul.f32 %v497, %v506
    %v508 = vmul.f32 %v499, %v506
    %v509 = vsub.f32 %v492, %v507
    %v510 = vsub.f32 %v493, %v508
    %v511 = vmul.f32 %v509, %v509
    %v512 = vmul.f32 %v510, %v510
    %513 = vadd.xlane.f32.xlu0 %v511
    %v514 = vpop.xlane.xlu0 %513
    %515 = vadd.xlane.f32.xlu0 %v512
    %v516 = vpop.xlane.xlu0 %515
    %v517 = vmul.f32 %v514, %v506
    %v518 = vmul.f32 %v516, %v506
    %v519 = vadd.f32 %v517, 1e-12
    %v520 = vadd.f32 %v518, 1e-12
    %v521 = vrsqrt.pop %v519
    %v522 = vmul.f32 %v521, %v519
    %v523 = vmul.f32 %v522, %v521
    %v524 = vmul.f32 0.5, %v523
    %v525 = vsub.f32 1.5, %v524
    %v526 = vmul.f32 %v521, %v525
    %vm527 = vweird.f32 %v519
    %vm528 = vweird.f32 %v521
    %vm529 = vmor %vm527, %vm528
    %v530 = vsel %vm529, %v521, %v526
    %v531 = vrsqrt.pop %v520
    %v532 = vmul.f32 %v531, %v520
    %v533 = vmul.f32 %v532, %v531
    %v534 = vmul.f32 0.5, %v533
    %v535 = vsub.f32 1.5, %v534
    %v536 = vmul.f32 %v531, %v535
    %vm537 = vweird.f32 %v520
    %vm538 = vweird.f32 %v531
    %vm539 = vmor %vm537, %vm538
    %v540 = vsel %vm539, %v531, %v536
    %v541 = vmul.f32 %v509, %v530
    %v542 = vmul.f32 %v510, %v540
    %v544 = vperm.slane %v494, 0
    %v546 = vmul.f32 %v541, %v544
    %v547 = vmul.f32 %v542, %v544
    %v549 = vperm.slane %v495, 0
    %v551 = vadd.f32 %v546, %v549
    %v552 = vadd.f32 %v547, %v549
    %v553 = vpack.c.bf16 %v552, %v551
    %v554 = vld [vmem:[%s21] sm:$0xff]
    %v555 = vld [vmem:[%s21 + $0x8] sm:$0xff]
    %v556 = vld [vmem:[%s21 + $0x10] sm:$0xff]
    %v557 = vld [vmem:[%s21 + $0x18] sm:$0xff]
    %v558 = vld [vmem:[%s21 + $0x20] sm:$0xff]
    %v559 = vld [vmem:[%s21 + $0x28] sm:$0xff]
    %v560 = vld [vmem:[%s21 + $0x30] sm:$0xff]
    %v561 = vld [vmem:[%s21 + $0x38] sm:$0xff]
    %v562 = vld [vmem:[%s21 + $0x40] sm:$0xff]
    %v563 = vld [vmem:[%s21 + $0x48] sm:$0xff]
    %v564 = vld [vmem:[%s21 + $0x50] sm:$0xff]
    %v565 = vld [vmem:[%s21 + $0x58] sm:$0xff]
    %v566 = vld [vmem:[%s21 + $0x60] sm:$0xff]
    %v567 = vld [vmem:[%s21 + $0x68] sm:$0xff]
    %v568 = vld [vmem:[%s21 + $0x70] sm:$0xff]
    %v569 = vld [vmem:[%s21 + $0x78] sm:$0xff]
    %v570 = vld [vmem:[%s23] sm:$0x3]
    %v572 = vperm.slane %v570, 0
    %v573 = vperm.slane %v570, 1
    %v592 = vunpack.c.l.b16 %v554
    %v593 = vunpack.c.h.b16 %v554
    %v594 = vunpack.c.l.b16 %v555
    %v595 = vunpack.c.h.b16 %v555
    %v596 = vunpack.c.l.b16 %v556
    %v597 = vunpack.c.h.b16 %v556
    %v598 = vunpack.c.l.b16 %v557
    %v599 = vunpack.c.h.b16 %v557
    %v600 = vunpack.c.l.b16 %v558
    %v601 = vunpack.c.h.b16 %v558
    %v602 = vunpack.c.l.b16 %v559
    %v603 = vunpack.c.h.b16 %v559
    %v604 = vunpack.c.l.b16 %v560
    %v605 = vunpack.c.h.b16 %v560
    %v606 = vunpack.c.l.b16 %v561
    %v607 = vunpack.c.h.b16 %v561
    %v608 = vunpack.c.l.b16 %v562
    %v609 = vunpack.c.h.b16 %v562
    %v610 = vunpack.c.l.b16 %v563
    %v611 = vunpack.c.h.b16 %v563
    %v612 = vunpack.c.l.b16 %v564
    %v613 = vunpack.c.h.b16 %v564
    %v614 = vunpack.c.l.b16 %v565
    %v615 = vunpack.c.h.b16 %v565
    %v616 = vunpack.c.l.b16 %v566
    %v617 = vunpack.c.h.b16 %v566
    %v618 = vunpack.c.l.b16 %v567
    %v619 = vunpack.c.h.b16 %v567
    %v620 = vunpack.c.l.b16 %v568
    %v621 = vunpack.c.h.b16 %v568
    %v622 = vunpack.c.l.b16 %v569
    %v623 = vunpack.c.h.b16 %v569
    %v624 = vpack.c.b16 %v594, %v592
    %v625 = vpack.c.b16 %v595, %v593
    %v626 = vpack.c.b16 %v598, %v596
    %v627 = vpack.c.b16 %v599, %v597
    %v628 = vpack.c.b16 %v602, %v600
    %v629 = vpack.c.b16 %v603, %v601
    %v630 = vpack.c.b16 %v606, %v604
    %v631 = vpack.c.b16 %v607, %v605
    %v632 = vpack.c.b16 %v610, %v608
    %v633 = vpack.c.b16 %v611, %v609
    %v634 = vpack.c.b16 %v614, %v612
    %v635 = vpack.c.b16 %v615, %v613
    %v636 = vpack.c.b16 %v618, %v616
    %v637 = vpack.c.b16 %v619, %v617
    %v638 = vpack.c.b16 %v622, %v620
    %v639 = vpack.c.b16 %v623, %v621
    %656 = vmatpush.bf16.msra.mxu0 %v638
    %657 = vmatpush.bf16.msra.mxu0 %v636
    %658 = vmatpush.bf16.msra.mxu0 %v634
    %659 = vmatpush.bf16.msra.mxu0 %v632
    %660 = vmatpush.bf16.msra.mxu0 %v630
    %661 = vmatpush.bf16.msra.mxu0 %v628
    %662 = vmatpush.bf16.msra.mxu0 %v626
    %663 = vmatpush.bf16.msra.mxu0 %v624
    %664 = vmatmul.bf16.gmra.mxu0 %v553
    %v665 = vpop.f32.mrf.mxu0
    %v666 = vadd.f32 %v572, %v665
    %v667 = vpop.f32.mrf.mxu0
    %v668 = vadd.f32 %v572, %v667
    %669 = vdwg.mxu0
    %670 = vmatpush.bf16.msra.mxu0 %v639
    %671 = vmatpush.bf16.msra.mxu0 %v637
    %672 = vmatpush.bf16.msra.mxu0 %v635
    %673 = vmatpush.bf16.msra.mxu0 %v633
    %674 = vmatpush.bf16.msra.mxu0 %v631
    %675 = vmatpush.bf16.msra.mxu0 %v629
    %676 = vmatpush.bf16.msra.mxu0 %v627
    %677 = vmatpush.bf16.msra.mxu0 %v625
    %678 = vmatmul.bf16.gmra.mxu0 %v553
    %v679 = vpop.f32.mrf.mxu0
    %v680 = vadd.f32 %v573, %v679
    %v681 = vpop.f32.mrf.mxu0
    %v682 = vadd.f32 %v573, %v681
    %683 = vdwg.mxu0
    %v684 = vmul.f32 %v666, 0.5
    %v685 = vmul.f32 %v680, 0.5
    %v686 = vmul.f32 %v668, 0.5
    %v687 = vmul.f32 %v682, 0.5
    %v688 = vmul.f32 %v666, 0.044715
    %v689 = vmul.f32 %v680, 0.044715
    %v690 = vmul.f32 %v668, 0.044715
    %v691 = vmul.f32 %v682, 0.044715
    %v692 = vmul.f32 %v688, %v666
    %v693 = vmul.f32 %v689, %v680
    %v694 = vmul.f32 %v690, %v668
    %v695 = vmul.f32 %v691, %v682
    %v696 = vmul.f32 %v692, %v666
    %v697 = vmul.f32 %v693, %v680
    %v698 = vmul.f32 %v694, %v668
    %v699 = vmul.f32 %v695, %v682
    %v700 = vadd.f32 %v666, %v696
    %v701 = vadd.f32 %v680, %v697
    %v702 = vadd.f32 %v668, %v698
    %v703 = vadd.f32 %v682, %v699
    %v704 = vmul.f32 %v700, 0.7978846
    %v705 = vmul.f32 %v701, 0.7978846
    %v706 = vmul.f32 %v702, 0.7978846
    %v707 = vmul.f32 %v703, 0.7978846
    %v708 = vtanh.pop %v704
    %v709 = vtanh.pop %v705
    %v710 = vtanh.pop %v706
    %v711 = vtanh.pop %v707
    %v712 = vadd.f32 %v708, 1.0
    %v713 = vadd.f32 %v709, 1.0
    %v714 = vadd.f32 %v710, 1.0
    %v715 = vadd.f32 %v711, 1.0
    %v716 = vmul.f32 %v684, %v712
    %v717 = vmul.f32 %v685, %v713
    %v718 = vmul.f32 %v686, %v714
    %v719 = vmul.f32 %v687, %v715
    %v720 = vpack.c.bf16 %v718, %v716
    %v721 = vpack.c.bf16 %v719, %v717
    %v722 = vld [vmem:[%s25] sm:$0xf]
    %v723 = vld [vmem:[%s25 + $0x4] sm:$0xf]
    %v724 = vld [vmem:[%s25 + $0x8] sm:$0xf]
    %v725 = vld [vmem:[%s25 + $0xc] sm:$0xf]
    %v726 = vld [vmem:[%s25 + $0x10] sm:$0xf]
    %v727 = vld [vmem:[%s25 + $0x14] sm:$0xf]
    %v728 = vld [vmem:[%s25 + $0x18] sm:$0xf]
    %v729 = vld [vmem:[%s25 + $0x1c] sm:$0xf]
    %v730 = vld [vmem:[%s25 + $0x20] sm:$0xf]
    %v731 = vld [vmem:[%s25 + $0x24] sm:$0xf]
    %v732 = vld [vmem:[%s25 + $0x28] sm:$0xf]
    %v733 = vld [vmem:[%s25 + $0x2c] sm:$0xf]
    %v734 = vld [vmem:[%s25 + $0x30] sm:$0xf]
    %v735 = vld [vmem:[%s25 + $0x34] sm:$0xf]
    %v736 = vld [vmem:[%s25 + $0x38] sm:$0xf]
    %v737 = vld [vmem:[%s25 + $0x3c] sm:$0xf]
    %v738 = vld [vmem:[%s25 + $0x40] sm:$0xf]
    %v739 = vld [vmem:[%s25 + $0x44] sm:$0xf]
    %v740 = vld [vmem:[%s25 + $0x48] sm:$0xf]
    %v741 = vld [vmem:[%s25 + $0x4c] sm:$0xf]
    %v742 = vld [vmem:[%s25 + $0x50] sm:$0xf]
    %v743 = vld [vmem:[%s25 + $0x54] sm:$0xf]
    %v744 = vld [vmem:[%s25 + $0x58] sm:$0xf]
    %v745 = vld [vmem:[%s25 + $0x5c] sm:$0xf]
    %v746 = vld [vmem:[%s25 + $0x60] sm:$0xf]
    %v747 = vld [vmem:[%s25 + $0x64] sm:$0xf]
    %v748 = vld [vmem:[%s25 + $0x68] sm:$0xf]
    %v749 = vld [vmem:[%s25 + $0x6c] sm:$0xf]
    %v750 = vld [vmem:[%s25 + $0x70] sm:$0xf]
    %v751 = vld [vmem:[%s25 + $0x74] sm:$0xf]
    %v752 = vld [vmem:[%s25 + $0x78] sm:$0xf]
    %v753 = vld [vmem:[%s25 + $0x7c] sm:$0xf]
    %v754 = vld [vmem:[%s27] sm:$0x1]
    %v756 = vperm.slane %v754, 0
    %v790 = vunpack.c.l.b16 %v722
    %v791 = vunpack.c.l.b16 %v723
    %v792 = vunpack.c.l.b16 %v724
    %v793 = vunpack.c.l.b16 %v725
    %v794 = vunpack.c.l.b16 %v726
    %v795 = vunpack.c.l.b16 %v727
    %v796 = vunpack.c.l.b16 %v728
    %v797 = vunpack.c.l.b16 %v729
    %v798 = vunpack.c.l.b16 %v730
    %v799 = vunpack.c.l.b16 %v731
    %v800 = vunpack.c.l.b16 %v732
    %v801 = vunpack.c.l.b16 %v733
    %v802 = vunpack.c.l.b16 %v734
    %v803 = vunpack.c.l.b16 %v735
    %v804 = vunpack.c.l.b16 %v736
    %v805 = vunpack.c.l.b16 %v737
    %v806 = vunpack.c.l.b16 %v738
    %v807 = vunpack.c.l.b16 %v739
    %v808 = vunpack.c.l.b16 %v740
    %v809 = vunpack.c.l.b16 %v741
    %v810 = vunpack.c.l.b16 %v742
    %v811 = vunpack.c.l.b16 %v743
    %v812 = vunpack.c.l.b16 %v744
    %v813 = vunpack.c.l.b16 %v745
    %v814 = vunpack.c.l.b16 %v746
    %v815 = vunpack.c.l.b16 %v747
    %v816 = vunpack.c.l.b16 %v748
    %v817 = vunpack.c.l.b16 %v749
    %v818 = vunpack.c.l.b16 %v750
    %v819 = vunpack.c.l.b16 %v751
    %v820 = vunpack.c.l.b16 %v752
    %v821 = vunpack.c.l.b16 %v753
    %v822 = vpack.c.b16 %v791, %v790
    %v823 = vpack.c.b16 %v793, %v792
    %v824 = vpack.c.b16 %v795, %v794
    %v825 = vpack.c.b16 %v797, %v796
    %v826 = vpack.c.b16 %v799, %v798
    %v827 = vpack.c.b16 %v801, %v800
    %v828 = vpack.c.b16 %v803, %v802
    %v829 = vpack.c.b16 %v805, %v804
    %v830 = vpack.c.b16 %v807, %v806
    %v831 = vpack.c.b16 %v809, %v808
    %v832 = vpack.c.b16 %v811, %v810
    %v833 = vpack.c.b16 %v813, %v812
    %v834 = vpack.c.b16 %v815, %v814
    %v835 = vpack.c.b16 %v817, %v816
    %v836 = vpack.c.b16 %v819, %v818
    %v837 = vpack.c.b16 %v821, %v820
    %854 = vmatpush.bf16.msra.mxu0 %v829
    %855 = vmatpush.bf16.msra.mxu0 %v828
    %856 = vmatpush.bf16.msra.mxu0 %v827
    %857 = vmatpush.bf16.msra.mxu0 %v826
    %858 = vmatpush.bf16.msra.mxu0 %v825
    %859 = vmatpush.bf16.msra.mxu0 %v824
    %860 = vmatpush.bf16.msra.mxu0 %v823
    %861 = vmatpush.bf16.msra.mxu0 %v822
    %862 = vmatmul.bf16.gmra.mxu0 %v720
    %v863 = vpop.f32.mrf.mxu0
    %v864 = vadd.f32 %v756, %v863
    %v865 = vpop.f32.mrf.mxu0
    %v866 = vadd.f32 %v756, %v865
    %867 = vdwg.mxu0
    %868 = vmatpush.bf16.msra.mxu0 %v837
    %869 = vmatpush.bf16.msra.mxu0 %v836
    %870 = vmatpush.bf16.msra.mxu0 %v835
    %871 = vmatpush.bf16.msra.mxu0 %v834
    %872 = vmatpush.bf16.msra.mxu0 %v833
    %873 = vmatpush.bf16.msra.mxu0 %v832
    %874 = vmatpush.bf16.msra.mxu0 %v831
    %875 = vmatpush.bf16.msra.mxu0 %v830
    %876 = vmatmul.bf16.gmra.mxu0 %v721
    %v877 = vpop.f32.mrf.mxu0
    %v878 = vadd.f32 %v864, %v877
    %v879 = vpop.f32.mrf.mxu0
    %v880 = vadd.f32 %v866, %v879
    %881 = vdwg.mxu0
    %v882 = vadd.f32 %v551, %v878
    %v883 = vadd.f32 %v552, %v880
    %v884 = vld [vmem:[%s33] sm:$0x1]
    %v885 = vld [vmem:[%s35] sm:$0x1]
    %886 = vadd.xlane.f32.xlu0 %v882
    %v887 = vpop.xlane.xlu0 %886
    %888 = vadd.xlane.f32.xlu0 %v883
    %v889 = vpop.xlane.xlu0 %888
    %v890 = vmul.f32 %v887, %v506
    %v891 = vmul.f32 %v889, %v506
    %v892 = vsub.f32 %v882, %v890
    %v893 = vsub.f32 %v883, %v891
    %v894 = vmul.f32 %v892, %v892
    %v895 = vmul.f32 %v893, %v893
    %896 = vadd.xlane.f32.xlu0 %v894
    %v897 = vpop.xlane.xlu0 %896
    %898 = vadd.xlane.f32.xlu0 %v895
    %v899 = vpop.xlane.xlu0 %898
    %v900 = vmul.f32 %v897, %v506
    %v901 = vmul.f32 %v899, %v506
    %v902 = vadd.f32 %v900, 1e-12
    %v903 = vadd.f32 %v901, 1e-12
    %v904 = vrsqrt.pop %v902
    %v905 = vmul.f32 %v904, %v902
    %v906 = vmul.f32 %v905, %v904
    %v907 = vmul.f32 0.5, %v906
    %v908 = vsub.f32 1.5, %v907
    %v909 = vmul.f32 %v904, %v908
    %vm910 = vweird.f32 %v902
    %vm911 = vweird.f32 %v904
    %vm912 = vmor %vm910, %vm911
    %v913 = vsel %vm912, %v904, %v909
    %v914 = vrsqrt.pop %v903
    %v915 = vmul.f32 %v914, %v903
    %v916 = vmul.f32 %v915, %v914
    %v917 = vmul.f32 0.5, %v916
    %v918 = vsub.f32 1.5, %v917
    %v919 = vmul.f32 %v914, %v918
    %vm920 = vweird.f32 %v903
    %vm921 = vweird.f32 %v914
    %vm922 = vmor %vm920, %vm921
    %v923 = vsel %vm922, %v914, %v919
    %v924 = vmul.f32 %v892, %v913
    %v925 = vmul.f32 %v893, %v923
    %v927 = vperm.slane %v884, 0
    %v929 = vmul.f32 %v924, %v927
    %v930 = vmul.f32 %v925, %v927
    %v932 = vperm.slane %v885, 0
    %v934 = vadd.f32 %v929, %v932
    %v935 = vadd.f32 %v930, %v932
    %v936 = vpack.c.bf16 %v935, %v934
    %v937 = vld [vmem:[%s37] sm:$0xff]
    %v938 = vld [vmem:[%s37 + $0x8] sm:$0xff]
    %v939 = vld [vmem:[%s37 + $0x10] sm:$0xff]
    %v940 = vld [vmem:[%s37 + $0x18] sm:$0xff]
    %v941 = vld [vmem:[%s37 + $0x20] sm:$0xff]
    %v942 = vld [vmem:[%s37 + $0x28] sm:$0xff]
    %v943 = vld [vmem:[%s37 + $0x30] sm:$0xff]
    %v944 = vld [vmem:[%s37 + $0x38] sm:$0xff]
    %v945 = vld [vmem:[%s37 + $0x40] sm:$0xff]
    %v946 = vld [vmem:[%s37 + $0x48] sm:$0xff]
    %v947 = vld [vmem:[%s37 + $0x50] sm:$0xff]
    %v948 = vld [vmem:[%s37 + $0x58] sm:$0xff]
    %v949 = vld [vmem:[%s37 + $0x60] sm:$0xff]
    %v950 = vld [vmem:[%s37 + $0x68] sm:$0xff]
    %v951 = vld [vmem:[%s37 + $0x70] sm:$0xff]
    %v952 = vld [vmem:[%s37 + $0x78] sm:$0xff]
    %v953 = vld [vmem:[%s37 + $0x80] sm:$0xff]
    %v954 = vld [vmem:[%s37 + $0x88] sm:$0xff]
    %v955 = vld [vmem:[%s37 + $0x90] sm:$0xff]
    %v956 = vld [vmem:[%s37 + $0x98] sm:$0xff]
    %v957 = vld [vmem:[%s37 + $0xa0] sm:$0xff]
    %v958 = vld [vmem:[%s37 + $0xa8] sm:$0xff]
    %v959 = vld [vmem:[%s37 + $0xb0] sm:$0xff]
    %v960 = vld [vmem:[%s37 + $0xb8] sm:$0xff]
    %v961 = vld [vmem:[%s37 + $0xc0] sm:$0xff]
    %v962 = vld [vmem:[%s37 + $0xc8] sm:$0xff]
    %v963 = vld [vmem:[%s37 + $0xd0] sm:$0xff]
    %v964 = vld [vmem:[%s37 + $0xd8] sm:$0xff]
    %v965 = vld [vmem:[%s37 + $0xe0] sm:$0xff]
    %v966 = vld [vmem:[%s37 + $0xe8] sm:$0xff]
    %v967 = vld [vmem:[%s37 + $0xf0] sm:$0xff]
    %v968 = vld [vmem:[%s37 + $0xf8] sm:$0xff]
    %v969 = vld [vmem:[%s37 + $0x100] sm:$0xff]
    %v970 = vld [vmem:[%s37 + $0x108] sm:$0xff]
    %v971 = vld [vmem:[%s37 + $0x110] sm:$0xff]
    %v972 = vld [vmem:[%s37 + $0x118] sm:$0xff]
    %v973 = vld [vmem:[%s37 + $0x120] sm:$0xff]
    %v974 = vld [vmem:[%s37 + $0x128] sm:$0xff]
    %v975 = vld [vmem:[%s37 + $0x130] sm:$0xff]
    %v976 = vld [vmem:[%s37 + $0x138] sm:$0xff]
    %v977 = vld [vmem:[%s37 + $0x140] sm:$0xff]
    %v978 = vld [vmem:[%s37 + $0x148] sm:$0xff]
    %v979 = vld [vmem:[%s37 + $0x150] sm:$0xff]
    %v980 = vld [vmem:[%s37 + $0x158] sm:$0xff]
    %v981 = vld [vmem:[%s37 + $0x160] sm:$0xff]
    %v982 = vld [vmem:[%s37 + $0x168] sm:$0xff]
    %v983 = vld [vmem:[%s37 + $0x170] sm:$0xff]
    %v984 = vld [vmem:[%s37 + $0x178] sm:$0xff]
    %v985 = vld [vmem:[%s37 + $0x180] sm:$0xff]
    %v986 = vld [vmem:[%s37 + $0x188] sm:$0xff]
    %v987 = vld [vmem:[%s37 + $0x190] sm:$0xff]
    %v988 = vld [vmem:[%s37 + $0x198] sm:$0xff]
    %v989 = vld [vmem:[%s37 + $0x1a0] sm:$0xff]
    %v990 = vld [vmem:[%s37 + $0x1a8] sm:$0xff]
    %v991 = vld [vmem:[%s37 + $0x1b0] sm:$0xff]
    %v992 = vld [vmem:[%s37 + $0x1b8] sm:$0xff]
    %v993 = vld [vmem:[%s37 + $0x1c0] sm:$0xff]
    %v994 = vld [vmem:[%s37 + $0x1c8] sm:$0xff]
    %v995 = vld [vmem:[%s37 + $0x1d0] sm:$0xff]
    %v996 = vld [vmem:[%s37 + $0x1d8] sm:$0xff]
    %v997 = vld [vmem:[%s37 + $0x1e0] sm:$0xff]
    %v998 = vld [vmem:[%s37 + $0x1e8] sm:$0xff]
    %v999 = vld [vmem:[%s37 + $0x1f0] sm:$0xff]
    %v1000 = vld [vmem:[%s37 + $0x1f8] sm:$0xff]
    %v1001 = vld [vmem:[%s39] sm:$0xff]
    %v1003 = vperm.slane %v1001, 0
    %v1004 = vperm.slane %v1001, 1
    %v1005 = vperm.slane %v1001, 2
    %v1006 = vperm.slane %v1001, 3
    %v1007 = vperm.slane %v1001, 4
    %v1008 = vperm.slane %v1001, 5
    %v1009 = vperm.slane %v1001, 6
    %v1010 = vperm.slane %v1001, 7
    %v1083 = vunpack.c.l.b16 %v937
    %v1084 = vunpack.c.h.b16 %v937
    %v1085 = vunpack.c.l.b16 %v938
    %v1086 = vunpack.c.h.b16 %v938
    %v1087 = vunpack.c.l.b16 %v939
    %v1088 = vunpack.c.h.b16 %v939
    %v1089 = vunpack.c.l.b16 %v940
    %v1090 = vunpack.c.h.b16 %v940
    %v1091 = vunpack.c.l.b16 %v941
    %v1092 = vunpack.c.h.b16 %v941
    %v1093 = vunpack.c.l.b16 %v942
    %v1094 = vunpack.c.h.b16 %v942
    %v1095 = vunpack.c.l.b16 %v943
    %v1096 = vunpack.c.h.b16 %v943
    %v1097 = vunpack.c.l.b16 %v944
    %v1098 = vunpack.c.h.b16 %v944
    %v1099 = vunpack.c.l.b16 %v945
    %v1100 = vunpack.c.h.b16 %v945
    %v1101 = vunpack.c.l.b16 %v946
    %v1102 = vunpack.c.h.b16 %v946
    %v1103 = vunpack.c.l.b16 %v947
    %v1104 = vunpack.c.h.b16 %v947
    %v1105 = vunpack.c.l.b16 %v948
    %v1106 = vunpack.c.h.b16 %v948
    %v1107 = vunpack.c.l.b16 %v949
    %v1108 = vunpack.c.h.b16 %v949
    %v1109 = vunpack.c.l.b16 %v950
    %v1110 = vunpack.c.h.b16 %v950
    %v1111 = vunpack.c.l.b16 %v951
    %v1112 = vunpack.c.h.b16 %v951
    %v1113 = vunpack.c.l.b16 %v952
    %v1114 = vunpack.c.h.b16 %v952
    %v1115 = vunpack.c.l.b16 %v953
    %v1116 = vunpack.c.h.b16 %v953
    %v1117 = vunpack.c.l.b16 %v954
    %v1118 = vunpack.c.h.b16 %v954
    %v1119 = vunpack.c.l.b16 %v955
    %v1120 = vunpack.c.h.b16 %v955
    %v1121 = vunpack.c.l.b16 %v956
    %v1122 = vunpack.c.h.b16 %v956
    %v1123 = vunpack.c.l.b16 %v957
    %v1124 = vunpack.c.h.b16 %v957
    %v1125 = vunpack.c.l.b16 %v958
    %v1126 = vunpack.c.h.b16 %v958
    %v1127 = vunpack.c.l.b16 %v959
    %v1128 = vunpack.c.h.b16 %v959
    %v1129 = vunpack.c.l.b16 %v960
    %v1130 = vunpack.c.h.b16 %v960
    %v1131 = vunpack.c.l.b16 %v961
    %v1132 = vunpack.c.h.b16 %v961
    %v1133 = vunpack.c.l.b16 %v962
    %v1134 = vunpack.c.h.b16 %v962
    %v1135 = vunpack.c.l.b16 %v963
    %v1136 = vunpack.c.h.b16 %v963
    %v1137 = vunpack.c.l.b16 %v964
    %v1138 = vunpack.c.h.b16 %v964
    %v1139 = vunpack.c.l.b16 %v965
    %v1140 = vunpack.c.h.b16 %v965
    %v1141 = vunpack.c.l.b16 %v966
    %v1142 = vunpack.c.h.b16 %v966
    %v1143 = vunpack.c.l.b16 %v967
    %v1144 = vunpack.c.h.b16 %v967
    %v1145 = vunpack.c.l.b16 %v968
    %v1146 = vunpack.c.h.b16 %v968
    %v1147 = vunpack.c.l.b16 %v969
    %v1148 = vunpack.c.h.b16 %v969
    %v1149 = vunpack.c.l.b16 %v970
    %v1150 = vunpack.c.h.b16 %v970
    %v1151 = vunpack.c.l.b16 %v971
    %v1152 = vunpack.c.h.b16 %v971
    %v1153 = vunpack.c.l.b16 %v972
    %v1154 = vunpack.c.h.b16 %v972
    %v1155 = vunpack.c.l.b16 %v973
    %v1156 = vunpack.c.h.b16 %v973
    %v1157 = vunpack.c.l.b16 %v974
    %v1158 = vunpack.c.h.b16 %v974
    %v1159 = vunpack.c.l.b16 %v975
    %v1160 = vunpack.c.h.b16 %v975
    %v1161 = vunpack.c.l.b16 %v976
    %v1162 = vunpack.c.h.b16 %v976
    %v1163 = vunpack.c.l.b16 %v977
    %v1164 = vunpack.c.h.b16 %v977
    %v1165 = vunpack.c.l.b16 %v978
    %v1166 = vunpack.c.h.b16 %v978
    %v1167 = vunpack.c.l.b16 %v979
    %v1168 = vunpack.c.h.b16 %v979
    %v1169 = vunpack.c.l.b16 %v980
    %v1170 = vunpack.c.h.b16 %v980
    %v1171 = vunpack.c.l.b16 %v981
    %v1172 = vunpack.c.h.b16 %v981
    %v1173 = vunpack.c.l.b16 %v982
    %v1174 = vunpack.c.h.b16 %v982
    %v1175 = vunpack.c.l.b16 %v983
    %v1176 = vunpack.c.h.b16 %v983
    %v1177 = vunpack.c.l.b16 %v984
    %v1178 = vunpack.c.h.b16 %v984
    %v1179 = vunpack.c.l.b16 %v985
    %v1180 = vunpack.c.h.b16 %v985
    %v1181 = vunpack.c.l.b16 %v986
    %v1182 = vunpack.c.h.b16 %v986
    %v1183 = vunpack.c.l.b16 %v987
    %v1184 = vunpack.c.h.b16 %v987
    %v1185 = vunpack.c.l.b16 %v988
    %v1186 = vunpack.c.h.b16 %v988
    %v1187 = vunpack.c.l.b16 %v989
    %v1188 = vunpack.c.h.b16 %v989
    %v1189 = vunpack.c.l.b16 %v990
    %v1190 = vunpack.c.h.b16 %v990
    %v1191 = vunpack.c.l.b16 %v991
    %v1192 = vunpack.c.h.b16 %v991
    %v1193 = vunpack.c.l.b16 %v992
    %v1194 = vunpack.c.h.b16 %v992
    %v1195 = vunpack.c.l.b16 %v993
    %v1196 = vunpack.c.h.b16 %v993
    %v1197 = vunpack.c.l.b16 %v994
    %v1198 = vunpack.c.h.b16 %v994
    %v1199 = vunpack.c.l.b16 %v995
    %v1200 = vunpack.c.h.b16 %v995
    %v1201 = vunpack.c.l.b16 %v996
    %v1202 = vunpack.c.h.b16 %v996
    %v1203 = vunpack.c.l.b16 %v997
    %v1204 = vunpack.c.h.b16 %v997
    %v1205 = vunpack.c.l.b16 %v998
    %v1206 = vunpack.c.h.b16 %v998
    %v1207 = vunpack.c.l.b16 %v999
    %v1208 = vunpack.c.h.b16 %v999
    %v1209 = vunpack.c.l.b16 %v1000
    %v1210 = vunpack.c.h.b16 %v1000
    %v1211 = vpack.c.b16 %v1091, %v1083
    %v1212 = vpack.c.b16 %v1092, %v1084
    %v1213 = vpack.c.b16 %v1093, %v1085
    %v1214 = vpack.c.b16 %v1094, %v1086
    %v1215 = vpack.c.b16 %v1095, %v1087
    %v1216 = vpack.c.b16 %v1096, %v1088
    %v1217 = vpack.c.b16 %v1097, %v1089
    %v1218 = vpack.c.b16 %v1098, %v1090
    %v1219 = vpack.c.b16 %v1107, %v1099
    %v1220 = vpack.c.b16 %v1108, %v1100
    %v1221 = vpack.c.b16 %v1109, %v1101
    %v1222 = vpack.c.b16 %v1110, %v1102
    %v1223 = vpack.c.b16 %v1111, %v1103
    %v1224 = vpack.c.b16 %v1112, %v1104
    %v1225 = vpack.c.b16 %v1113, %v1105
    %v1226 = vpack.c.b16 %v1114, %v1106
    %v1227 = vpack.c.b16 %v1123, %v1115
    %v1228 = vpack.c.b16 %v1124, %v1116
    %v1229 = vpack.c.b16 %v1125, %v1117
    %v1230 = vpack.c.b16 %v1126, %v1118
    %v1231 = vpack.c.b16 %v1127, %v1119
    %v1232 = vpack.c.b16 %v1128, %v1120
    %v1233 = vpack.c.b16 %v1129, %v1121
    %v1234 = vpack.c.b16 %v1130, %v1122
    %v1235 = vpack.c.b16 %v1139, %v1131
    %v1236 = vpack.c.b16 %v1140, %v1132
    %v1237 = vpack.c.b16 %v1141, %v1133
    %v1238 = vpack.c.b16 %v1142, %v1134
    %v1239 = vpack.c.b16 %v1143, %v1135
    %v1240 = vpack.c.b16 %v1144, %v1136
    %v1241 = vpack.c.b16 %v1145, %v1137
    %v1242 = vpack.c.b16 %v1146, %v1138
    %v1243 = vpack.c.b16 %v1155, %v1147
    %v1244 = vpack.c.b16 %v1156, %v1148
    %v1245 = vpack.c.b16 %v1157, %v1149
    %v1246 = vpack.c.b16 %v1158, %v1150
    %v1247 = vpack.c.b16 %v1159, %v1151
    %v1248 = vpack.c.b16 %v1160, %v1152
    %v1249 = vpack.c.b16 %v1161, %v1153
    %v1250 = vpack.c.b16 %v1162, %v1154
    %v1251 = vpack.c.b16 %v1171, %v1163
    %v1252 = vpack.c.b16 %v1172, %v1164
    %v1253 = vpack.c.b16 %v1173, %v1165
    %v1254 = vpack.c.b16 %v1174, %v1166
    %v1255 = vpack.c.b16 %v1175, %v1167
    %v1256 = vpack.c.b16 %v1176, %v1168
    %v1257 = vpack.c.b16 %v1177, %v1169
    %v1258 = vpack.c.b16 %v1178, %v1170
    %v1259 = vpack.c.b16 %v1187, %v1179
    %v1260 = vpack.c.b16 %v1188, %v1180
    %v1261 = vpack.c.b16 %v1189, %v1181
    %v1262 = vpack.c.b16 %v1190, %v1182
    %v1263 = vpack.c.b16 %v1191, %v1183
    %v1264 = vpack.c.b16 %v1192, %v1184
    %v1265 = vpack.c.b16 %v1193, %v1185
    %v1266 = vpack.c.b16 %v1194, %v1186
    %v1267 = vpack.c.b16 %v1203, %v1195
    %v1268 = vpack.c.b16 %v1204, %v1196
    %v1269 = vpack.c.b16 %v1205, %v1197
    %v1270 = vpack.c.b16 %v1206, %v1198
    %v1271 = vpack.c.b16 %v1207, %v1199
    %v1272 = vpack.c.b16 %v1208, %v1200
    %v1273 = vpack.c.b16 %v1209, %v1201
    %v1274 = vpack.c.b16 %v1210, %v1202
    %1339 = vmatpush.bf16.msra.mxu0 %v1267
    %1340 = vmatpush.bf16.msra.mxu0 %v1259
    %1341 = vmatpush.bf16.msra.mxu0 %v1251
    %1342 = vmatpush.bf16.msra.mxu0 %v1243
    %1343 = vmatpush.bf16.msra.mxu0 %v1235
    %1344 = vmatpush.bf16.msra.mxu0 %v1227
    %1345 = vmatpush.bf16.msra.mxu0 %v1219
    %1346 = vmatpush.bf16.msra.mxu0 %v1211
    %1347 = vmatmul.bf16.gmra.mxu0 %v936
    %v1348 = vpop.f32.mrf.mxu0
    %v1349 = vadd.f32 %v1003, %v1348
    %v1350 = vpop.f32.mrf.mxu0
    %v1351 = vadd.f32 %v1003, %v1350
    %1352 = vdwg.mxu0
    %1353 = vmatpush.bf16.msra.mxu0 %v1268
    %1354 = vmatpush.bf16.msra.mxu0 %v1260
    %1355 = vmatpush.bf16.msra.mxu0 %v1252
    %1356 = vmatpush.bf16.msra.mxu0 %v1244
    %1357 = vmatpush.bf16.msra.mxu0 %v1236
    %1358 = vmatpush.bf16.msra.mxu0 %v1228
    %1359 = vmatpush.bf16.msra.mxu0 %v1220
    %1360 = vmatpush.bf16.msra.mxu0 %v1212
    %1361 = vmatmul.bf16.gmra.mxu0 %v936
    %v1362 = vpop.f32.mrf.mxu0
    %v1363 = vadd.f32 %v1004, %v1362
    %v1364 = vpop.f32.mrf.mxu0
    %v1365 = vadd.f32 %v1004, %v1364
    %1366 = vdwg.mxu0
    %1367 = vmatpush.bf16.msra.mxu0 %v1269
    %1368 = vmatpush.bf16.msra.mxu0 %v1261
    %1369 = vmatpush.bf16.msra.mxu0 %v1253
    %1370 = vmatpush.bf16.msra.mxu0 %v1245
    %1371 = vmatpush.bf16.msra.mxu0 %v1237
    %1372 = vmatpush.bf16.msra.mxu0 %v1229
    %1373 = vmatpush.bf16.msra.mxu0 %v1221
    %1374 = vmatpush.bf16.msra.mxu0 %v1213
    %1375 = vmatmul.bf16.gmra.mxu0 %v936
    %v1376 = vpop.f32.mrf.mxu0
    %v1377 = vadd.f32 %v1005, %v1376
    %v1378 = vpop.f32.mrf.mxu0
    %v1379 = vadd.f32 %v1005, %v1378
    %1380 = vdwg.mxu0
    %1381 = vmatpush.bf16.msra.mxu0 %v1270
    %1382 = vmatpush.bf16.msra.mxu0 %v1262
    %1383 = vmatpush.bf16.msra.mxu0 %v1254
    %1384 = vmatpush.bf16.msra.mxu0 %v1246
    %1385 = vmatpush.bf16.msra.mxu0 %v1238
    %1386 = vmatpush.bf16.msra.mxu0 %v1230
    %1387 = vmatpush.bf16.msra.mxu0 %v1222
    %1388 = vmatpush.bf16.msra.mxu0 %v1214
    %1389 = vmatmul.bf16.gmra.mxu0 %v936
    %v1390 = vpop.f32.mrf.mxu0
    %v1391 = vadd.f32 %v1006, %v1390
    %v1392 = vpop.f32.mrf.mxu0
    %v1393 = vadd.f32 %v1006, %v1392
    %1394 = vdwg.mxu0
    %1395 = vmatpush.bf16.msra.mxu0 %v1271
    %1396 = vmatpush.bf16.msra.mxu0 %v1263
    %1397 = vmatpush.bf16.msra.mxu0 %v1255
    %1398 = vmatpush.bf16.msra.mxu0 %v1247
    %1399 = vmatpush.bf16.msra.mxu0 %v1239
    %1400 = vmatpush.bf16.msra.mxu0 %v1231
    %1401 = vmatpush.bf16.msra.mxu0 %v1223
    %1402 = vmatpush.bf16.msra.mxu0 %v1215
    %1403 = vmatmul.bf16.gmra.mxu0 %v936
    %v1404 = vpop.f32.mrf.mxu0
    %v1405 = vadd.f32 %v1007, %v1404
    %v1406 = vpop.f32.mrf.mxu0
    %v1407 = vadd.f32 %v1007, %v1406
    %1408 = vdwg.mxu0
    %1409 = vmatpush.bf16.msra.mxu0 %v1272
    %1410 = vmatpush.bf16.msra.mxu0 %v1264
    %1411 = vmatpush.bf16.msra.mxu0 %v1256
    %1412 = vmatpush.bf16.msra.mxu0 %v1248
    %1413 = vmatpush.bf16.msra.mxu0 %v1240
    %1414 = vmatpush.bf16.msra.mxu0 %v1232
    %1415 = vmatpush.bf16.msra.mxu0 %v1224
    %1416 = vmatpush.bf16.msra.mxu0 %v1216
    %1417 = vmatmul.bf16.gmra.mxu0 %v936
    %v1418 = vpop.f32.mrf.mxu0
    %v1419 = vadd.f32 %v1008, %v1418
    %v1420 = vpop.f32.mrf.mxu0
    %v1421 = vadd.f32 %v1008, %v1420
    %1422 = vdwg.mxu0
    %1423 = vmatpush.bf16.msra.mxu0 %v1273
    %1424 = vmatpush.bf16.msra.mxu0 %v1265
    %1425 = vmatpush.bf16.msra.mxu0 %v1257
    %1426 = vmatpush.bf16.msra.mxu0 %v1249
    %1427 = vmatpush.bf16.msra.mxu0 %v1241
    %1428 = vmatpush.bf16.msra.mxu0 %v1233
    %1429 = vmatpush.bf16.msra.mxu0 %v1225
    %1430 = vmatpush.bf16.msra.mxu0 %v1217
    %1431 = vmatmul.bf16.gmra.mxu0 %v936
    %v1432 = vpop.f32.mrf.mxu0
    %v1433 = vadd.f32 %v1009, %v1432
    %v1434 = vpop.f32.mrf.mxu0
    %v1435 = vadd.f32 %v1009, %v1434
    %1436 = vdwg.mxu0
    %1437 = vmatpush.bf16.msra.mxu0 %v1274
    %1438 = vmatpush.bf16.msra.mxu0 %v1266
    %1439 = vmatpush.bf16.msra.mxu0 %v1258
    %1440 = vmatpush.bf16.msra.mxu0 %v1250
    %1441 = vmatpush.bf16.msra.mxu0 %v1242
    %1442 = vmatpush.bf16.msra.mxu0 %v1234
    %1443 = vmatpush.bf16.msra.mxu0 %v1226
    %1444 = vmatpush.bf16.msra.mxu0 %v1218
    %1445 = vmatmul.bf16.gmra.mxu0 %v936
    %v1446 = vpop.f32.mrf.mxu0
    %v1447 = vadd.f32 %v1010, %v1446
    %v1448 = vpop.f32.mrf.mxu0
    %v1449 = vadd.f32 %v1010, %v1448
    %1450 = vdwg.mxu0
    %1451 = vst [vmem:[#allocation2] sm:$0xff] %v1349
    %1452 = vst [vmem:[#allocation2 + $0x8] sm:$0xff] %v1363
    %1453 = vst [vmem:[#allocation2 + $0x10] sm:$0xff] %v1377
    %1454 = vst [vmem:[#allocation2 + $0x18] sm:$0xff] %v1391
    %1455 = vst [vmem:[#allocation2 + $0x20] sm:$0xff] %v1405
    %1456 = vst [vmem:[#allocation2 + $0x28] sm:$0xff] %v1419
    %1457 = vst [vmem:[#allocation2 + $0x30] sm:$0xff] %v1433
    %1458 = vst [vmem:[#allocation2 + $0x38] sm:$0xff] %v1447
    %1459 = vst [vmem:[#allocation2 + $0x40] sm:$0xff] %v1351
    %1460 = vst [vmem:[#allocation2 + $0x48] sm:$0xff] %v1365
    %1461 = vst [vmem:[#allocation2 + $0x50] sm:$0xff] %v1379
    %1462 = vst [vmem:[#allocation2 + $0x58] sm:$0xff] %v1393
    %1463 = vst [vmem:[#allocation2 + $0x60] sm:$0xff] %v1407
    %1464 = vst [vmem:[#allocation2 + $0x68] sm:$0xff] %v1421
    %1465 = vst [vmem:[#allocation2 + $0x70] sm:$0xff] %v1435
    %1466 = vst [vmem:[#allocation2 + $0x78] sm:$0xff] %v1449
    %v1467 = vld [vmem:[#allocation2] sm:$0x3]
    %v1468 = vld [vmem:[#allocation2 + $0x8] sm:$0x3]
    %v1469 = vld [vmem:[#allocation2 + $0x10] sm:$0x3]
    %v1470 = vld [vmem:[#allocation2 + $0x18] sm:$0x3]
    %v1471 = vld [vmem:[%s41] sm:$0xff]
    %v1472 = vld [vmem:[%s41 + $0x8] sm:$0xff]
    %v1473 = vld [vmem:[%s41 + $0x10] sm:$0xff]
    %v1474 = vld [vmem:[%s41 + $0x18] sm:$0xff]
    %v1475 = vld [vmem:[%s41 + $0x20] sm:$0xff]
    %v1476 = vld [vmem:[%s41 + $0x28] sm:$0xff]
    %v1477 = vld [vmem:[%s41 + $0x30] sm:$0xff]
    %v1478 = vld [vmem:[%s41 + $0x38] sm:$0xff]
    %v1479 = vld [vmem:[%s41 + $0x40] sm:$0xff]
    %v1480 = vld [vmem:[%s41 + $0x48] sm:$0xff]
    %v1481 = vld [vmem:[%s41 + $0x50] sm:$0xff]
    %v1482 = vld [vmem:[%s41 + $0x58] sm:$0xff]
    %v1483 = vld [vmem:[%s41 + $0x60] sm:$0xff]
    %v1484 = vld [vmem:[%s41 + $0x68] sm:$0xff]
    %v1485 = vld [vmem:[%s41 + $0x70] sm:$0xff]
    %v1486 = vld [vmem:[%s41 + $0x78] sm:$0xff]
    %v1487 = vld [vmem:[%s41 + $0x80] sm:$0xff]
    %v1488 = vld [vmem:[%s41 + $0x88] sm:$0xff]
    %v1489 = vld [vmem:[%s41 + $0x90] sm:$0xff]
    %v1490 = vld [vmem:[%s41 + $0x98] sm:$0xff]
    %v1491 = vld [vmem:[%s41 + $0xa0] sm:$0xff]
    %v1492 = vld [vmem:[%s41 + $0xa8] sm:$0xff]
    %v1493 = vld [vmem:[%s41 + $0xb0] sm:$0xff]
    %v1494 = vld [vmem:[%s41 + $0xb8] sm:$0xff]
    %v1495 = vld [vmem:[%s41 + $0xc0] sm:$0xff]
    %v1496 = vld [vmem:[%s41 + $0xc8] sm:$0xff]
    %v1497 = vld [vmem:[%s41 + $0xd0] sm:$0xff]
    %v1498 = vld [vmem:[%s41 + $0xd8] sm:$0xff]
    %v1499 = vld [vmem:[%s41 + $0xe0] sm:$0xff]
    %v1500 = vld [vmem:[%s41 + $0xe8] sm:$0xff]
    %v1501 = vld [vmem:[%s41 + $0xf0] sm:$0xff]
    %v1502 = vld [vmem:[%s41 + $0xf8] sm:$0xff]
    %v1535 = vunpack.c.l.b16 %v1471
    %v1536 = vunpack.c.h.b16 %v1471
    %v1537 = vunpack.c.l.b16 %v1472
    %v1538 = vunpack.c.h.b16 %v1472
    %v1539 = vunpack.c.l.b16 %v1473
    %v1540 = vunpack.c.h.b16 %v1473
    %v1541 = vunpack.c.l.b16 %v1474
    %v1542 = vunpack.c.h.b16 %v1474
    %v1543 = vunpack.c.l.b16 %v1475
    %v1544 = vunpack.c.h.b16 %v1475
    %v1545 = vunpack.c.l.b16 %v1476
    %v1546 = vunpack.c.h.b16 %v1476
    %v1547 = vunpack.c.l.b16 %v1477
    %v1548 = vunpack.c.h.b16 %v1477
    %v1549 = vunpack.c.l.b16 %v1478
    %v1550 = vunpack.c.h.b16 %v1478
    %v1551 = vunpack.c.l.b16 %v1479
    %v1552 = vunpack.c.h.b16 %v1479
    %v1553 = vunpack.c.l.b16 %v1480
    %v1554 = vunpack.c.h.b16 %v1480
    %v1555 = vunpack.c.l.b16 %v1481
    %v1556 = vunpack.c.h.b16 %v1481
    %v1557 = vunpack.c.l.b16 %v1482
    %v1558 = vunpack.c.h.b16 %v1482
    %v1559 = vunpack.c.l.b16 %v1483
    %v1560 = vunpack.c.h.b16 %v1483
    %v1561 = vunpack.c.l.b16 %v1484
    %v1562 = vunpack.c.h.b16 %v1484
    %v1563 = vunpack.c.l.b16 %v1485
    %v1564 = vunpack.c.h.b16 %v1485
    %v1565 = vunpack.c.l.b16 %v1486
    %v1566 = vunpack.c.h.b16 %v1486
    %v1567 = vunpack.c.l.b16 %v1487
    %v1568 = vunpack.c.h.b16 %v1487
    %v1569 = vunpack.c.l.b16 %v1488
    %v1570 = vunpack.c.h.b16 %v1488
    %v1571 = vunpack.c.l.b16 %v1489
    %v1572 = vunpack.c.h.b16 %v1489
    %v1573 = vunpack.c.l.b16 %v1490
    %v1574 = vunpack.c.h.b16 %v1490
    %v1575 = vunpack.c.l.b16 %v1491
    %v1576 = vunpack.c.h.b16 %v1491
    %v1577 = vunpack.c.l.b16 %v1492
    %v1578 = vunpack.c.h.b16 %v1492
    %v1579 = vunpack.c.l.b16 %v1493
    %v1580 = vunpack.c.h.b16 %v1493
    %v1581 = vunpack.c.l.b16 %v1494
    %v1582 = vunpack.c.h.b16 %v1494
    %v1583 = vunpack.c.l.b16 %v1495
    %v1584 = vunpack.c.h.b16 %v1495
    %v1585 = vunpack.c.l.b16 %v1496
    %v1586 = vunpack.c.h.b16 %v1496
    %v1587 = vunpack.c.l.b16 %v1497
    %v1588 = vunpack.c.h.b16 %v1497
    %v1589 = vunpack.c.l.b16 %v1498
    %v1590 = vunpack.c.h.b16 %v1498
    %v1591 = vunpack.c.l.b16 %v1499
    %v1592 = vunpack.c.h.b16 %v1499
    %v1593 = vunpack.c.l.b16 %v1500
    %v1594 = vunpack.c.h.b16 %v1500
    %v1595 = vunpack.c.l.b16 %v1501
    %v1596 = vunpack.c.h.b16 %v1501
    %v1597 = vunpack.c.l.b16 %v1502
    %v1598 = vunpack.c.h.b16 %v1502
    %v1599 = vpack.c.b16 %v1539, %v1535
    %v1600 = vpack.c.b16 %v1540, %v1536
    %v1601 = vpack.c.b16 %v1541, %v1537
    %v1602 = vpack.c.b16 %v1542, %v1538
    %v1603 = vpack.c.b16 %v1547, %v1543
    %v1604 = vpack.c.b16 %v1548, %v1544
    %v1605 = vpack.c.b16 %v1549, %v1545
    %v1606 = vpack.c.b16 %v1550, %v1546
    %v1607 = vpack.c.b16 %v1555, %v1551
    %v1608 = vpack.c.b16 %v1556, %v1552
    %v1609 = vpack.c.b16 %v1557, %v1553
    %v1610 = vpack.c.b16 %v1558, %v1554
    %v1611 = vpack.c.b16 %v1563, %v1559
    %v1612 = vpack.c.b16 %v1564, %v1560
    %v1613 = vpack.c.b16 %v1565, %v1561
    %v1614 = vpack.c.b16 %v1566, %v1562
    %v1615 = vpack.c.b16 %v1571, %v1567
    %v1616 = vpack.c.b16 %v1572, %v1568
    %v1617 = vpack.c.b16 %v1573, %v1569
    %v1618 = vpack.c.b16 %v1574, %v1570
    %v1619 = vpack.c.b16 %v1579, %v1575
    %v1620 = vpack.c.b16 %v1580, %v1576
    %v1621 = vpack.c.b16 %v1581, %v1577
    %v1622 = vpack.c.b16 %v1582, %v1578
    %v1623 = vpack.c.b16 %v1587, %v1583
    %v1624 = vpack.c.b16 %v1588, %v1584
    %v1625 = vpack.c.b16 %v1589, %v1585
    %v1626 = vpack.c.b16 %v1590, %v1586
    %v1627 = vpack.c.b16 %v1595, %v1591
    %v1628 = vpack.c.b16 %v1596, %v1592
    %v1629 = vpack.c.b16 %v1597, %v1593
    %v1630 = vpack.c.b16 %v1598, %v1594
    %1663 = vmatpush.bf16.msra.mxu0 %v1627
    %1664 = vmatpush.bf16.msra.mxu0 %v1623
    %1665 = vmatpush.bf16.msra.mxu0 %v1619
    %1666 = vmatpush.bf16.msra.mxu0 %v1615
    %1667 = vmatpush.bf16.msra.mxu0 %v1611
    %1668 = vmatpush.bf16.msra.mxu0 %v1607
    %1669 = vmatpush.bf16.msra.mxu0 %v1603
    %1670 = vmatpush.bf16.msra.mxu0 %v1599
    %1671 = vmatmul.bf16.gmra.mxu0 0
    %v1672 = vpop.f32.mrf.mxu0
    %v1673 = vadd.f32 0.0, %v1672
    %v1674 = vpop.f32.mrf.mxu0
    %1675 = vdwg.mxu0
    %1676 = vmatpush.bf16.msra.mxu0 %v1628
    %1677 = vmatpush.bf16.msra.mxu0 %v1624
    %1678 = vmatpush.bf16.msra.mxu0 %v1620
    %1679 = vmatpush.bf16.msra.mxu0 %v1616
    %1680 = vmatpush.bf16.msra.mxu0 %v1612
    %1681 = vmatpush.bf16.msra.mxu0 %v1608
    %1682 = vmatpush.bf16.msra.mxu0 %v1604
    %1683 = vmatpush.bf16.msra.mxu0 %v1600
    %1684 = vmatmul.bf16.gmra.mxu0 0
    %v1685 = vpop.f32.mrf.mxu0
    %v1686 = vadd.f32 0.0, %v1685
    %v1687 = vpop.f32.mrf.mxu0
    %1688 = vdwg.mxu0
    %1689 = vmatpush.bf16.msra.mxu0 %v1629
    %1690 = vmatpush.bf16.msra.mxu0 %v1625
    %1691 = vmatpush.bf16.msra.mxu0 %v1621
    %1692 = vmatpush.bf16.msra.mxu0 %v1617
    %1693 = vmatpush.bf16.msra.mxu0 %v1613
    %1694 = vmatpush.bf16.msra.mxu0 %v1609
    %1695 = vmatpush.bf16.msra.mxu0 %v1605
    %1696 = vmatpush.bf16.msra.mxu0 %v1601
    %1697 = vmatmul.bf16.gmra.mxu0 0
    %v1698 = vpop.f32.mrf.mxu0
    %v1699 = vadd.f32 0.0, %v1698
    %v1700 = vpop.f32.mrf.mxu0
    %1701 = vdwg.mxu0
    %1702 = vmatpush.bf16.msra.mxu0 %v1630
    %1703 = vmatpush.bf16.msra.mxu0 %v1626
    %1704 = vmatpush.bf16.msra.mxu0 %v1622
    %1705 = vmatpush.bf16.msra.mxu0 %v1618
    %1706 = vmatpush.bf16.msra.mxu0 %v1614
    %1707 = vmatpush.bf16.msra.mxu0 %v1610
    %1708 = vmatpush.bf16.msra.mxu0 %v1606
    %1709 = vmatpush.bf16.msra.mxu0 %v1602
    %1710 = vmatmul.bf16.gmra.mxu0 0
    %v1711 = vpop.f32.mrf.mxu0
    %v1712 = vadd.f32 0.0, %v1711
    %v1713 = vpop.f32.mrf.mxu0
    %1714 = vdwg.mxu0
    %v1715 = vadd.f32 %v1467, %v1673
    %v1716 = vadd.f32 %v1468, %v1686
    %v1717 = vadd.f32 %v1469, %v1699
    %v1718 = vadd.f32 %v1470, %v1712
    %v1719 = vld [vmem:[#allocation2 + $0x60] sm:$0xc0]
    %v1720 = vld [vmem:[#allocation2 + $0x68] sm:$0xc0]
    %v1721 = vld [vmem:[#allocation2 + $0x70] sm:$0xc0]
    %v1722 = vld [vmem:[#allocation2 + $0x78] sm:$0xc0]
    %v1723 = vld [vmem:[%s43] sm:$0xff]
    %v1724 = vld [vmem:[%s43 + $0x8] sm:$0xff]
    %v1725 = vld [vmem:[%s43 + $0x10] sm:$0xff]
    %v1726 = vld [vmem:[%s43 + $0x18] sm:$0xff]
    %v1727 = vld [vmem:[%s43 + $0x20] sm:$0xff]
    %v1728 = vld [vmem:[%s43 + $0x28] sm:$0xff]
    %v1729 = vld [vmem:[%s43 + $0x30] sm:$0xff]
    %v1730 = vld [vmem:[%s43 + $0x38] sm:$0xff]
    %v1731 = vld [vmem:[%s43 + $0x40] sm:$0xff]
    %v1732 = vld [vmem:[%s43 + $0x48] sm:$0xff]
    %v1733 = vld [vmem:[%s43 + $0x50] sm:$0xff]
    %v1734 = vld [vmem:[%s43 + $0x58] sm:$0xff]
    %v1735 = vld [vmem:[%s43 + $0x60] sm:$0xff]
    %v1736 = vld [vmem:[%s43 + $0x68] sm:$0xff]
    %v1737 = vld [vmem:[%s43 + $0x70] sm:$0xff]
    %v1738 = vld [vmem:[%s43 + $0x78] sm:$0xff]
    %v1739 = vld [vmem:[%s43 + $0x80] sm:$0xff]
    %v1740 = vld [vmem:[%s43 + $0x88] sm:$0xff]
    %v1741 = vld [vmem:[%s43 + $0x90] sm:$0xff]
    %v1742 = vld [vmem:[%s43 + $0x98] sm:$0xff]
    %v1743 = vld [vmem:[%s43 + $0xa0] sm:$0xff]
    %v1744 = vld [vmem:[%s43 + $0xa8] sm:$0xff]
    %v1745 = vld [vmem:[%s43 + $0xb0] sm:$0xff]
    %v1746 = vld [vmem:[%s43 + $0xb8] sm:$0xff]
    %v1747 = vld [vmem:[%s43 + $0xc0] sm:$0xff]
    %v1748 = vld [vmem:[%s43 + $0xc8] sm:$0xff]
    %v1749 = vld [vmem:[%s43 + $0xd0] sm:$0xff]
    %v1750 = vld [vmem:[%s43 + $0xd8] sm:$0xff]
    %v1751 = vld [vmem:[%s43 + $0xe0] sm:$0xff]
    %v1752 = vld [vmem:[%s43 + $0xe8] sm:$0xff]
    %v1753 = vld [vmem:[%s43 + $0xf0] sm:$0xff]
    %v1754 = vld [vmem:[%s43 + $0xf8] sm:$0xff]
    %v1787 = vunpack.c.l.b16 %v1723
    %v1788 = vunpack.c.h.b16 %v1723
    %v1789 = vunpack.c.l.b16 %v1724
    %v1790 = vunpack.c.h.b16 %v1724
    %v1791 = vunpack.c.l.b16 %v1725
    %v1792 = vunpack.c.h.b16 %v1725
    %v1793 = vunpack.c.l.b16 %v1726
    %v1794 = vunpack.c.h.b16 %v1726
    %v1795 = vunpack.c.l.b16 %v1727
    %v1796 = vunpack.c.h.b16 %v1727
    %v1797 = vunpack.c.l.b16 %v1728
    %v1798 = vunpack.c.h.b16 %v1728
    %v1799 = vunpack.c.l.b16 %v1729
    %v1800 = vunpack.c.h.b16 %v1729
    %v1801 = vunpack.c.l.b16 %v1730
    %v1802 = vunpack.c.h.b16 %v1730
    %v1803 = vunpack.c.l.b16 %v1731
    %v1804 = vunpack.c.h.b16 %v1731
    %v1805 = vunpack.c.l.b16 %v1732
    %v1806 = vunpack.c.h.b16 %v1732
    %v1807 = vunpack.c.l.b16 %v1733
    %v1808 = vunpack.c.h.b16 %v1733
    %v1809 = vunpack.c.l.b16 %v1734
    %v1810 = vunpack.c.h.b16 %v1734
    %v1811 = vunpack.c.l.b16 %v1735
    %v1812 = vunpack.c.h.b16 %v1735
    %v1813 = vunpack.c.l.b16 %v1736
    %v1814 = vunpack.c.h.b16 %v1736
    %v1815 = vunpack.c.l.b16 %v1737
    %v1816 = vunpack.c.h.b16 %v1737
    %v1817 = vunpack.c.l.b16 %v1738
    %v1818 = vunpack.c.h.b16 %v1738
    %v1819 = vunpack.c.l.b16 %v1739
    %v1820 = vunpack.c.h.b16 %v1739
    %v1821 = vunpack.c.l.b16 %v1740
    %v1822 = vunpack.c.h.b16 %v1740
    %v1823 = vunpack.c.l.b16 %v1741
    %v1824 = vunpack.c.h.b16 %v1741
    %v1825 = vunpack.c.l.b16 %v1742
    %v1826 = vunpack.c.h.b16 %v1742
    %v1827 = vunpack.c.l.b16 %v1743
    %v1828 = vunpack.c.h.b16 %v1743
    %v1829 = vunpack.c.l.b16 %v1744
    %v1830 = vunpack.c.h.b16 %v1744
    %v1831 = vunpack.c.l.b16 %v1745
    %v1832 = vunpack.c.h.b16 %v1745
    %v1833 = vunpack.c.l.b16 %v1746
    %v1834 = vunpack.c.h.b16 %v1746
    %v1835 = vunpack.c.l.b16 %v1747
    %v1836 = vunpack.c.h.b16 %v1747
    %v1837 = vunpack.c.l.b16 %v1748
    %v1838 = vunpack.c.h.b16 %v1748
    %v1839 = vunpack.c.l.b16 %v1749
    %v1840 = vunpack.c.h.b16 %v1749
    %v1841 = vunpack.c.l.b16 %v1750
    %v1842 = vunpack.c.h.b16 %v1750
    %v1843 = vunpack.c.l.b16 %v1751
    %v1844 = vunpack.c.h.b16 %v1751
    %v1845 = vunpack.c.l.b16 %v1752
    %v1846 = vunpack.c.h.b16 %v1752
    %v1847 = vunpack.c.l.b16 %v1753
    %v1848 = vunpack.c.h.b16 %v1753
    %v1849 = vunpack.c.l.b16 %v1754
    %v1850 = vunpack.c.h.b16 %v1754
    %v1851 = vpack.c.b16 %v1791, %v1787
    %v1852 = vpack.c.b16 %v1792, %v1788
    %v1853 = vpack.c.b16 %v1793, %v1789
    %v1854 = vpack.c.b16 %v1794, %v1790
    %v1855 = vpack.c.b16 %v1799, %v1795
    %v1856 = vpack.c.b16 %v1800, %v1796
    %v1857 = vpack.c.b16 %v1801, %v1797
    %v1858 = vpack.c.b16 %v1802, %v1798
    %v1859 = vpack.c.b16 %v1807, %v1803
    %v1860 = vpack.c.b16 %v1808, %v1804
    %v1861 = vpack.c.b16 %v1809, %v1805
    %v1862 = vpack.c.b16 %v1810, %v1806
    %v1863 = vpack.c.b16 %v1815, %v1811
    %v1864 = vpack.c.b16 %v1816, %v1812
    %v1865 = vpack.c.b16 %v1817, %v1813
    %v1866 = vpack.c.b16 %v1818, %v1814
    %v1867 = vpack.c.b16 %v1823, %v1819
    %v1868 = vpack.c.b16 %v1824, %v1820
    %v1869 = vpack.c.b16 %v1825, %v1821
    %v1870 = vpack.c.b16 %v1826, %v1822
    %v1871 = vpack.c.b16 %v1831, %v1827
    %v1872 = vpack.c.b16 %v1832, %v1828
    %v1873 = vpack.c.b16 %v1833, %v1829
    %v1874 = vpack.c.b16 %v1834, %v1830
    %v1875 = vpack.c.b16 %v1839, %v1835
    %v1876 = vpack.c.b16 %v1840, %v1836
    %v1877 = vpack.c.b16 %v1841, %v1837
    %v1878 = vpack.c.b16 %v1842, %v1838
    %v1879 = vpack.c.b16 %v1847, %v1843
    %v1880 = vpack.c.b16 %v1848, %v1844
    %v1881 = vpack.c.b16 %v1849, %v1845
    %v1882 = vpack.c.b16 %v1850, %v1846
    %1915 = vmatpush.bf16.msra.mxu0 %v1879
    %1916 = vmatpush.bf16.msra.mxu0 %v1875
    %1917 = vmatpush.bf16.msra.mxu0 %v1871
    %1918 = vmatpush.bf16.msra.mxu0 %v1867
    %1919 = vmatpush.bf16.msra.mxu0 %v1863
    %1920 = vmatpush.bf16.msra.mxu0 %v1859
    %1921 = vmatpush.bf16.msra.mxu0 %v1855
    %1922 = vmatpush.bf16.msra.mxu0 %v1851
    %1923 = vmatmul.bf16.gmra.mxu0 0
    %v1924 = vpop.f32.mrf.mxu0
    %v1925 = vadd.f32 0.0, %v1924
    %v1926 = vpop.f32.mrf.mxu0
    %1927 = vdwg.mxu0
    %1928 = vmatpush.bf16.msra.mxu0 %v1880
    %1929 = vmatpush.bf16.msra.mxu0 %v1876
    %1930 = vmatpush.bf16.msra.mxu0 %v1872
    %1931 = vmatpush.bf16.msra.mxu0 %v1868
    %1932 = vmatpush.bf16.msra.mxu0 %v1864
    %1933 = vmatpush.bf16.msra.mxu0 %v1860
    %1934 = vmatpush.bf16.msra.mxu0 %v1856
    %1935 = vmatpush.bf16.msra.mxu0 %v1852
    %1936 = vmatmul.bf16.gmra.mxu0 0
    %v1937 = vpop.f32.mrf.mxu0
    %v1938 = vadd.f32 0.0, %v1937
    %v1939 = vpop.f32.mrf.mxu0
    %1940 = vdwg.mxu0
    %1941 = vmatpush.bf16.msra.mxu0 %v1881
    %1942 = vmatpush.bf16.msra.mxu0 %v1877
    %1943 = vmatpush.bf16.msra.mxu0 %v1873
    %1944 = vmatpush.bf16.msra.mxu0 %v1869
    %1945 = vmatpush.bf16.msra.mxu0 %v1865
    %1946 = vmatpush.bf16.msra.mxu0 %v1861
    %1947 = vmatpush.bf16.msra.mxu0 %v1857
    %1948 = vmatpush.bf16.msra.mxu0 %v1853
    %1949 = vmatmul.bf16.gmra.mxu0 0
    %v1950 = vpop.f32.mrf.mxu0
    %v1951 = vadd.f32 0.0, %v1950
    %v1952 = vpop.f32.mrf.mxu0
    %1953 = vdwg.mxu0
    %1954 = vmatpush.bf16.msra.mxu0 %v1882
    %1955 = vmatpush.bf16.msra.mxu0 %v1878
    %1956 = vmatpush.bf16.msra.mxu0 %v1874
    %1957 = vmatpush.bf16.msra.mxu0 %v1870
    %1958 = vmatpush.bf16.msra.mxu0 %v1866
    %1959 = vmatpush.bf16.msra.mxu0 %v1862
    %1960 = vmatpush.bf16.msra.mxu0 %v1858
    %1961 = vmatpush.bf16.msra.mxu0 %v1854
    %1962 = vmatmul.bf16.gmra.mxu0 0
    %v1963 = vpop.f32.mrf.mxu0
    %v1964 = vadd.f32 0.0, %v1963
    %v1965 = vpop.f32.mrf.mxu0
    %1966 = vdwg.mxu0
    %v1971 = vrot.slane %v1925, 2
    %v1972 = vrot.slane %v1938, 2
    %v1973 = vrot.slane %v1951, 2
    %v1974 = vrot.slane %v1964, 2
    %v1979 = vadd.f32 %v1719, %v1971
    %v1980 = vadd.f32 %v1720, %v1972
    %v1981 = vadd.f32 %v1721, %v1973
    %v1982 = vadd.f32 %v1722, %v1974
    %v1983 = vxor.u32 %v1715, 2147483648
    %v1984 = vmul.f32 %v1983, 1.442695
    %v1985 = vpow.pop %v1984
    %v1986 = vadd.f32 %v1985, 1.0
    %v1987 = vrcp.pop %v1986
    %v1988 = vmul.f32 %v1986, %v1987
    %v1989 = vsub.f32 1.0, %v1988
    %v1990 = vmul.f32 %v1987, %v1989
    %v1991 = vadd.f32 %v1987, %v1990
    %vm1992 = vweird.f32 %v1986
    %vm1993 = vweird.f32 %v1987
    %vm1994 = vmor %vm1992, %vm1993
    %v1995 = vsel %vm1994, %v1987, %v1991
    %v1996 = vand.u32 2147483647, %v1986
    %vm1997 = vcmp.eq.f32.partialorder %v1996, 8.507059e+37
    %v1998 = vand.u32 %v1986, 2147483648
    %v1999 = vor.u32 1.1754944e-38, %v1998
    %v2000 = vsel %vm1997, %v1999, %v1995
    %v2001 = vmul.f32 1.0, %v2000
    %v2002 = vxor.u32 %v1716, 2147483648
    %v2003 = vmul.f32 %v2002, 1.442695
    %v2004 = vpow.pop %v2003
    %v2005 = vadd.f32 %v2004, 1.0
    %v2006 = vrcp.pop %v2005
    %v2007 = vmul.f32 %v2005, %v2006
    %v2008 = vsub.f32 1.0, %v2007
    %v2009 = vmul.f32 %v2006, %v2008
    %v2010 = vadd.f32 %v2006, %v2009
    %vm2011 = vweird.f32 %v2005
    %vm2012 = vweird.f32 %v2006
    %vm2013 = vmor %vm2011, %vm2012
    %v2014 = vsel %vm2013, %v2006, %v2010
    %v2015 = vand.u32 2147483647, %v2005
    %vm2016 = vcmp.eq.f32.partialorder %v2015, 8.507059e+37
    %v2017 = vand.u32 %v2005, 2147483648
    %v2018 = vor.u32 1.1754944e-38, %v2017
    %v2019 = vsel %vm2016, %v2018, %v2014
    %v2020 = vmul.f32 1.0, %v2019
    %v2021 = vtanh.pop %v1717
    %v2022 = vxor.u32 %v1718, 2147483648
    %v2023 = vmul.f32 %v2022, 1.442695
    %v2024 = vpow.pop %v2023
    %v2025 = vadd.f32 %v2024, 1.0
    %v2026 = vrcp.pop %v2025
    %v2027 = vmul.f32 %v2025, %v2026
    %v2028 = vsub.f32 1.0, %v2027
    %v2029 = vmul.f32 %v2026, %v2028
    %v2030 = vadd.f32 %v2026, %v2029
    %vm2031 = vweird.f32 %v2025
    %vm2032 = vweird.f32 %v2026
    %vm2033 = vmor %vm2031, %vm2032
    %v2034 = vsel %vm2033, %v2026, %v2030
    %v2035 = vand.u32 2147483647, %v2025
    %vm2036 = vcmp.eq.f32.partialorder %v2035, 8.507059e+37
    %v2037 = vand.u32 %v2025, 2147483648
    %v2038 = vor.u32 1.1754944e-38, %v2037
    %v2039 = vsel %vm2036, %v2038, %v2034
    %v2040 = vmul.f32 1.0, %v2039
    %v2041 = vxor.u32 %v1979, 2147483648
    %v2042 = vmul.f32 %v2041, 1.442695
    %v2043 = vpow.pop %v2042
    %v2044 = vadd.f32 %v2043, 1.0
    %v2045 = vrcp.pop %v2044
    %v2046 = vmul.f32 %v2044, %v2045
    %v2047 = vsub.f32 1.0, %v2046
    %v2048 = vmul.f32 %v2045, %v2047
    %v2049 = vadd.f32 %v2045, %v2048
    %vm2050 = vweird.f32 %v2044
    %vm2051 = vweird.f32 %v2045
    %vm2052 = vmor %vm2050, %vm2051
    %v2053 = vsel %vm2052, %v2045, %v2049
    %v2054 = vand.u32 2147483647, %v2044
    %vm2055 = vcmp.eq.f32.partialorder %v2054, 8.507059e+37
    %v2056 = vand.u32 %v2044, 2147483648
    %v2057 = vor.u32 1.1754944e-38, %v2056
    %v2058 = vsel %vm2055, %v2057, %v2053
    %v2059 = vmul.f32 1.0, %v2058
    %v2060 = vxor.u32 %v1980, 2147483648
    %v2061 = vmul.f32 %v2060, 1.442695
    %v2062 = vpow.pop %v2061
    %v2063 = vadd.f32 %v2062, 1.0
    %v2064 = vrcp.pop %v2063
    %v2065 = vmul.f32 %v2063, %v2064
    %v2066 = vsub.f32 1.0, %v2065
    %v2067 = vmul.f32 %v2064, %v2066
    %v2068 = vadd.f32 %v2064, %v2067
    %vm2069 = vweird.f32 %v2063
    %vm2070 = vweird.f32 %v2064
    %vm2071 = vmor %vm2069, %vm2070
    %v2072 = vsel %vm2071, %v2064, %v2068
    %v2073 = vand.u32 2147483647, %v2063
    %vm2074 = vcmp.eq.f32.partialorder %v2073, 8.507059e+37
    %v2075 = vand.u32 %v2063, 2147483648
    %v2076 = vor.u32 1.1754944e-38, %v2075
    %v2077 = vsel %vm2074, %v2076, %v2072
    %v2078 = vmul.f32 1.0, %v2077
    %v2079 = vtanh.pop %v1981
    %v2080 = vxor.u32 %v1982, 2147483648
    %v2081 = vmul.f32 %v2080, 1.442695
    %v2082 = vpow.pop %v2081
    %v2083 = vadd.f32 %v2082, 1.0
    %v2084 = vrcp.pop %v2083
    %v2085 = vmul.f32 %v2083, %v2084
    %v2086 = vsub.f32 1.0, %v2085
    %v2087 = vmul.f32 %v2084, %v2086
    %v2088 = vadd.f32 %v2084, %v2087
    %vm2089 = vweird.f32 %v2083
    %vm2090 = vweird.f32 %v2084
    %vm2091 = vmor %vm2089, %vm2090
    %v2092 = vsel %vm2091, %v2084, %v2088
    %v2093 = vand.u32 2147483647, %v2083
    %vm2094 = vcmp.eq.f32.partialorder %v2093, 8.507059e+37
    %v2095 = vand.u32 %v2083, 2147483648
    %v2096 = vor.u32 1.1754944e-38, %v2095
    %v2097 = vsel %vm2094, %v2096, %v2092
    %v2098 = vmul.f32 1.0, %v2097
    %v2099 = vmul.f32 %v2020, 0.0
    %v2100 = vmul.f32 %v2001, %v2021
    %v2101 = vadd.f32 %v2099, %v2100
    %v2102 = vtanh.pop %v2101
    %v2103 = vmul.f32 %v2040, %v2102
    %v2104 = vmul.f32 %v2078, 0.0
    %v2105 = vmul.f32 %v2059, %v2079
    %v2106 = vadd.f32 %v2104, %v2105
    %v2107 = vtanh.pop %v2106
    %v2108 = vmul.f32 %v2098, %v2107
    %v2109 = vld [vmem:[%s5] sm:$0x3]
    %s2110 = scalar_lea.vmem %s5, 14
    %v2111 = vld [vmem:[%s2110] sm:$0x3]
    %s2112 = scalar_lea.vmem %s7, 14
    %v2113 = vld [vmem:[%s2112] sm:$0x3]
    %v2114 = vmul.f32 %v2109, %v2103
    %v2115 = vsub.f32 1.0, %v2109
    %v2116 = vmul.f32 %v2115, 0.0
    %v2117 = vadd.f32 %v2114, %v2116
    %v2118 = vmul.f32 %v2109, %v2101
    %v2119 = vadd.f32 %v2118, %v2116
    %v2121 = vrot.slane %v2108, 6
    %v2123 = vmul.f32 %v2111, %v2121
    %v2124 = vsub.f32 1.0, %v2111
    %v2125 = vmul.f32 %v2124, 0.0
    %v2126 = vadd.f32 %v2123, %v2125
    %v2128 = vrot.slane %v2106, 6
    %v2130 = vmul.f32 %v2111, %v2128
    %v2131 = vadd.f32 %v2130, %v2125
    %v2132 = vmul.f32 %v2113, %v2126
    %v2133 = vsub.f32 1.0, %v2113
    %v2134 = vmul.f32 %v2133, 0.0
    %v2135 = vadd.f32 %v2132, %v2134
    %v2136 = vld [vmem:[#allocation2] sm:$0xc]
    %v2137 = vld [vmem:[#allocation2 + $0x8] sm:$0xc]
    %v2138 = vld [vmem:[#allocation2 + $0x10] sm:$0xc]
    %v2139 = vld [vmem:[#allocation2 + $0x18] sm:$0xc]
    %v2140 = vpack.c.bf16 %v2117, %v2117
    %2141 = vmatpush.bf16.msra.mxu0 %v1627
    %2142 = vmatpush.bf16.msra.mxu0 %v1623
    %2143 = vmatpush.bf16.msra.mxu0 %v1619
    %2144 = vmatpush.bf16.msra.mxu0 %v1615
    %2145 = vmatpush.bf16.msra.mxu0 %v1611
    %2146 = vmatpush.bf16.msra.mxu0 %v1607
    %2147 = vmatpush.bf16.msra.mxu0 %v1603
    %2148 = vmatpush.bf16.msra.mxu0 %v1599
    %2149 = vmatmul.bf16.gmra.mxu0 %v2140
    %v2150 = vpop.f32.mrf.mxu0
    %v2151 = vadd.f32 0.0, %v2150
    %v2152 = vpop.f32.mrf.mxu0
    %2153 = vdwg.mxu0
    %2154 = vmatpush.bf16.msra.mxu0 %v1628
    %2155 = vmatpush.bf16.msra.mxu0 %v1624
    %2156 = vmatpush.bf16.msra.mxu0 %v1620
    %2157 = vmatpush.bf16.msra.mxu0 %v1616
    %2158 = vmatpush.bf16.msra.mxu0 %v1612
    %2159 = vmatpush.bf16.msra.mxu0 %v1608
    %2160 = vmatpush.bf16.msra.mxu0 %v1604
    %2161 = vmatpush.bf16.msra.mxu0 %v1600
    %2162 = vmatmul.bf16.gmra.mxu0 %v2140
    %v2163 = vpop.f32.mrf.mxu0
    %v2164 = vadd.f32 0.0, %v2163
    %v2165 = vpop.f32.mrf.mxu0
    %2166 = vdwg.mxu0
    %2167 = vmatpush.bf16.msra.mxu0 %v1629
    %2168 = vmatpush.bf16.msra.mxu0 %v1625
    %2169 = vmatpush.bf16.msra.mxu0 %v1621
    %2170 = vmatpush.bf16.msra.mxu0 %v1617
    %2171 = vmatpush.bf16.msra.mxu0 %v1613
    %2172 = vmatpush.bf16.msra.mxu0 %v1609
    %2173 = vmatpush.bf16.msra.mxu0 %v1605
    %2174 = vmatpush.bf16.msra.mxu0 %v1601
    %2175 = vmatmul.bf16.gmra.mxu0 %v2140
    %v2176 = vpop.f32.mrf.mxu0
    %v2177 = vadd.f32 0.0, %v2176
    %v2178 = vpop.f32.mrf.mxu0
    %2179 = vdwg.mxu0
    %2180 = vmatpush.bf16.msra.mxu0 %v1630
    %2181 = vmatpush.bf16.msra.mxu0 %v1626
    %2182 = vmatpush.bf16.msra.mxu0 %v1622
    %2183 = vmatpush.bf16.msra.mxu0 %v1618
    %2184 = vmatpush.bf16.msra.mxu0 %v1614
    %2185 = vmatpush.bf16.msra.mxu0 %v1610
    %2186 = vmatpush.bf16.msra.mxu0 %v1606
    %2187 = vmatpush.bf16.msra.mxu0 %v1602
    %2188 = vmatmul.bf16.gmra.mxu0 %v2140
    %v2189 = vpop.f32.mrf.mxu0
    %v2190 = vadd.f32 0.0, %v2189
    %v2191 = vpop.f32.mrf.mxu0
    %2192 = vdwg.mxu0
    %v2197 = vrot.slane %v2151, 6
    %v2198 = vrot.slane %v2164, 6
    %v2199 = vrot.slane %v2177, 6
    %v2200 = vrot.slane %v2190, 6
    %v2205 = vadd.f32 %v2136, %v2197
    %v2206 = vadd.f32 %v2137, %v2198
    %v2207 = vadd.f32 %v2138, %v2199
    %v2208 = vadd.f32 %v2139, %v2200
    %v2209 = vld [vmem:[#allocation2 + $0x60] sm:$0x30]
    %v2210 = vld [vmem:[#allocation2 + $0x68] sm:$0x30]
    %v2211 = vld [vmem:[#allocation2 + $0x70] sm:$0x30]
    %v2212 = vld [vmem:[#allocation2 + $0x78] sm:$0x30]
    %v2213 = vpack.c.bf16 %v2126, %v2126
    %2214 = vmatpush.bf16.msra.mxu0 %v1879
    %2215 = vmatpush.bf16.msra.mxu0 %v1875
    %2216 = vmatpush.bf16.msra.mxu0 %v1871
    %2217 = vmatpush.bf16.msra.mxu0 %v1867
    %2218 = vmatpush.bf16.msra.mxu0 %v1863
    %2219 = vmatpush.bf16.msra.mxu0 %v1859
    %2220 = vmatpush.bf16.msra.mxu0 %v1855
    %2221 = vmatpush.bf16.msra.mxu0 %v1851
    %2222 = vmatmul.bf16.gmra.mxu0 %v2213
    %v2223 = vpop.f32.mrf.mxu0
    %v2224 = vadd.f32 0.0, %v2223
    %v2225 = vpop.f32.mrf.mxu0
    %2226 = vdwg.mxu0
    %2227 = vmatpush.bf16.msra.mxu0 %v1880
    %2228 = vmatpush.bf16.msra.mxu0 %v1876
    %2229 = vmatpush.bf16.msra.mxu0 %v1872
    %2230 = vmatpush.bf16.msra.mxu0 %v1868
    %2231 = vmatpush.bf16.msra.mxu0 %v1864
    %2232 = vmatpush.bf16.msra.mxu0 %v1860
    %2233 = vmatpush.bf16.msra.mxu0 %v1856
    %2234 = vmatpush.bf16.msra.mxu0 %v1852
    %2235 = vmatmul.bf16.gmra.mxu0 %v2213
    %v2236 = vpop.f32.mrf.mxu0
    %v2237 = vadd.f32 0.0, %v2236
    %v2238 = vpop.f32.mrf.mxu0
    %2239 = vdwg.mxu0
    %2240 = vmatpush.bf16.msra.mxu0 %v1881
    %2241 = vmatpush.bf16.msra.mxu0 %v1877
    %2242 = vmatpush.bf16.msra.mxu0 %v1873
    %2243 = vmatpush.bf16.msra.mxu0 %v1869
    %2244 = vmatpush.bf16.msra.mxu0 %v1865
    %2245 = vmatpush.bf16.msra.mxu0 %v1861
    %2246 = vmatpush.bf16.msra.mxu0 %v1857
    %2247 = vmatpush.bf16.msra.mxu0 %v1853
    %2248 = vmatmul.bf16.gmra.mxu0 %v2213
    %v2249 = vpop.f32.mrf.mxu0
    %v2250 = vadd.f32 0.0, %v2249
    %v2251 = vpop.f32.mrf.mxu0
    %2252 = vdwg.mxu0
    %2253 = vmatpush.bf16.msra.mxu0 %v1882
    %2254 = vmatpush.bf16.msra.mxu0 %v1878
    %2255 = vmatpush.bf16.msra.mxu0 %v1874
    %2256 = vmatpush.bf16.msra.mxu0 %v1870
    %2257 = vmatpush.bf16.msra.mxu0 %v1866
    %2258 = vmatpush.bf16.msra.mxu0 %v1862
    %2259 = vmatpush.bf16.msra.mxu0 %v1858
    %2260 = vmatpush.bf16.msra.mxu0 %v1854
    %2261 = vmatmul.bf16.gmra.mxu0 %v2213
    %v2262 = vpop.f32.mrf.mxu0
    %v2263 = vadd.f32 0.0, %v2262
    %v2264 = vpop.f32.mrf.mxu0
    %2265 = vdwg.mxu0
    %v2270 = vrot.slane %v2224, 4
    %v2271 = vrot.slane %v2237, 4
    %v2272 = vrot.slane %v2250, 4
    %v2273 = vrot.slane %v2263, 4
    %v2278 = vadd.f32 %v2209, %v2270
    %v2279 = vadd.f32 %v2210, %v2271
    %v2280 = vadd.f32 %v2211, %v2272
    %v2281 = vadd.f32 %v2212, %v2273
    %v2282 = vxor.u32 %v2205, 2147483648
    %v2283 = vmul.f32 %v2282, 1.442695
    %v2284 = vpow.pop %v2283
    %v2285 = vadd.f32 %v2284, 1.0
    %v2286 = vrcp.pop %v2285
    %v2287 = vmul.f32 %v2285, %v2286
    %v2288 = vsub.f32 1.0, %v2287
    %v2289 = vmul.f32 %v2286, %v2288
    %v2290 = vadd.f32 %v2286, %v2289
    %vm2291 = vweird.f32 %v2285
    %vm2292 = vweird.f32 %v2286
    %vm2293 = vmor %vm2291, %vm2292
    %v2294 = vsel %vm2293, %v2286, %v2290
    %v2295 = vand.u32 2147483647, %v2285
    %vm2296 = vcmp.eq.f32.partialorder %v2295, 8.507059e+37
    %v2297 = vand.u32 %v2285, 2147483648
    %v2298 = vor.u32 1.1754944e-38, %v2297
    %v2299 = vsel %vm2296, %v2298, %v2294
    %v2300 = vmul.f32 1.0, %v2299
    %v2301 = vxor.u32 %v2206, 2147483648
    %v2302 = vmul.f32 %v2301, 1.442695
    %v2303 = vpow.pop %v2302
    %v2304 = vadd.f32 %v2303, 1.0
    %v2305 = vrcp.pop %v2304
    %v2306 = vmul.f32 %v2304, %v2305
    %v2307 = vsub.f32 1.0, %v2306
    %v2308 = vmul.f32 %v2305, %v2307
    %v2309 = vadd.f32 %v2305, %v2308
    %vm2310 = vweird.f32 %v2304
    %vm2311 = vweird.f32 %v2305
    %vm2312 = vmor %vm2310, %vm2311
    %v2313 = vsel %vm2312, %v2305, %v2309
    %v2314 = vand.u32 2147483647, %v2304
    %vm2315 = vcmp.eq.f32.partialorder %v2314, 8.507059e+37
    %v2316 = vand.u32 %v2304, 2147483648
    %v2317 = vor.u32 1.1754944e-38, %v2316
    %v2318 = vsel %vm2315, %v2317, %v2313
    %v2319 = vmul.f32 1.0, %v2318
    %v2320 = vtanh.pop %v2207
    %v2321 = vxor.u32 %v2208, 2147483648
    %v2322 = vmul.f32 %v2321, 1.442695
    %v2323 = vpow.pop %v2322
    %v2324 = vadd.f32 %v2323, 1.0
    %v2325 = vrcp.pop %v2324
    %v2326 = vmul.f32 %v2324, %v2325
    %v2327 = vsub.f32 1.0, %v2326
    %v2328 = vmul.f32 %v2325, %v2327
    %v2329 = vadd.f32 %v2325, %v2328
    %vm2330 = vweird.f32 %v2324
    %vm2331 = vweird.f32 %v2325
    %vm2332 = vmor %vm2330, %vm2331
    %v2333 = vsel %vm2332, %v2325, %v2329
    %v2334 = vand.u32 2147483647, %v2324
    %vm2335 = vcmp.eq.f32.partialorder %v2334, 8.507059e+37
    %v2336 = vand.u32 %v2324, 2147483648
    %v2337 = vor.u32 1.1754944e-38, %v2336
    %v2338 = vsel %vm2335, %v2337, %v2333
    %v2339 = vmul.f32 1.0, %v2338
    %v2340 = vxor.u32 %v2278, 2147483648
    %v2341 = vmul.f32 %v2340, 1.442695
    %v2342 = vpow.pop %v2341
    %v2343 = vadd.f32 %v2342, 1.0
    %v2344 = vrcp.pop %v2343
    %v2345 = vmul.f32 %v2343, %v2344
    %v2346 = vsub.f32 1.0, %v2345
    %v2347 = vmul.f32 %v2344, %v2346
    %v2348 = vadd.f32 %v2344, %v2347
    %vm2349 = vweird.f32 %v2343
    %vm2350 = vweird.f32 %v2344
    %vm2351 = vmor %vm2349, %vm2350
    %v2352 = vsel %vm2351, %v2344, %v2348
    %v2353 = vand.u32 2147483647, %v2343
    %vm2354 = vcmp.eq.f32.partialorder %v2353, 8.507059e+37
    %v2355 = vand.u32 %v2343, 2147483648
    %v2356 = vor.u32 1.1754944e-38, %v2355
    %v2357 = vsel %vm2354, %v2356, %v2352
    %v2358 = vmul.f32 1.0, %v2357
    %v2359 = vxor.u32 %v2279, 2147483648
    %v2360 = vmul.f32 %v2359, 1.442695
    %v2361 = vpow.pop %v2360
    %v2362 = vadd.f32 %v2361, 1.0
    %v2363 = vrcp.pop %v2362
    %v2364 = vmul.f32 %v2362, %v2363
    %v2365 = vsub.f32 1.0, %v2364
    %v2366 = vmul.f32 %v2363, %v2365
    %v2367 = vadd.f32 %v2363, %v2366
    %vm2368 = vweird.f32 %v2362
    %vm2369 = vweird.f32 %v2363
    %vm2370 = vmor %vm2368, %vm2369
    %v2371 = vsel %vm2370, %v2363, %v2367
    %v2372 = vand.u32 2147483647, %v2362
    %vm2373 = vcmp.eq.f32.partialorder %v2372, 8.507059e+37
    %v2374 = vand.u32 %v2362, 2147483648
    %v2375 = vor.u32 1.1754944e-38, %v2374
    %v2376 = vsel %vm2373, %v2375, %v2371
    %v2377 = vmul.f32 1.0, %v2376
    %v2378 = vtanh.pop %v2280
    %v2379 = vxor.u32 %v2281, 2147483648
    %v2380 = vmul.f32 %v2379, 1.442695
    %v2381 = vpow.pop %v2380
    %v2382 = vadd.f32 %v2381, 1.0
    %v2383 = vrcp.pop %v2382
    %v2384 = vmul.f32 %v2382, %v2383
    %v2385 = vsub.f32 1.0, %v2384
    %v2386 = vmul.f32 %v2383, %v2385
    %v2387 = vadd.f32 %v2383, %v2386
    %vm2388 = vweird.f32 %v2382
    %vm2389 = vweird.f32 %v2383
    %vm2390 = vmor %vm2388, %vm2389
    %v2391 = vsel %vm2390, %v2383, %v2387
    %v2392 = vand.u32 2147483647, %v2382
    %vm2393 = vcmp.eq.f32.partialorder %v2392, 8.507059e+37
    %v2394 = vand.u32 %v2382, 2147483648
    %v2395 = vor.u32 1.1754944e-38, %v2394
    %v2396 = vsel %vm2393, %v2395, %v2391
    %v2397 = vmul.f32 1.0, %v2396
    %v2399 = vrot.slane %v2119, 6
    %v2401 = vmul.f32 %v2319, %v2399
    %v2402 = vmul.f32 %v2300, %v2320
    %v2403 = vadd.f32 %v2401, %v2402
    %v2404 = vtanh.pop %v2403
    %v2405 = vmul.f32 %v2339, %v2404
    %v2407 = vrot.slane %v2131, 4
    %v2409 = vmul.f32 %v2377, %v2407
    %v2410 = vmul.f32 %v2358, %v2378
    %v2411 = vadd.f32 %v2409, %v2410
    %v2412 = vtanh.pop %v2411
    %v2413 = vmul.f32 %v2397, %v2412
    %s2414 = scalar_lea.vmem %s5, 2
    %v2415 = vld [vmem:[%s2414] sm:$0x3]
    %s2416 = scalar_lea.vmem %s5, 12
    %v2417 = vld [vmem:[%s2416] sm:$0x3]
    %s2418 = scalar_lea.vmem %s7, 12
    %v2419 = vld [vmem:[%s2418] sm:$0x3]
    %v2421 = vrot.slane %v2405, 2
    %v2423 = vmul.f32 %v2415, %v2421
    %v2424 = vsub.f32 1.0, %v2415
    %v2425 = vmul.f32 %v2424, %v2117
    %v2426 = vadd.f32 %v2423, %v2425
    %v2428 = vrot.slane %v2403, 2
    %v2430 = vmul.f32 %v2415, %v2428
    %v2431 = vmul.f32 %v2424, %v2119
    %v2432 = vadd.f32 %v2430, %v2431
    %v2434 = vrot.slane %v2413, 4
    %v2436 = vmul.f32 %v2417, %v2434
    %v2437 = vsub.f32 1.0, %v2417
    %v2438 = vmul.f32 %v2437, %v2126
    %v2439 = vadd.f32 %v2436, %v2438
    %v2441 = vrot.slane %v2411, 4
    %v2443 = vmul.f32 %v2417, %v2441
    %v2444 = vmul.f32 %v2437, %v2131
    %v2445 = vadd.f32 %v2443, %v2444
    %v2446 = vmul.f32 %v2419, %v2439
    %v2447 = vsub.f32 1.0, %v2419
    %v2448 = vmul.f32 %v2447, %v2135
    %v2449 = vadd.f32 %v2446, %v2448
    %v2450 = vld [vmem:[#allocation2] sm:$0x30]
    %v2451 = vld [vmem:[#allocation2 + $0x8] sm:$0x30]
    %v2452 = vld [vmem:[#allocation2 + $0x10] sm:$0x30]
    %v2453 = vld [vmem:[#allocation2 + $0x18] sm:$0x30]
    %v2454 = vpack.c.bf16 %v2426, %v2426
    %2455 = vmatpush.bf16.msra.mxu0 %v1627
    %2456 = vmatpush.bf16.msra.mxu0 %v1623
    %2457 = vmatpush.bf16.msra.mxu0 %v1619
    %2458 = vmatpush.bf16.msra.mxu0 %v1615
    %2459 = vmatpush.bf16.msra.mxu0 %v1611
    %2460 = vmatpush.bf16.msra.mxu0 %v1607
    %2461 = vmatpush.bf16.msra.mxu0 %v1603
    %2462 = vmatpush.bf16.msra.mxu0 %v1599
    %2463 = vmatmul.bf16.gmra.mxu0 %v2454
    %v2464 = vpop.f32.mrf.mxu0
    %v2465 = vadd.f32 0.0, %v2464
    %v2466 = vpop.f32.mrf.mxu0
    %2467 = vdwg.mxu0
    %2468 = vmatpush.bf16.msra.mxu0 %v1628
    %2469 = vmatpush.bf16.msra.mxu0 %v1624
    %2470 = vmatpush.bf16.msra.mxu0 %v1620
    %2471 = vmatpush.bf16.msra.mxu0 %v1616
    %2472 = vmatpush.bf16.msra.mxu0 %v1612
    %2473 = vmatpush.bf16.msra.mxu0 %v1608
    %2474 = vmatpush.bf16.msra.mxu0 %v1604
    %2475 = vmatpush.bf16.msra.mxu0 %v1600
    %2476 = vmatmul.bf16.gmra.mxu0 %v2454
    %v2477 = vpop.f32.mrf.mxu0
    %v2478 = vadd.f32 0.0, %v2477
    %v2479 = vpop.f32.mrf.mxu0
    %2480 = vdwg.mxu0
    %2481 = vmatpush.bf16.msra.mxu0 %v1629
    %2482 = vmatpush.bf16.msra.mxu0 %v1625
    %2483 = vmatpush.bf16.msra.mxu0 %v1621
    %2484 = vmatpush.bf16.msra.mxu0 %v1617
    %2485 = vmatpush.bf16.msra.mxu0 %v1613
    %2486 = vmatpush.bf16.msra.mxu0 %v1609
    %2487 = vmatpush.bf16.msra.mxu0 %v1605
    %2488 = vmatpush.bf16.msra.mxu0 %v1601
    %2489 = vmatmul.bf16.gmra.mxu0 %v2454
    %v2490 = vpop.f32.mrf.mxu0
    %v2491 = vadd.f32 0.0, %v2490
    %v2492 = vpop.f32.mrf.mxu0
    %2493 = vdwg.mxu0
    %2494 = vmatpush.bf16.msra.mxu0 %v1630
    %2495 = vmatpush.bf16.msra.mxu0 %v1626
    %2496 = vmatpush.bf16.msra.mxu0 %v1622
    %2497 = vmatpush.bf16.msra.mxu0 %v1618
    %2498 = vmatpush.bf16.msra.mxu0 %v1614
    %2499 = vmatpush.bf16.msra.mxu0 %v1610
    %2500 = vmatpush.bf16.msra.mxu0 %v1606
    %2501 = vmatpush.bf16.msra.mxu0 %v1602
    %2502 = vmatmul.bf16.gmra.mxu0 %v2454
    %v2503 = vpop.f32.mrf.mxu0
    %v2504 = vadd.f32 0.0, %v2503
    %v2505 = vpop.f32.mrf.mxu0
    %2506 = vdwg.mxu0
    %v2511 = vrot.slane %v2465, 4
    %v2512 = vrot.slane %v2478, 4
    %v2513 = vrot.slane %v2491, 4
    %v2514 = vrot.slane %v2504, 4
    %v2519 = vadd.f32 %v2450, %v2511
    %v2520 = vadd.f32 %v2451, %v2512
    %v2521 = vadd.f32 %v2452, %v2513
    %v2522 = vadd.f32 %v2453, %v2514
    %v2523 = vld [vmem:[#allocation2 + $0x60] sm:$0xc]
    %v2524 = vld [vmem:[#allocation2 + $0x68] sm:$0xc]
    %v2525 = vld [vmem:[#allocation2 + $0x70] sm:$0xc]
    %v2526 = vld [vmem:[#allocation2 + $0x78] sm:$0xc]
    %v2527 = vpack.c.bf16 %v2439, %v2439
    %2528 = vmatpush.bf16.msra.mxu0 %v1879
    %2529 = vmatpush.bf16.msra.mxu0 %v1875
    %2530 = vmatpush.bf16.msra.mxu0 %v1871
    %2531 = vmatpush.bf16.msra.mxu0 %v1867
    %2532 = vmatpush.bf16.msra.mxu0 %v1863
    %2533 = vmatpush.bf16.msra.mxu0 %v1859
    %2534 = vmatpush.bf16.msra.mxu0 %v1855
    %2535 = vmatpush.bf16.msra.mxu0 %v1851
    %2536 = vmatmul.bf16.gmra.mxu0 %v2527
    %v2537 = vpop.f32.mrf.mxu0
    %v2538 = vadd.f32 0.0, %v2537
    %v2539 = vpop.f32.mrf.mxu0
    %2540 = vdwg.mxu0
    %2541 = vmatpush.bf16.msra.mxu0 %v1880
    %2542 = vmatpush.bf16.msra.mxu0 %v1876
    %2543 = vmatpush.bf16.msra.mxu0 %v1872
    %2544 = vmatpush.bf16.msra.mxu0 %v1868
    %2545 = vmatpush.bf16.msra.mxu0 %v1864
    %2546 = vmatpush.bf16.msra.mxu0 %v1860
    %2547 = vmatpush.bf16.msra.mxu0 %v1856
    %2548 = vmatpush.bf16.msra.mxu0 %v1852
    %2549 = vmatmul.bf16.gmra.mxu0 %v2527
    %v2550 = vpop.f32.mrf.mxu0
    %v2551 = vadd.f32 0.0, %v2550
    %v2552 = vpop.f32.mrf.mxu0
    %2553 = vdwg.mxu0
    %2554 = vmatpush.bf16.msra.mxu0 %v1881
    %2555 = vmatpush.bf16.msra.mxu0 %v1877
    %2556 = vmatpush.bf16.msra.mxu0 %v1873
    %2557 = vmatpush.bf16.msra.mxu0 %v1869
    %2558 = vmatpush.bf16.msra.mxu0 %v1865
    %2559 = vmatpush.bf16.msra.mxu0 %v1861
    %2560 = vmatpush.bf16.msra.mxu0 %v1857
    %2561 = vmatpush.bf16.msra.mxu0 %v1853
    %2562 = vmatmul.bf16.gmra.mxu0 %v2527
    %v2563 = vpop.f32.mrf.mxu0
    %v2564 = vadd.f32 0.0, %v2563
    %v2565 = vpop.f32.mrf.mxu0
    %2566 = vdwg.mxu0
    %2567 = vmatpush.bf16.msra.mxu0 %v1882
    %2568 = vmatpush.bf16.msra.mxu0 %v1878
    %2569 = vmatpush.bf16.msra.mxu0 %v1874
    %2570 = vmatpush.bf16.msra.mxu0 %v1870
    %2571 = vmatpush.bf16.msra.mxu0 %v1866
    %2572 = vmatpush.bf16.msra.mxu0 %v1862
    %2573 = vmatpush.bf16.msra.mxu0 %v1858
    %2574 = vmatpush.bf16.msra.mxu0 %v1854
    %2575 = vmatmul.bf16.gmra.mxu0 %v2527
    %v2576 = vpop.f32.mrf.mxu0
    %v2577 = vadd.f32 0.0, %v2576
    %v2578 = vpop.f32.mrf.mxu0
    %2579 = vdwg.mxu0
    %v2584 = vrot.slane %v2538, 6
    %v2585 = vrot.slane %v2551, 6
    %v2586 = vrot.slane %v2564, 6
    %v2587 = vrot.slane %v2577, 6
    %v2592 = vadd.f32 %v2523, %v2584
    %v2593 = vadd.f32 %v2524, %v2585
    %v2594 = vadd.f32 %v2525, %v2586
    %v2595 = vadd.f32 %v2526, %v2587
    %v2596 = vxor.u32 %v2519, 2147483648
    %v2597 = vmul.f32 %v2596, 1.442695
    %v2598 = vpow.pop %v2597
    %v2599 = vadd.f32 %v2598, 1.0
    %v2600 = vrcp.pop %v2599
    %v2601 = vmul.f32 %v2599, %v2600
    %v2602 = vsub.f32 1.0, %v2601
    %v2603 = vmul.f32 %v2600, %v2602
    %v2604 = vadd.f32 %v2600, %v2603
    %vm2605 = vweird.f32 %v2599
    %vm2606 = vweird.f32 %v2600
    %vm2607 = vmor %vm2605, %vm2606
    %v2608 = vsel %vm2607, %v2600, %v2604
    %v2609 = vand.u32 2147483647, %v2599
    %vm2610 = vcmp.eq.f32.partialorder %v2609, 8.507059e+37
    %v2611 = vand.u32 %v2599, 2147483648
    %v2612 = vor.u32 1.1754944e-38, %v2611
    %v2613 = vsel %vm2610, %v2612, %v2608
    %v2614 = vmul.f32 1.0, %v2613
    %v2615 = vxor.u32 %v2520, 2147483648
    %v2616 = vmul.f32 %v2615, 1.442695
    %v2617 = vpow.pop %v2616
    %v2618 = vadd.f32 %v2617, 1.0
    %v2619 = vrcp.pop %v2618
    %v2620 = vmul.f32 %v2618, %v2619
    %v2621 = vsub.f32 1.0, %v2620
    %v2622 = vmul.f32 %v2619, %v2621
    %v2623 = vadd.f32 %v2619, %v2622
    %vm2624 = vweird.f32 %v2618
    %vm2625 = vweird.f32 %v2619
    %vm2626 = vmor %vm2624, %vm2625
    %v2627 = vsel %vm2626, %v2619, %v2623
    %v2628 = vand.u32 2147483647, %v2618
    %vm2629 = vcmp.eq.f32.partialorder %v2628, 8.507059e+37
    %v2630 = vand.u32 %v2618, 2147483648
    %v2631 = vor.u32 1.1754944e-38, %v2630
    %v2632 = vsel %vm2629, %v2631, %v2627
    %v2633 = vmul.f32 1.0, %v2632
    %v2634 = vtanh.pop %v2521
    %v2635 = vxor.u32 %v2522, 2147483648
    %v2636 = vmul.f32 %v2635, 1.442695
    %v2637 = vpow.pop %v2636
    %v2638 = vadd.f32 %v2637, 1.0
    %v2639 = vrcp.pop %v2638
    %v2640 = vmul.f32 %v2638, %v2639
    %v2641 = vsub.f32 1.0, %v2640
    %v2642 = vmul.f32 %v2639, %v2641
    %v2643 = vadd.f32 %v2639, %v2642
    %vm2644 = vweird.f32 %v2638
    %vm2645 = vweird.f32 %v2639
    %vm2646 = vmor %vm2644, %vm2645
    %v2647 = vsel %vm2646, %v2639, %v2643
    %v2648 = vand.u32 2147483647, %v2638
    %vm2649 = vcmp.eq.f32.partialorder %v2648, 8.507059e+37
    %v2650 = vand.u32 %v2638, 2147483648
    %v2651 = vor.u32 1.1754944e-38, %v2650
    %v2652 = vsel %vm2649, %v2651, %v2647
    %v2653 = vmul.f32 1.0, %v2652
    %v2654 = vxor.u32 %v2592, 2147483648
    %v2655 = vmul.f32 %v2654, 1.442695
    %v2656 = vpow.pop %v2655
    %v2657 = vadd.f32 %v2656, 1.0
    %v2658 = vrcp.pop %v2657
    %v2659 = vmul.f32 %v2657, %v2658
    %v2660 = vsub.f32 1.0, %v2659
    %v2661 = vmul.f32 %v2658, %v2660
    %v2662 = vadd.f32 %v2658, %v2661
    %vm2663 = vweird.f32 %v2657
    %vm2664 = vweird.f32 %v2658
    %vm2665 = vmor %vm2663, %vm2664
    %v2666 = vsel %vm2665, %v2658, %v2662
    %v2667 = vand.u32 2147483647, %v2657
    %vm2668 = vcmp.eq.f32.partialorder %v2667, 8.507059e+37
    %v2669 = vand.u32 %v2657, 2147483648
    %v2670 = vor.u32 1.1754944e-38, %v2669
    %v2671 = vsel %vm2668, %v2670, %v2666
    %v2672 = vmul.f32 1.0, %v2671
    %v2673 = vxor.u32 %v2593, 2147483648
    %v2674 = vmul.f32 %v2673, 1.442695
    %v2675 = vpow.pop %v2674
    %v2676 = vadd.f32 %v2675, 1.0
    %v2677 = vrcp.pop %v2676
    %v2678 = vmul.f32 %v2676, %v2677
    %v2679 = vsub.f32 1.0, %v2678
    %v2680 = vmul.f32 %v2677, %v2679
    %v2681 = vadd.f32 %v2677, %v2680
    %vm2682 = vweird.f32 %v2676
    %vm2683 = vweird.f32 %v2677
    %vm2684 = vmor %vm2682, %vm2683
    %v2685 = vsel %vm2684, %v2677, %v2681
    %v2686 = vand.u32 2147483647, %v2676
    %vm2687 = vcmp.eq.f32.partialorder %v2686, 8.507059e+37
    %v2688 = vand.u32 %v2676, 2147483648
    %v2689 = vor.u32 1.1754944e-38, %v2688
    %v2690 = vsel %vm2687, %v2689, %v2685
    %v2691 = vmul.f32 1.0, %v2690
    %v2692 = vtanh.pop %v2594
    %v2693 = vxor.u32 %v2595, 2147483648
    %v2694 = vmul.f32 %v2693, 1.442695
    %v2695 = vpow.pop %v2694
    %v2696 = vadd.f32 %v2695, 1.0
    %v2697 = vrcp.pop %v2696
    %v2698 = vmul.f32 %v2696, %v2697
    %v2699 = vsub.f32 1.0, %v2698
    %v2700 = vmul.f32 %v2697, %v2699
    %v2701 = vadd.f32 %v2697, %v2700
    %vm2702 = vweird.f32 %v2696
    %vm2703 = vweird.f32 %v2697
    %vm2704 = vmor %vm2702, %vm2703
    %v2705 = vsel %vm2704, %v2697, %v2701
    %v2706 = vand.u32 2147483647, %v2696
    %vm2707 = vcmp.eq.f32.partialorder %v2706, 8.507059e+37
    %v2708 = vand.u32 %v2696, 2147483648
    %v2709 = vor.u32 1.1754944e-38, %v2708
    %v2710 = vsel %vm2707, %v2709, %v2705
    %v2711 = vmul.f32 1.0, %v2710
    %v2713 = vrot.slane %v2432, 4
    %v2715 = vmul.f32 %v2633, %v2713
    %v2716 = vmul.f32 %v2614, %v2634
    %v2717 = vadd.f32 %v2715, %v2716
    %v2718 = vtanh.pop %v2717
    %v2719 = vmul.f32 %v2653, %v2718
    %v2721 = vrot.slane %v2445, 6
    %v2723 = vmul.f32 %v2691, %v2721
    %v2724 = vmul.f32 %v2672, %v2692
    %v2725 = vadd.f32 %v2723, %v2724
    %v2726 = vtanh.pop %v2725
    %v2727 = vmul.f32 %v2711, %v2726
    %s2728 = scalar_lea.vmem %s5, 4
    %v2729 = vld [vmem:[%s2728] sm:$0x3]
    %s2730 = scalar_lea.vmem %s5, 10
    %v2731 = vld [vmem:[%s2730] sm:$0x3]
    %s2732 = scalar_lea.vmem %s7, 10
    %v2733 = vld [vmem:[%s2732] sm:$0x3]
    %v2735 = vrot.slane %v2719, 4
    %v2737 = vmul.f32 %v2729, %v2735
    %v2738 = vsub.f32 1.0, %v2729
    %v2739 = vmul.f32 %v2738, %v2426
    %v2740 = vadd.f32 %v2737, %v2739
    %v2742 = vrot.slane %v2717, 4
    %v2744 = vmul.f32 %v2729, %v2742
    %v2745 = vmul.f32 %v2738, %v2432
    %v2746 = vadd.f32 %v2744, %v2745
    %v2748 = vrot.slane %v2727, 2
    %v2750 = vmul.f32 %v2731, %v2748
    %v2751 = vsub.f32 1.0, %v2731
    %v2752 = vmul.f32 %v2751, %v2439
    %v2753 = vadd.f32 %v2750, %v2752
    %v2755 = vrot.slane %v2725, 2
    %v2757 = vmul.f32 %v2731, %v2755
    %v2758 = vmul.f32 %v2751, %v2445
    %v2759 = vadd.f32 %v2757, %v2758
    %v2760 = vmul.f32 %v2733, %v2753
    %v2761 = vsub.f32 1.0, %v2733
    %v2762 = vmul.f32 %v2761, %v2449
    %v2763 = vadd.f32 %v2760, %v2762
    %v2764 = vld [vmem:[#allocation2] sm:$0xc0]
    %v2765 = vld [vmem:[#allocation2 + $0x8] sm:$0xc0]
    %v2766 = vld [vmem:[#allocation2 + $0x10] sm:$0xc0]
    %v2767 = vld [vmem:[#allocation2 + $0x18] sm:$0xc0]
    %v2768 = vpack.c.bf16 %v2740, %v2740
    %2769 = vmatpush.bf16.msra.mxu0 %v1627
    %2770 = vmatpush.bf16.msra.mxu0 %v1623
    %2771 = vmatpush.bf16.msra.mxu0 %v1619
    %2772 = vmatpush.bf16.msra.mxu0 %v1615
    %2773 = vmatpush.bf16.msra.mxu0 %v1611
    %2774 = vmatpush.bf16.msra.mxu0 %v1607
    %2775 = vmatpush.bf16.msra.mxu0 %v1603
    %2776 = vmatpush.bf16.msra.mxu0 %v1599
    %2777 = vmatmul.bf16.gmra.mxu0 %v2768
    %v2778 = vpop.f32.mrf.mxu0
    %v2779 = vadd.f32 0.0, %v2778
    %v2780 = vpop.f32.mrf.mxu0
    %2781 = vdwg.mxu0
    %2782 = vmatpush.bf16.msra.mxu0 %v1628
    %2783 = vmatpush.bf16.msra.mxu0 %v1624
    %2784 = vmatpush.bf16.msra.mxu0 %v1620
    %2785 = vmatpush.bf16.msra.mxu0 %v1616
    %2786 = vmatpush.bf16.msra.mxu0 %v1612
    %2787 = vmatpush.bf16.msra.mxu0 %v1608
    %2788 = vmatpush.bf16.msra.mxu0 %v1604
    %2789 = vmatpush.bf16.msra.mxu0 %v1600
    %2790 = vmatmul.bf16.gmra.mxu0 %v2768
    %v2791 = vpop.f32.mrf.mxu0
    %v2792 = vadd.f32 0.0, %v2791
    %v2793 = vpop.f32.mrf.mxu0
    %2794 = vdwg.mxu0
    %2795 = vmatpush.bf16.msra.mxu0 %v1629
    %2796 = vmatpush.bf16.msra.mxu0 %v1625
    %2797 = vmatpush.bf16.msra.mxu0 %v1621
    %2798 = vmatpush.bf16.msra.mxu0 %v1617
    %2799 = vmatpush.bf16.msra.mxu0 %v1613
    %2800 = vmatpush.bf16.msra.mxu0 %v1609
    %2801 = vmatpush.bf16.msra.mxu0 %v1605
    %2802 = vmatpush.bf16.msra.mxu0 %v1601
    %2803 = vmatmul.bf16.gmra.mxu0 %v2768
    %v2804 = vpop.f32.mrf.mxu0
    %v2805 = vadd.f32 0.0, %v2804
    %v2806 = vpop.f32.mrf.mxu0
    %2807 = vdwg.mxu0
    %2808 = vmatpush.bf16.msra.mxu0 %v1630
    %2809 = vmatpush.bf16.msra.mxu0 %v1626
    %2810 = vmatpush.bf16.msra.mxu0 %v1622
    %2811 = vmatpush.bf16.msra.mxu0 %v1618
    %2812 = vmatpush.bf16.msra.mxu0 %v1614
    %2813 = vmatpush.bf16.msra.mxu0 %v1610
    %2814 = vmatpush.bf16.msra.mxu0 %v1606
    %2815 = vmatpush.bf16.msra.mxu0 %v1602
    %2816 = vmatmul.bf16.gmra.mxu0 %v2768
    %v2817 = vpop.f32.mrf.mxu0
    %v2818 = vadd.f32 0.0, %v2817
    %v2819 = vpop.f32.mrf.mxu0
    %2820 = vdwg.mxu0
    %v2825 = vrot.slane %v2779, 2
    %v2826 = vrot.slane %v2792, 2
    %v2827 = vrot.slane %v2805, 2
    %v2828 = vrot.slane %v2818, 2
    %v2833 = vadd.f32 %v2764, %v2825
    %v2834 = vadd.f32 %v2765, %v2826
    %v2835 = vadd.f32 %v2766, %v2827
    %v2836 = vadd.f32 %v2767, %v2828
    %v2837 = vld [vmem:[#allocation2 + $0x60] sm:$0x3]
    %v2838 = vld [vmem:[#allocation2 + $0x68] sm:$0x3]
    %v2839 = vld [vmem:[#allocation2 + $0x70] sm:$0x3]
    %v2840 = vld [vmem:[#allocation2 + $0x78] sm:$0x3]
    %v2841 = vpack.c.bf16 %v2753, %v2753
    %2842 = vmatpush.bf16.msra.mxu0 %v1879
    %2843 = vmatpush.bf16.msra.mxu0 %v1875
    %2844 = vmatpush.bf16.msra.mxu0 %v1871
    %2845 = vmatpush.bf16.msra.mxu0 %v1867
    %2846 = vmatpush.bf16.msra.mxu0 %v1863
    %2847 = vmatpush.bf16.msra.mxu0 %v1859
    %2848 = vmatpush.bf16.msra.mxu0 %v1855
    %2849 = vmatpush.bf16.msra.mxu0 %v1851
    %2850 = vmatmul.bf16.gmra.mxu0 %v2841
    %v2851 = vpop.f32.mrf.mxu0
    %v2852 = vadd.f32 0.0, %v2851
    %v2853 = vpop.f32.mrf.mxu0
    %2854 = vdwg.mxu0
    %2855 = vmatpush.bf16.msra.mxu0 %v1880
    %2856 = vmatpush.bf16.msra.mxu0 %v1876
    %2857 = vmatpush.bf16.msra.mxu0 %v1872
    %2858 = vmatpush.bf16.msra.mxu0 %v1868
    %2859 = vmatpush.bf16.msra.mxu0 %v1864
    %2860 = vmatpush.bf16.msra.mxu0 %v1860
    %2861 = vmatpush.bf16.msra.mxu0 %v1856
    %2862 = vmatpush.bf16.msra.mxu0 %v1852
    %2863 = vmatmul.bf16.gmra.mxu0 %v2841
    %v2864 = vpop.f32.mrf.mxu0
    %v2865 = vadd.f32 0.0, %v2864
    %v2866 = vpop.f32.mrf.mxu0
    %2867 = vdwg.mxu0
    %2868 = vmatpush.bf16.msra.mxu0 %v1881
    %2869 = vmatpush.bf16.msra.mxu0 %v1877
    %2870 = vmatpush.bf16.msra.mxu0 %v1873
    %2871 = vmatpush.bf16.msra.mxu0 %v1869
    %2872 = vmatpush.bf16.msra.mxu0 %v1865
    %2873 = vmatpush.bf16.msra.mxu0 %v1861
    %2874 = vmatpush.bf16.msra.mxu0 %v1857
    %2875 = vmatpush.bf16.msra.mxu0 %v1853
    %2876 = vmatmul.bf16.gmra.mxu0 %v2841
    %v2877 = vpop.f32.mrf.mxu0
    %v2878 = vadd.f32 0.0, %v2877
    %v2879 = vpop.f32.mrf.mxu0
    %2880 = vdwg.mxu0
    %2881 = vmatpush.bf16.msra.mxu0 %v1882
    %2882 = vmatpush.bf16.msra.mxu0 %v1878
    %2883 = vmatpush.bf16.msra.mxu0 %v1874
    %2884 = vmatpush.bf16.msra.mxu0 %v1870
    %2885 = vmatpush.bf16.msra.mxu0 %v1866
    %2886 = vmatpush.bf16.msra.mxu0 %v1862
    %2887 = vmatpush.bf16.msra.mxu0 %v1858
    %2888 = vmatpush.bf16.msra.mxu0 %v1854
    %2889 = vmatmul.bf16.gmra.mxu0 %v2841
    %v2890 = vpop.f32.mrf.mxu0
    %v2891 = vadd.f32 0.0, %v2890
    %v2892 = vpop.f32.mrf.mxu0
    %2893 = vdwg.mxu0
    %v2894 = vadd.f32 %v2837, %v2852
    %v2895 = vadd.f32 %v2838, %v2865
    %v2896 = vadd.f32 %v2839, %v2878
    %v2897 = vadd.f32 %v2840, %v2891
    %v2898 = vxor.u32 %v2833, 2147483648
    %v2899 = vmul.f32 %v2898, 1.442695
    %v2900 = vpow.pop %v2899
    %v2901 = vadd.f32 %v2900, 1.0
    %v2902 = vrcp.pop %v2901
    %v2903 = vmul.f32 %v2901, %v2902
    %v2904 = vsub.f32 1.0, %v2903
    %v2905 = vmul.f32 %v2902, %v2904
    %v2906 = vadd.f32 %v2902, %v2905
    %vm2907 = vweird.f32 %v2901
    %vm2908 = vweird.f32 %v2902
    %vm2909 = vmor %vm2907, %vm2908
    %v2910 = vsel %vm2909, %v2902, %v2906
    %v2911 = vand.u32 2147483647, %v2901
    %vm2912 = vcmp.eq.f32.partialorder %v2911, 8.507059e+37
    %v2913 = vand.u32 %v2901, 2147483648
    %v2914 = vor.u32 1.1754944e-38, %v2913
    %v2915 = vsel %vm2912, %v2914, %v2910
    %v2916 = vmul.f32 1.0, %v2915
    %v2917 = vxor.u32 %v2834, 2147483648
    %v2918 = vmul.f32 %v2917, 1.442695
    %v2919 = vpow.pop %v2918
    %v2920 = vadd.f32 %v2919, 1.0
    %v2921 = vrcp.pop %v2920
    %v2922 = vmul.f32 %v2920, %v2921
    %v2923 = vsub.f32 1.0, %v2922
    %v2924 = vmul.f32 %v2921, %v2923
    %v2925 = vadd.f32 %v2921, %v2924
    %vm2926 = vweird.f32 %v2920
    %vm2927 = vweird.f32 %v2921
    %vm2928 = vmor %vm2926, %vm2927
    %v2929 = vsel %vm2928, %v2921, %v2925
    %v2930 = vand.u32 2147483647, %v2920
    %vm2931 = vcmp.eq.f32.partialorder %v2930, 8.507059e+37
    %v2932 = vand.u32 %v2920, 2147483648
    %v2933 = vor.u32 1.1754944e-38, %v2932
    %v2934 = vsel %vm2931, %v2933, %v2929
    %v2935 = vmul.f32 1.0, %v2934
    %v2936 = vtanh.pop %v2835
    %v2937 = vxor.u32 %v2836, 2147483648
    %v2938 = vmul.f32 %v2937, 1.442695
    %v2939 = vpow.pop %v2938
    %v2940 = vadd.f32 %v2939, 1.0
    %v2941 = vrcp.pop %v2940
    %v2942 = vmul.f32 %v2940, %v2941
    %v2943 = vsub.f32 1.0, %v2942
    %v2944 = vmul.f32 %v2941, %v2943
    %v2945 = vadd.f32 %v2941, %v2944
    %vm2946 = vweird.f32 %v2940
    %vm2947 = vweird.f32 %v2941
    %vm2948 = vmor %vm2946, %vm2947
    %v2949 = vsel %vm2948, %v2941, %v2945
    %v2950 = vand.u32 2147483647, %v2940
    %vm2951 = vcmp.eq.f32.partialorder %v2950, 8.507059e+37
    %v2952 = vand.u32 %v2940, 2147483648
    %v2953 = vor.u32 1.1754944e-38, %v2952
    %v2954 = vsel %vm2951, %v2953, %v2949
    %v2955 = vmul.f32 1.0, %v2954
    %v2956 = vxor.u32 %v2894, 2147483648
    %v2957 = vmul.f32 %v2956, 1.442695
    %v2958 = vpow.pop %v2957
    %v2959 = vadd.f32 %v2958, 1.0
    %v2960 = vrcp.pop %v2959
    %v2961 = vmul.f32 %v2959, %v2960
    %v2962 = vsub.f32 1.0, %v2961
    %v2963 = vmul.f32 %v2960, %v2962
    %v2964 = vadd.f32 %v2960, %v2963
    %vm2965 = vweird.f32 %v2959
    %vm2966 = vweird.f32 %v2960
    %vm2967 = vmor %vm2965, %vm2966
    %v2968 = vsel %vm2967, %v2960, %v2964
    %v2969 = vand.u32 2147483647, %v2959
    %vm2970 = vcmp.eq.f32.partialorder %v2969, 8.507059e+37
    %v2971 = vand.u32 %v2959, 2147483648
    %v2972 = vor.u32 1.1754944e-38, %v2971
    %v2973 = vsel %vm2970, %v2972, %v2968
    %v2974 = vmul.f32 1.0, %v2973
    %v2975 = vxor.u32 %v2895, 2147483648
    %v2976 = vmul.f32 %v2975, 1.442695
    %v2977 = vpow.pop %v2976
    %v2978 = vadd.f32 %v2977, 1.0
    %v2979 = vrcp.pop %v2978
    %v2980 = vmul.f32 %v2978, %v2979
    %v2981 = vsub.f32 1.0, %v2980
    %v2982 = vmul.f32 %v2979, %v2981
    %v2983 = vadd.f32 %v2979, %v2982
    %vm2984 = vweird.f32 %v2978
    %vm2985 = vweird.f32 %v2979
    %vm2986 = vmor %vm2984, %vm2985
    %v2987 = vsel %vm2986, %v2979, %v2983
    %v2988 = vand.u32 2147483647, %v2978
    %vm2989 = vcmp.eq.f32.partialorder %v2988, 8.507059e+37
    %v2990 = vand.u32 %v2978, 2147483648
    %v2991 = vor.u32 1.1754944e-38, %v2990
    %v2992 = vsel %vm2989, %v2991, %v2987
    %v2993 = vmul.f32 1.0, %v2992
    %v2994 = vtanh.pop %v2896
    %v2995 = vxor.u32 %v2897, 2147483648
    %v2996 = vmul.f32 %v2995, 1.442695
    %v2997 = vpow.pop %v2996
    %v2998 = vadd.f32 %v2997, 1.0
    %v2999 = vrcp.pop %v2998
    %v3000 = vmul.f32 %v2998, %v2999
    %v3001 = vsub.f32 1.0, %v3000
    %v3002 = vmul.f32 %v2999, %v3001
    %v3003 = vadd.f32 %v2999, %v3002
    %vm3004 = vweird.f32 %v2998
    %vm3005 = vweird.f32 %v2999
    %vm3006 = vmor %vm3004, %vm3005
    %v3007 = vsel %vm3006, %v2999, %v3003
    %v3008 = vand.u32 2147483647, %v2998
    %vm3009 = vcmp.eq.f32.partialorder %v3008, 8.507059e+37
    %v3010 = vand.u32 %v2998, 2147483648
    %v3011 = vor.u32 1.1754944e-38, %v3010
    %v3012 = vsel %vm3009, %v3011, %v3007
    %v3013 = vmul.f32 1.0, %v3012
    %v3015 = vrot.slane %v2746, 2
    %v3017 = vmul.f32 %v2935, %v3015
    %v3018 = vmul.f32 %v2916, %v2936
    %v3019 = vadd.f32 %v3017, %v3018
    %v3020 = vtanh.pop %v3019
    %v3021 = vmul.f32 %v2955, %v3020
    %v3022 = vmul.f32 %v2993, %v2759
    %v3023 = vmul.f32 %v2974, %v2994
    %v3024 = vadd.f32 %v3022, %v3023
    %v3025 = vtanh.pop %v3024
    %v3026 = vmul.f32 %v3013, %v3025
    %s3027 = scalar_lea.vmem %s5, 6
    %v3028 = vld [vmem:[%s3027] sm:$0x3]
    %s3029 = scalar_lea.vmem %s5, 8
    %v3030 = vld [vmem:[%s3029] sm:$0x3]
    %s3031 = scalar_lea.vmem %s7, 8
    %v3032 = vld [vmem:[%s3031] sm:$0x3]
    %v3034 = vrot.slane %v3021, 6
    %v3036 = vmul.f32 %v3028, %v3034
    %v3037 = vsub.f32 1.0, %v3028
    %v3038 = vmul.f32 %v3037, %v2740
    %v3039 = vadd.f32 %v3036, %v3038
    %v3041 = vrot.slane %v3019, 6
    %v3043 = vmul.f32 %v3028, %v3041
    %v3044 = vmul.f32 %v3037, %v2746
    %v3045 = vadd.f32 %v3043, %v3044
    %v3046 = vmul.f32 %v3030, %v3026
    %v3047 = vsub.f32 1.0, %v3030
    %v3048 = vmul.f32 %v3047, %v2753
    %v3049 = vadd.f32 %v3046, %v3048
    %v3050 = vmul.f32 %v3030, %v3024
    %v3051 = vmul.f32 %v3047, %v2759
    %v3052 = vadd.f32 %v3050, %v3051
    %v3053 = vmul.f32 %v3032, %v3049
    %v3054 = vsub.f32 1.0, %v3032
    %v3055 = vmul.f32 %v3054, %v2763
    %v3056 = vadd.f32 %v3053, %v3055
    %v3057 = vld [vmem:[#allocation2 + $0x40] sm:$0x3]
    %v3058 = vld [vmem:[#allocation2 + $0x48] sm:$0x3]
    %v3059 = vld [vmem:[#allocation2 + $0x50] sm:$0x3]
    %v3060 = vld [vmem:[#allocation2 + $0x58] sm:$0x3]
    %v3061 = vpack.c.bf16 %v3039, %v3039
    %3062 = vmatpush.bf16.msra.mxu0 %v1627
    %3063 = vmatpush.bf16.msra.mxu0 %v1623
    %3064 = vmatpush.bf16.msra.mxu0 %v1619
    %3065 = vmatpush.bf16.msra.mxu0 %v1615
    %3066 = vmatpush.bf16.msra.mxu0 %v1611
    %3067 = vmatpush.bf16.msra.mxu0 %v1607
    %3068 = vmatpush.bf16.msra.mxu0 %v1603
    %3069 = vmatpush.bf16.msra.mxu0 %v1599
    %3070 = vmatmul.bf16.gmra.mxu0 %v3061
    %v3071 = vpop.f32.mrf.mxu0
    %v3072 = vadd.f32 0.0, %v3071
    %v3073 = vpop.f32.mrf.mxu0
    %3074 = vdwg.mxu0
    %3075 = vmatpush.bf16.msra.mxu0 %v1628
    %3076 = vmatpush.bf16.msra.mxu0 %v1624
    %3077 = vmatpush.bf16.msra.mxu0 %v1620
    %3078 = vmatpush.bf16.msra.mxu0 %v1616
    %3079 = vmatpush.bf16.msra.mxu0 %v1612
    %3080 = vmatpush.bf16.msra.mxu0 %v1608
    %3081 = vmatpush.bf16.msra.mxu0 %v1604
    %3082 = vmatpush.bf16.msra.mxu0 %v1600
    %3083 = vmatmul.bf16.gmra.mxu0 %v3061
    %v3084 = vpop.f32.mrf.mxu0
    %v3085 = vadd.f32 0.0, %v3084
    %v3086 = vpop.f32.mrf.mxu0
    %3087 = vdwg.mxu0
    %3088 = vmatpush.bf16.msra.mxu0 %v1629
    %3089 = vmatpush.bf16.msra.mxu0 %v1625
    %3090 = vmatpush.bf16.msra.mxu0 %v1621
    %3091 = vmatpush.bf16.msra.mxu0 %v1617
    %3092 = vmatpush.bf16.msra.mxu0 %v1613
    %3093 = vmatpush.bf16.msra.mxu0 %v1609
    %3094 = vmatpush.bf16.msra.mxu0 %v1605
    %3095 = vmatpush.bf16.msra.mxu0 %v1601
    %3096 = vmatmul.bf16.gmra.mxu0 %v3061
    %v3097 = vpop.f32.mrf.mxu0
    %v3098 = vadd.f32 0.0, %v3097
    %v3099 = vpop.f32.mrf.mxu0
    %3100 = vdwg.mxu0
    %3101 = vmatpush.bf16.msra.mxu0 %v1630
    %3102 = vmatpush.bf16.msra.mxu0 %v1626
    %3103 = vmatpush.bf16.msra.mxu0 %v1622
    %3104 = vmatpush.bf16.msra.mxu0 %v1618
    %3105 = vmatpush.bf16.msra.mxu0 %v1614
    %3106 = vmatpush.bf16.msra.mxu0 %v1610
    %3107 = vmatpush.bf16.msra.mxu0 %v1606
    %3108 = vmatpush.bf16.msra.mxu0 %v1602
    %3109 = vmatmul.bf16.gmra.mxu0 %v3061
    %v3110 = vpop.f32.mrf.mxu0
    %v3111 = vadd.f32 0.0, %v3110
    %v3112 = vpop.f32.mrf.mxu0
    %3113 = vdwg.mxu0
    %v3114 = vadd.f32 %v3057, %v3072
    %v3115 = vadd.f32 %v3058, %v3085
    %v3116 = vadd.f32 %v3059, %v3098
    %v3117 = vadd.f32 %v3060, %v3111
    %v3118 = vld [vmem:[#allocation2 + $0x20] sm:$0xc0]
    %v3119 = vld [vmem:[#allocation2 + $0x28] sm:$0xc0]
    %v3120 = vld [vmem:[#allocation2 + $0x30] sm:$0xc0]
    %v3121 = vld [vmem:[#allocation2 + $0x38] sm:$0xc0]
    %v3122 = vpack.c.bf16 %v3049, %v3049
    %3123 = vmatpush.bf16.msra.mxu0 %v1879
    %3124 = vmatpush.bf16.msra.mxu0 %v1875
    %3125 = vmatpush.bf16.msra.mxu0 %v1871
    %3126 = vmatpush.bf16.msra.mxu0 %v1867
    %3127 = vmatpush.bf16.msra.mxu0 %v1863
    %3128 = vmatpush.bf16.msra.mxu0 %v1859
    %3129 = vmatpush.bf16.msra.mxu0 %v1855
    %3130 = vmatpush.bf16.msra.mxu0 %v1851
    %3131 = vmatmul.bf16.gmra.mxu0 %v3122
    %v3132 = vpop.f32.mrf.mxu0
    %v3133 = vadd.f32 0.0, %v3132
    %v3134 = vpop.f32.mrf.mxu0
    %3135 = vdwg.mxu0
    %3136 = vmatpush.bf16.msra.mxu0 %v1880
    %3137 = vmatpush.bf16.msra.mxu0 %v1876
    %3138 = vmatpush.bf16.msra.mxu0 %v1872
    %3139 = vmatpush.bf16.msra.mxu0 %v1868
    %3140 = vmatpush.bf16.msra.mxu0 %v1864
    %3141 = vmatpush.bf16.msra.mxu0 %v1860
    %3142 = vmatpush.bf16.msra.mxu0 %v1856
    %3143 = vmatpush.bf16.msra.mxu0 %v1852
    %3144 = vmatmul.bf16.gmra.mxu0 %v3122
    %v3145 = vpop.f32.mrf.mxu0
    %v3146 = vadd.f32 0.0, %v3145
    %v3147 = vpop.f32.mrf.mxu0
    %3148 = vdwg.mxu0
    %3149 = vmatpush.bf16.msra.mxu0 %v1881
    %3150 = vmatpush.bf16.msra.mxu0 %v1877
    %3151 = vmatpush.bf16.msra.mxu0 %v1873
    %3152 = vmatpush.bf16.msra.mxu0 %v1869
    %3153 = vmatpush.bf16.msra.mxu0 %v1865
    %3154 = vmatpush.bf16.msra.mxu0 %v1861
    %3155 = vmatpush.bf16.msra.mxu0 %v1857
    %3156 = vmatpush.bf16.msra.mxu0 %v1853
    %3157 = vmatmul.bf16.gmra.mxu0 %v3122
    %v3158 = vpop.f32.mrf.mxu0
    %v3159 = vadd.f32 0.0, %v3158
    %v3160 = vpop.f32.mrf.mxu0
    %3161 = vdwg.mxu0
    %3162 = vmatpush.bf16.msra.mxu0 %v1882
    %3163 = vmatpush.bf16.msra.mxu0 %v1878
    %3164 = vmatpush.bf16.msra.mxu0 %v1874
    %3165 = vmatpush.bf16.msra.mxu0 %v1870
    %3166 = vmatpush.bf16.msra.mxu0 %v1866
    %3167 = vmatpush.bf16.msra.mxu0 %v1862
    %3168 = vmatpush.bf16.msra.mxu0 %v1858
    %3169 = vmatpush.bf16.msra.mxu0 %v1854
    %3170 = vmatmul.bf16.gmra.mxu0 %v3122
    %v3171 = vpop.f32.mrf.mxu0
    %v3172 = vadd.f32 0.0, %v3171
    %v3173 = vpop.f32.mrf.mxu0
    %3174 = vdwg.mxu0
    %v3179 = vrot.slane %v3133, 2
    %v3180 = vrot.slane %v3146, 2
    %v3181 = vrot.slane %v3159, 2
    %v3182 = vrot.slane %v3172, 2
    %v3187 = vadd.f32 %v3118, %v3179
    %v3188 = vadd.f32 %v3119, %v3180
    %v3189 = vadd.f32 %v3120, %v3181
    %v3190 = vadd.f32 %v3121, %v3182
    %v3191 = vxor.u32 %v3114, 2147483648
    %v3192 = vmul.f32 %v3191, 1.442695
    %v3193 = vpow.pop %v3192
    %v3194 = vadd.f32 %v3193, 1.0
    %v3195 = vrcp.pop %v3194
    %v3196 = vmul.f32 %v3194, %v3195
    %v3197 = vsub.f32 1.0, %v3196
    %v3198 = vmul.f32 %v3195, %v3197
    %v3199 = vadd.f32 %v3195, %v3198
    %vm3200 = vweird.f32 %v3194
    %vm3201 = vweird.f32 %v3195
    %vm3202 = vmor %vm3200, %vm3201
    %v3203 = vsel %vm3202, %v3195, %v3199
    %v3204 = vand.u32 2147483647, %v3194
    %vm3205 = vcmp.eq.f32.partialorder %v3204, 8.507059e+37
    %v3206 = vand.u32 %v3194, 2147483648
    %v3207 = vor.u32 1.1754944e-38, %v3206
    %v3208 = vsel %vm3205, %v3207, %v3203
    %v3209 = vmul.f32 1.0, %v3208
    %v3210 = vxor.u32 %v3115, 2147483648
    %v3211 = vmul.f32 %v3210, 1.442695
    %v3212 = vpow.pop %v3211
    %v3213 = vadd.f32 %v3212, 1.0
    %v3214 = vrcp.pop %v3213
    %v3215 = vmul.f32 %v3213, %v3214
    %v3216 = vsub.f32 1.0, %v3215
    %v3217 = vmul.f32 %v3214, %v3216
    %v3218 = vadd.f32 %v3214, %v3217
    %vm3219 = vweird.f32 %v3213
    %vm3220 = vweird.f32 %v3214
    %vm3221 = vmor %vm3219, %vm3220
    %v3222 = vsel %vm3221, %v3214, %v3218
    %v3223 = vand.u32 2147483647, %v3213
    %vm3224 = vcmp.eq.f32.partialorder %v3223, 8.507059e+37
    %v3225 = vand.u32 %v3213, 2147483648
    %v3226 = vor.u32 1.1754944e-38, %v3225
    %v3227 = vsel %vm3224, %v3226, %v3222
    %v3228 = vmul.f32 1.0, %v3227
    %v3229 = vtanh.pop %v3116
    %v3230 = vxor.u32 %v3117, 2147483648
    %v3231 = vmul.f32 %v3230, 1.442695
    %v3232 = vpow.pop %v3231
    %v3233 = vadd.f32 %v3232, 1.0
    %v3234 = vrcp.pop %v3233
    %v3235 = vmul.f32 %v3233, %v3234
    %v3236 = vsub.f32 1.0, %v3235
    %v3237 = vmul.f32 %v3234, %v3236
    %v3238 = vadd.f32 %v3234, %v3237
    %vm3239 = vweird.f32 %v3233
    %vm3240 = vweird.f32 %v3234
    %vm3241 = vmor %vm3239, %vm3240
    %v3242 = vsel %vm3241, %v3234, %v3238
    %v3243 = vand.u32 2147483647, %v3233
    %vm3244 = vcmp.eq.f32.partialorder %v3243, 8.507059e+37
    %v3245 = vand.u32 %v3233, 2147483648
    %v3246 = vor.u32 1.1754944e-38, %v3245
    %v3247 = vsel %vm3244, %v3246, %v3242
    %v3248 = vmul.f32 1.0, %v3247
    %v3249 = vxor.u32 %v3187, 2147483648
    %v3250 = vmul.f32 %v3249, 1.442695
    %v3251 = vpow.pop %v3250
    %v3252 = vadd.f32 %v3251, 1.0
    %v3253 = vrcp.pop %v3252
    %v3254 = vmul.f32 %v3252, %v3253
    %v3255 = vsub.f32 1.0, %v3254
    %v3256 = vmul.f32 %v3253, %v3255
    %v3257 = vadd.f32 %v3253, %v3256
    %vm3258 = vweird.f32 %v3252
    %vm3259 = vweird.f32 %v3253
    %vm3260 = vmor %vm3258, %vm3259
    %v3261 = vsel %vm3260, %v3253, %v3257
    %v3262 = vand.u32 2147483647, %v3252
    %vm3263 = vcmp.eq.f32.partialorder %v3262, 8.507059e+37
    %v3264 = vand.u32 %v3252, 2147483648
    %v3265 = vor.u32 1.1754944e-38, %v3264
    %v3266 = vsel %vm3263, %v3265, %v3261
    %v3267 = vmul.f32 1.0, %v3266
    %v3268 = vxor.u32 %v3188, 2147483648
    %v3269 = vmul.f32 %v3268, 1.442695
    %v3270 = vpow.pop %v3269
    %v3271 = vadd.f32 %v3270, 1.0
    %v3272 = vrcp.pop %v3271
    %v3273 = vmul.f32 %v3271, %v3272
    %v3274 = vsub.f32 1.0, %v3273
    %v3275 = vmul.f32 %v3272, %v3274
    %v3276 = vadd.f32 %v3272, %v3275
    %vm3277 = vweird.f32 %v3271
    %vm3278 = vweird.f32 %v3272
    %vm3279 = vmor %vm3277, %vm3278
    %v3280 = vsel %vm3279, %v3272, %v3276
    %v3281 = vand.u32 2147483647, %v3271
    %vm3282 = vcmp.eq.f32.partialorder %v3281, 8.507059e+37
    %v3283 = vand.u32 %v3271, 2147483648
    %v3284 = vor.u32 1.1754944e-38, %v3283
    %v3285 = vsel %vm3282, %v3284, %v3280
    %v3286 = vmul.f32 1.0, %v3285
    %v3287 = vtanh.pop %v3189
    %v3288 = vxor.u32 %v3190, 2147483648
    %v3289 = vmul.f32 %v3288, 1.442695
    %v3290 = vpow.pop %v3289
    %v3291 = vadd.f32 %v3290, 1.0
    %v3292 = vrcp.pop %v3291
    %v3293 = vmul.f32 %v3291, %v3292
    %v3294 = vsub.f32 1.0, %v3293
    %v3295 = vmul.f32 %v3292, %v3294
    %v3296 = vadd.f32 %v3292, %v3295
    %vm3297 = vweird.f32 %v3291
    %vm3298 = vweird.f32 %v3292
    %vm3299 = vmor %vm3297, %vm3298
    %v3300 = vsel %vm3299, %v3292, %v3296
    %v3301 = vand.u32 2147483647, %v3291
    %vm3302 = vcmp.eq.f32.partialorder %v3301, 8.507059e+37
    %v3303 = vand.u32 %v3291, 2147483648
    %v3304 = vor.u32 1.1754944e-38, %v3303
    %v3305 = vsel %vm3302, %v3304, %v3300
    %v3306 = vmul.f32 1.0, %v3305
    %v3307 = vmul.f32 %v3228, %v3045
    %v3308 = vmul.f32 %v3209, %v3229
    %v3309 = vadd.f32 %v3307, %v3308
    %v3310 = vtanh.pop %v3309
    %v3311 = vmul.f32 %v3248, %v3310
    %v3313 = vrot.slane %v3052, 2
    %v3315 = vmul.f32 %v3286, %v3313
    %v3316 = vmul.f32 %v3267, %v3287
    %v3317 = vadd.f32 %v3315, %v3316
    %v3318 = vtanh.pop %v3317
    %v3319 = vmul.f32 %v3306, %v3318
    %s3320 = scalar_lea.vmem %s7, 6
    %v3321 = vld [vmem:[%s3320] sm:$0x3]
    %v3322 = vmul.f32 %v3030, %v3311
    %v3323 = vmul.f32 %v3047, %v3039
    %v3324 = vadd.f32 %v3322, %v3323
    %v3325 = vmul.f32 %v3030, %v3309
    %v3326 = vmul.f32 %v3047, %v3045
    %v3327 = vadd.f32 %v3325, %v3326
    %v3329 = vrot.slane %v3319, 6
    %v3331 = vmul.f32 %v3028, %v3329
    %v3332 = vmul.f32 %v3037, %v3049
    %v3333 = vadd.f32 %v3331, %v3332
    %v3335 = vrot.slane %v3317, 6
    %v3337 = vmul.f32 %v3028, %v3335
    %v3338 = vmul.f32 %v3037, %v3052
    %v3339 = vadd.f32 %v3337, %v3338
    %v3340 = vmul.f32 %v3321, %v3333
    %v3341 = vsub.f32 1.0, %v3321
    %v3342 = vmul.f32 %v3341, %v3056
    %v3343 = vadd.f32 %v3340, %v3342
    %v3344 = vld [vmem:[#allocation2 + $0x40] sm:$0xc]
    %v3345 = vld [vmem:[#allocation2 + $0x48] sm:$0xc]
    %v3346 = vld [vmem:[#allocation2 + $0x50] sm:$0xc]
    %v3347 = vld [vmem:[#allocation2 + $0x58] sm:$0xc]
    %v3348 = vpack.c.bf16 %v3324, %v3324
    %3349 = vmatpush.bf16.msra.mxu0 %v1627
    %3350 = vmatpush.bf16.msra.mxu0 %v1623
    %3351 = vmatpush.bf16.msra.mxu0 %v1619
    %3352 = vmatpush.bf16.msra.mxu0 %v1615
    %3353 = vmatpush.bf16.msra.mxu0 %v1611
    %3354 = vmatpush.bf16.msra.mxu0 %v1607
    %3355 = vmatpush.bf16.msra.mxu0 %v1603
    %3356 = vmatpush.bf16.msra.mxu0 %v1599
    %3357 = vmatmul.bf16.gmra.mxu0 %v3348
    %v3358 = vpop.f32.mrf.mxu0
    %v3359 = vadd.f32 0.0, %v3358
    %v3360 = vpop.f32.mrf.mxu0
    %3361 = vdwg.mxu0
    %3362 = vmatpush.bf16.msra.mxu0 %v1628
    %3363 = vmatpush.bf16.msra.mxu0 %v1624
    %3364 = vmatpush.bf16.msra.mxu0 %v1620
    %3365 = vmatpush.bf16.msra.mxu0 %v1616
    %3366 = vmatpush.bf16.msra.mxu0 %v1612
    %3367 = vmatpush.bf16.msra.mxu0 %v1608
    %3368 = vmatpush.bf16.msra.mxu0 %v1604
    %3369 = vmatpush.bf16.msra.mxu0 %v1600
    %3370 = vmatmul.bf16.gmra.mxu0 %v3348
    %v3371 = vpop.f32.mrf.mxu0
    %v3372 = vadd.f32 0.0, %v3371
    %v3373 = vpop.f32.mrf.mxu0
    %3374 = vdwg.mxu0
    %3375 = vmatpush.bf16.msra.mxu0 %v1629
    %3376 = vmatpush.bf16.msra.mxu0 %v1625
    %3377 = vmatpush.bf16.msra.mxu0 %v1621
    %3378 = vmatpush.bf16.msra.mxu0 %v1617
    %3379 = vmatpush.bf16.msra.mxu0 %v1613
    %3380 = vmatpush.bf16.msra.mxu0 %v1609
    %3381 = vmatpush.bf16.msra.mxu0 %v1605
    %3382 = vmatpush.bf16.msra.mxu0 %v1601
    %3383 = vmatmul.bf16.gmra.mxu0 %v3348
    %v3384 = vpop.f32.mrf.mxu0
    %v3385 = vadd.f32 0.0, %v3384
    %v3386 = vpop.f32.mrf.mxu0
    %3387 = vdwg.mxu0
    %3388 = vmatpush.bf16.msra.mxu0 %v1630
    %3389 = vmatpush.bf16.msra.mxu0 %v1626
    %3390 = vmatpush.bf16.msra.mxu0 %v1622
    %3391 = vmatpush.bf16.msra.mxu0 %v1618
    %3392 = vmatpush.bf16.msra.mxu0 %v1614
    %3393 = vmatpush.bf16.msra.mxu0 %v1610
    %3394 = vmatpush.bf16.msra.mxu0 %v1606
    %3395 = vmatpush.bf16.msra.mxu0 %v1602
    %3396 = vmatmul.bf16.gmra.mxu0 %v3348
    %v3397 = vpop.f32.mrf.mxu0
    %v3398 = vadd.f32 0.0, %v3397
    %v3399 = vpop.f32.mrf.mxu0
    %3400 = vdwg.mxu0
    %v3405 = vrot.slane %v3359, 6
    %v3406 = vrot.slane %v3372, 6
    %v3407 = vrot.slane %v3385, 6
    %v3408 = vrot.slane %v3398, 6
    %v3413 = vadd.f32 %v3344, %v3405
    %v3414 = vadd.f32 %v3345, %v3406
    %v3415 = vadd.f32 %v3346, %v3407
    %v3416 = vadd.f32 %v3347, %v3408
    %v3417 = vld [vmem:[#allocation2 + $0x20] sm:$0x30]
    %v3418 = vld [vmem:[#allocation2 + $0x28] sm:$0x30]
    %v3419 = vld [vmem:[#allocation2 + $0x30] sm:$0x30]
    %v3420 = vld [vmem:[#allocation2 + $0x38] sm:$0x30]
    %v3421 = vpack.c.bf16 %v3333, %v3333
    %3422 = vmatpush.bf16.msra.mxu0 %v1879
    %3423 = vmatpush.bf16.msra.mxu0 %v1875
    %3424 = vmatpush.bf16.msra.mxu0 %v1871
    %3425 = vmatpush.bf16.msra.mxu0 %v1867
    %3426 = vmatpush.bf16.msra.mxu0 %v1863
    %3427 = vmatpush.bf16.msra.mxu0 %v1859
    %3428 = vmatpush.bf16.msra.mxu0 %v1855
    %3429 = vmatpush.bf16.msra.mxu0 %v1851
    %3430 = vmatmul.bf16.gmra.mxu0 %v3421
    %v3431 = vpop.f32.mrf.mxu0
    %v3432 = vadd.f32 0.0, %v3431
    %v3433 = vpop.f32.mrf.mxu0
    %3434 = vdwg.mxu0
    %3435 = vmatpush.bf16.msra.mxu0 %v1880
    %3436 = vmatpush.bf16.msra.mxu0 %v1876
    %3437 = vmatpush.bf16.msra.mxu0 %v1872
    %3438 = vmatpush.bf16.msra.mxu0 %v1868
    %3439 = vmatpush.bf16.msra.mxu0 %v1864
    %3440 = vmatpush.bf16.msra.mxu0 %v1860
    %3441 = vmatpush.bf16.msra.mxu0 %v1856
    %3442 = vmatpush.bf16.msra.mxu0 %v1852
    %3443 = vmatmul.bf16.gmra.mxu0 %v3421
    %v3444 = vpop.f32.mrf.mxu0
    %v3445 = vadd.f32 0.0, %v3444
    %v3446 = vpop.f32.mrf.mxu0
    %3447 = vdwg.mxu0
    %3448 = vmatpush.bf16.msra.mxu0 %v1881
    %3449 = vmatpush.bf16.msra.mxu0 %v1877
    %3450 = vmatpush.bf16.msra.mxu0 %v1873
    %3451 = vmatpush.bf16.msra.mxu0 %v1869
    %3452 = vmatpush.bf16.msra.mxu0 %v1865
    %3453 = vmatpush.bf16.msra.mxu0 %v1861
    %3454 = vmatpush.bf16.msra.mxu0 %v1857
    %3455 = vmatpush.bf16.msra.mxu0 %v1853
    %3456 = vmatmul.bf16.gmra.mxu0 %v3421
    %v3457 = vpop.f32.mrf.mxu0
    %v3458 = vadd.f32 0.0, %v3457
    %v3459 = vpop.f32.mrf.mxu0
    %3460 = vdwg.mxu0
    %3461 = vmatpush.bf16.msra.mxu0 %v1882
    %3462 = vmatpush.bf16.msra.mxu0 %v1878
    %3463 = vmatpush.bf16.msra.mxu0 %v1874
    %3464 = vmatpush.bf16.msra.mxu0 %v1870
    %3465 = vmatpush.bf16.msra.mxu0 %v1866
    %3466 = vmatpush.bf16.msra.mxu0 %v1862
    %3467 = vmatpush.bf16.msra.mxu0 %v1858
    %3468 = vmatpush.bf16.msra.mxu0 %v1854
    %3469 = vmatmul.bf16.gmra.mxu0 %v3421
    %v3470 = vpop.f32.mrf.mxu0
    %v3471 = vadd.f32 0.0, %v3470
    %v3472 = vpop.f32.mrf.mxu0
    %3473 = vdwg.mxu0
    %v3478 = vrot.slane %v3432, 4
    %v3479 = vrot.slane %v3445, 4
    %v3480 = vrot.slane %v3458, 4
    %v3481 = vrot.slane %v3471, 4
    %v3486 = vadd.f32 %v3417, %v3478
    %v3487 = vadd.f32 %v3418, %v3479
    %v3488 = vadd.f32 %v3419, %v3480
    %v3489 = vadd.f32 %v3420, %v3481
    %v3490 = vxor.u32 %v3413, 2147483648
    %v3491 = vmul.f32 %v3490, 1.442695
    %v3492 = vpow.pop %v3491
    %v3493 = vadd.f32 %v3492, 1.0
    %v3494 = vrcp.pop %v3493
    %v3495 = vmul.f32 %v3493, %v3494
    %v3496 = vsub.f32 1.0, %v3495
    %v3497 = vmul.f32 %v3494, %v3496
    %v3498 = vadd.f32 %v3494, %v3497
    %vm3499 = vweird.f32 %v3493
    %vm3500 = vweird.f32 %v3494
    %vm3501 = vmor %vm3499, %vm3500
    %v3502 = vsel %vm3501, %v3494, %v3498
    %v3503 = vand.u32 2147483647, %v3493
    %vm3504 = vcmp.eq.f32.partialorder %v3503, 8.507059e+37
    %v3505 = vand.u32 %v3493, 2147483648
    %v3506 = vor.u32 1.1754944e-38, %v3505
    %v3507 = vsel %vm3504, %v3506, %v3502
    %v3508 = vmul.f32 1.0, %v3507
    %v3509 = vxor.u32 %v3414, 2147483648
    %v3510 = vmul.f32 %v3509, 1.442695
    %v3511 = vpow.pop %v3510
    %v3512 = vadd.f32 %v3511, 1.0
    %v3513 = vrcp.pop %v3512
    %v3514 = vmul.f32 %v3512, %v3513
    %v3515 = vsub.f32 1.0, %v3514
    %v3516 = vmul.f32 %v3513, %v3515
    %v3517 = vadd.f32 %v3513, %v3516
    %vm3518 = vweird.f32 %v3512
    %vm3519 = vweird.f32 %v3513
    %vm3520 = vmor %vm3518, %vm3519
    %v3521 = vsel %vm3520, %v3513, %v3517
    %v3522 = vand.u32 2147483647, %v3512
    %vm3523 = vcmp.eq.f32.partialorder %v3522, 8.507059e+37
    %v3524 = vand.u32 %v3512, 2147483648
    %v3525 = vor.u32 1.1754944e-38, %v3524
    %v3526 = vsel %vm3523, %v3525, %v3521
    %v3527 = vmul.f32 1.0, %v3526
    %v3528 = vtanh.pop %v3415
    %v3529 = vxor.u32 %v3416, 2147483648
    %v3530 = vmul.f32 %v3529, 1.442695
    %v3531 = vpow.pop %v3530
    %v3532 = vadd.f32 %v3531, 1.0
    %v3533 = vrcp.pop %v3532
    %v3534 = vmul.f32 %v3532, %v3533
    %v3535 = vsub.f32 1.0, %v3534
    %v3536 = vmul.f32 %v3533, %v3535
    %v3537 = vadd.f32 %v3533, %v3536
    %vm3538 = vweird.f32 %v3532
    %vm3539 = vweird.f32 %v3533
    %vm3540 = vmor %vm3538, %vm3539
    %v3541 = vsel %vm3540, %v3533, %v3537
    %v3542 = vand.u32 2147483647, %v3532
    %vm3543 = vcmp.eq.f32.partialorder %v3542, 8.507059e+37
    %v3544 = vand.u32 %v3532, 2147483648
    %v3545 = vor.u32 1.1754944e-38, %v3544
    %v3546 = vsel %vm3543, %v3545, %v3541
    %v3547 = vmul.f32 1.0, %v3546
    %v3548 = vxor.u32 %v3486, 2147483648
    %v3549 = vmul.f32 %v3548, 1.442695
    %v3550 = vpow.pop %v3549
    %v3551 = vadd.f32 %v3550, 1.0
    %v3552 = vrcp.pop %v3551
    %v3553 = vmul.f32 %v3551, %v3552
    %v3554 = vsub.f32 1.0, %v3553
    %v3555 = vmul.f32 %v3552, %v3554
    %v3556 = vadd.f32 %v3552, %v3555
    %vm3557 = vweird.f32 %v3551
    %vm3558 = vweird.f32 %v3552
    %vm3559 = vmor %vm3557, %vm3558
    %v3560 = vsel %vm3559, %v3552, %v3556
    %v3561 = vand.u32 2147483647, %v3551
    %vm3562 = vcmp.eq.f32.partialorder %v3561, 8.507059e+37
    %v3563 = vand.u32 %v3551, 2147483648
    %v3564 = vor.u32 1.1754944e-38, %v3563
    %v3565 = vsel %vm3562, %v3564, %v3560
    %v3566 = vmul.f32 1.0, %v3565
    %v3567 = vxor.u32 %v3487, 2147483648
    %v3568 = vmul.f32 %v3567, 1.442695
    %v3569 = vpow.pop %v3568
    %v3570 = vadd.f32 %v3569, 1.0
    %v3571 = vrcp.pop %v3570
    %v3572 = vmul.f32 %v3570, %v3571
    %v3573 = vsub.f32 1.0, %v3572
    %v3574 = vmul.f32 %v3571, %v3573
    %v3575 = vadd.f32 %v3571, %v3574
    %vm3576 = vweird.f32 %v3570
    %vm3577 = vweird.f32 %v3571
    %vm3578 = vmor %vm3576, %vm3577
    %v3579 = vsel %vm3578, %v3571, %v3575
    %v3580 = vand.u32 2147483647, %v3570
    %vm3581 = vcmp.eq.f32.partialorder %v3580, 8.507059e+37
    %v3582 = vand.u32 %v3570, 2147483648
    %v3583 = vor.u32 1.1754944e-38, %v3582
    %v3584 = vsel %vm3581, %v3583, %v3579
    %v3585 = vmul.f32 1.0, %v3584
    %v3586 = vtanh.pop %v3488
    %v3587 = vxor.u32 %v3489, 2147483648
    %v3588 = vmul.f32 %v3587, 1.442695
    %v3589 = vpow.pop %v3588
    %v3590 = vadd.f32 %v3589, 1.0
    %v3591 = vrcp.pop %v3590
    %v3592 = vmul.f32 %v3590, %v3591
    %v3593 = vsub.f32 1.0, %v3592
    %v3594 = vmul.f32 %v3591, %v3593
    %v3595 = vadd.f32 %v3591, %v3594
    %vm3596 = vweird.f32 %v3590
    %vm3597 = vweird.f32 %v3591
    %vm3598 = vmor %vm3596, %vm3597
    %v3599 = vsel %vm3598, %v3591, %v3595
    %v3600 = vand.u32 2147483647, %v3590
    %vm3601 = vcmp.eq.f32.partialorder %v3600, 8.507059e+37
    %v3602 = vand.u32 %v3590, 2147483648
    %v3603 = vor.u32 1.1754944e-38, %v3602
    %v3604 = vsel %vm3601, %v3603, %v3599
    %v3605 = vmul.f32 1.0, %v3604
    %v3607 = vrot.slane %v3327, 6
    %v3609 = vmul.f32 %v3527, %v3607
    %v3610 = vmul.f32 %v3508, %v3528
    %v3611 = vadd.f32 %v3609, %v3610
    %v3612 = vtanh.pop %v3611
    %v3613 = vmul.f32 %v3547, %v3612
    %v3615 = vrot.slane %v3339, 4
    %v3617 = vmul.f32 %v3585, %v3615
    %v3618 = vmul.f32 %v3566, %v3586
    %v3619 = vadd.f32 %v3617, %v3618
    %v3620 = vtanh.pop %v3619
    %v3621 = vmul.f32 %v3605, %v3620
    %s3622 = scalar_lea.vmem %s7, 4
    %v3623 = vld [vmem:[%s3622] sm:$0x3]
    %v3625 = vrot.slane %v3613, 2
    %v3627 = vmul.f32 %v2731, %v3625
    %v3628 = vmul.f32 %v2751, %v3324
    %v3629 = vadd.f32 %v3627, %v3628
    %v3631 = vrot.slane %v3611, 2
    %v3633 = vmul.f32 %v2731, %v3631
    %v3634 = vmul.f32 %v2751, %v3327
    %v3635 = vadd.f32 %v3633, %v3634
    %v3637 = vrot.slane %v3621, 4
    %v3639 = vmul.f32 %v2729, %v3637
    %v3640 = vmul.f32 %v2738, %v3333
    %v3641 = vadd.f32 %v3639, %v3640
    %v3643 = vrot.slane %v3619, 4
    %v3645 = vmul.f32 %v2729, %v3643
    %v3646 = vmul.f32 %v2738, %v3339
    %v3647 = vadd.f32 %v3645, %v3646
    %v3648 = vmul.f32 %v3623, %v3641
    %v3649 = vsub.f32 1.0, %v3623
    %v3650 = vmul.f32 %v3649, %v3343
    %v3651 = vadd.f32 %v3648, %v3650
    %v3652 = vld [vmem:[#allocation2 + $0x40] sm:$0x30]
    %v3653 = vld [vmem:[#allocation2 + $0x48] sm:$0x30]
    %v3654 = vld [vmem:[#allocation2 + $0x50] sm:$0x30]
    %v3655 = vld [vmem:[#allocation2 + $0x58] sm:$0x30]
    %v3656 = vpack.c.bf16 %v3629, %v3629
    %3657 = vmatpush.bf16.msra.mxu0 %v1627
    %3658 = vmatpush.bf16.msra.mxu0 %v1623
    %3659 = vmatpush.bf16.msra.mxu0 %v1619
    %3660 = vmatpush.bf16.msra.mxu0 %v1615
    %3661 = vmatpush.bf16.msra.mxu0 %v1611
    %3662 = vmatpush.bf16.msra.mxu0 %v1607
    %3663 = vmatpush.bf16.msra.mxu0 %v1603
    %3664 = vmatpush.bf16.msra.mxu0 %v1599
    %3665 = vmatmul.bf16.gmra.mxu0 %v3656
    %v3666 = vpop.f32.mrf.mxu0
    %v3667 = vadd.f32 0.0, %v3666
    %v3668 = vpop.f32.mrf.mxu0
    %3669 = vdwg.mxu0
    %3670 = vmatpush.bf16.msra.mxu0 %v1628
    %3671 = vmatpush.bf16.msra.mxu0 %v1624
    %3672 = vmatpush.bf16.msra.mxu0 %v1620
    %3673 = vmatpush.bf16.msra.mxu0 %v1616
    %3674 = vmatpush.bf16.msra.mxu0 %v1612
    %3675 = vmatpush.bf16.msra.mxu0 %v1608
    %3676 = vmatpush.bf16.msra.mxu0 %v1604
    %3677 = vmatpush.bf16.msra.mxu0 %v1600
    %3678 = vmatmul.bf16.gmra.mxu0 %v3656
    %v3679 = vpop.f32.mrf.mxu0
    %v3680 = vadd.f32 0.0, %v3679
    %v3681 = vpop.f32.mrf.mxu0
    %3682 = vdwg.mxu0
    %3683 = vmatpush.bf16.msra.mxu0 %v1629
    %3684 = vmatpush.bf16.msra.mxu0 %v1625
    %3685 = vmatpush.bf16.msra.mxu0 %v1621
    %3686 = vmatpush.bf16.msra.mxu0 %v1617
    %3687 = vmatpush.bf16.msra.mxu0 %v1613
    %3688 = vmatpush.bf16.msra.mxu0 %v1609
    %3689 = vmatpush.bf16.msra.mxu0 %v1605
    %3690 = vmatpush.bf16.msra.mxu0 %v1601
    %3691 = vmatmul.bf16.gmra.mxu0 %v3656
    %v3692 = vpop.f32.mrf.mxu0
    %v3693 = vadd.f32 0.0, %v3692
    %v3694 = vpop.f32.mrf.mxu0
    %3695 = vdwg.mxu0
    %3696 = vmatpush.bf16.msra.mxu0 %v1630
    %3697 = vmatpush.bf16.msra.mxu0 %v1626
    %3698 = vmatpush.bf16.msra.mxu0 %v1622
    %3699 = vmatpush.bf16.msra.mxu0 %v1618
    %3700 = vmatpush.bf16.msra.mxu0 %v1614
    %3701 = vmatpush.bf16.msra.mxu0 %v1610
    %3702 = vmatpush.bf16.msra.mxu0 %v1606
    %3703 = vmatpush.bf16.msra.mxu0 %v1602
    %3704 = vmatmul.bf16.gmra.mxu0 %v3656
    %v3705 = vpop.f32.mrf.mxu0
    %v3706 = vadd.f32 0.0, %v3705
    %v3707 = vpop.f32.mrf.mxu0
    %3708 = vdwg.mxu0
    %v3713 = vrot.slane %v3667, 4
    %v3714 = vrot.slane %v3680, 4
    %v3715 = vrot.slane %v3693, 4
    %v3716 = vrot.slane %v3706, 4
    %v3721 = vadd.f32 %v3652, %v3713
    %v3722 = vadd.f32 %v3653, %v3714
    %v3723 = vadd.f32 %v3654, %v3715
    %v3724 = vadd.f32 %v3655, %v3716
    %v3725 = vld [vmem:[#allocation2 + $0x20] sm:$0xc]
    %v3726 = vld [vmem:[#allocation2 + $0x28] sm:$0xc]
    %v3727 = vld [vmem:[#allocation2 + $0x30] sm:$0xc]
    %v3728 = vld [vmem:[#allocation2 + $0x38] sm:$0xc]
    %v3729 = vpack.c.bf16 %v3641, %v3641
    %3730 = vmatpush.bf16.msra.mxu0 %v1879
    %3731 = vmatpush.bf16.msra.mxu0 %v1875
    %3732 = vmatpush.bf16.msra.mxu0 %v1871
    %3733 = vmatpush.bf16.msra.mxu0 %v1867
    %3734 = vmatpush.bf16.msra.mxu0 %v1863
    %3735 = vmatpush.bf16.msra.mxu0 %v1859
    %3736 = vmatpush.bf16.msra.mxu0 %v1855
    %3737 = vmatpush.bf16.msra.mxu0 %v1851
    %3738 = vmatmul.bf16.gmra.mxu0 %v3729
    %v3739 = vpop.f32.mrf.mxu0
    %v3740 = vadd.f32 0.0, %v3739
    %v3741 = vpop.f32.mrf.mxu0
    %3742 = vdwg.mxu0
    %3743 = vmatpush.bf16.msra.mxu0 %v1880
    %3744 = vmatpush.bf16.msra.mxu0 %v1876
    %3745 = vmatpush.bf16.msra.mxu0 %v1872
    %3746 = vmatpush.bf16.msra.mxu0 %v1868
    %3747 = vmatpush.bf16.msra.mxu0 %v1864
    %3748 = vmatpush.bf16.msra.mxu0 %v1860
    %3749 = vmatpush.bf16.msra.mxu0 %v1856
    %3750 = vmatpush.bf16.msra.mxu0 %v1852
    %3751 = vmatmul.bf16.gmra.mxu0 %v3729
    %v3752 = vpop.f32.mrf.mxu0
    %v3753 = vadd.f32 0.0, %v3752
    %v3754 = vpop.f32.mrf.mxu0
    %3755 = vdwg.mxu0
    %3756 = vmatpush.bf16.msra.mxu0 %v1881
    %3757 = vmatpush.bf16.msra.mxu0 %v1877
    %3758 = vmatpush.bf16.msra.mxu0 %v1873
    %3759 = vmatpush.bf16.msra.mxu0 %v1869
    %3760 = vmatpush.bf16.msra.mxu0 %v1865
    %3761 = vmatpush.bf16.msra.mxu0 %v1861
    %3762 = vmatpush.bf16.msra.mxu0 %v1857
    %3763 = vmatpush.bf16.msra.mxu0 %v1853
    %3764 = vmatmul.bf16.gmra.mxu0 %v3729
    %v3765 = vpop.f32.mrf.mxu0
    %v3766 = vadd.f32 0.0, %v3765
    %v3767 = vpop.f32.mrf.mxu0
    %3768 = vdwg.mxu0
    %3769 = vmatpush.bf16.msra.mxu0 %v1882
    %3770 = vmatpush.bf16.msra.mxu0 %v1878
    %3771 = vmatpush.bf16.msra.mxu0 %v1874
    %3772 = vmatpush.bf16.msra.mxu0 %v1870
    %3773 = vmatpush.bf16.msra.mxu0 %v1866
    %3774 = vmatpush.bf16.msra.mxu0 %v1862
    %3775 = vmatpush.bf16.msra.mxu0 %v1858
    %3776 = vmatpush.bf16.msra.mxu0 %v1854
    %3777 = vmatmul.bf16.gmra.mxu0 %v3729
    %v3778 = vpop.f32.mrf.mxu0
    %v3779 = vadd.f32 0.0, %v3778
    %v3780 = vpop.f32.mrf.mxu0
    %3781 = vdwg.mxu0
    %v3786 = vrot.slane %v3740, 6
    %v3787 = vrot.slane %v3753, 6
    %v3788 = vrot.slane %v3766, 6
    %v3789 = vrot.slane %v3779, 6
    %v3794 = vadd.f32 %v3725, %v3786
    %v3795 = vadd.f32 %v3726, %v3787
    %v3796 = vadd.f32 %v3727, %v3788
    %v3797 = vadd.f32 %v3728, %v3789
    %v3798 = vxor.u32 %v3721, 2147483648
    %v3799 = vmul.f32 %v3798, 1.442695
    %v3800 = vpow.pop %v3799
    %v3801 = vadd.f32 %v3800, 1.0
    %v3802 = vrcp.pop %v3801
    %v3803 = vmul.f32 %v3801, %v3802
    %v3804 = vsub.f32 1.0, %v3803
    %v3805 = vmul.f32 %v3802, %v3804
    %v3806 = vadd.f32 %v3802, %v3805
    %vm3807 = vweird.f32 %v3801
    %vm3808 = vweird.f32 %v3802
    %vm3809 = vmor %vm3807, %vm3808
    %v3810 = vsel %vm3809, %v3802, %v3806
    %v3811 = vand.u32 2147483647, %v3801
    %vm3812 = vcmp.eq.f32.partialorder %v3811, 8.507059e+37
    %v3813 = vand.u32 %v3801, 2147483648
    %v3814 = vor.u32 1.1754944e-38, %v3813
    %v3815 = vsel %vm3812, %v3814, %v3810
    %v3816 = vmul.f32 1.0, %v3815
    %v3817 = vxor.u32 %v3722, 2147483648
    %v3818 = vmul.f32 %v3817, 1.442695
    %v3819 = vpow.pop %v3818
    %v3820 = vadd.f32 %v3819, 1.0
    %v3821 = vrcp.pop %v3820
    %v3822 = vmul.f32 %v3820, %v3821
    %v3823 = vsub.f32 1.0, %v3822
    %v3824 = vmul.f32 %v3821, %v3823
    %v3825 = vadd.f32 %v3821, %v3824
    %vm3826 = vweird.f32 %v3820
    %vm3827 = vweird.f32 %v3821
    %vm3828 = vmor %vm3826, %vm3827
    %v3829 = vsel %vm3828, %v3821, %v3825
    %v3830 = vand.u32 2147483647, %v3820
    %vm3831 = vcmp.eq.f32.partialorder %v3830, 8.507059e+37
    %v3832 = vand.u32 %v3820, 2147483648
    %v3833 = vor.u32 1.1754944e-38, %v3832
    %v3834 = vsel %vm3831, %v3833, %v3829
    %v3835 = vmul.f32 1.0, %v3834
    %v3836 = vtanh.pop %v3723
    %v3837 = vxor.u32 %v3724, 2147483648
    %v3838 = vmul.f32 %v3837, 1.442695
    %v3839 = vpow.pop %v3838
    %v3840 = vadd.f32 %v3839, 1.0
    %v3841 = vrcp.pop %v3840
    %v3842 = vmul.f32 %v3840, %v3841
    %v3843 = vsub.f32 1.0, %v3842
    %v3844 = vmul.f32 %v3841, %v3843
    %v3845 = vadd.f32 %v3841, %v3844
    %vm3846 = vweird.f32 %v3840
    %vm3847 = vweird.f32 %v3841
    %vm3848 = vmor %vm3846, %vm3847
    %v3849 = vsel %vm3848, %v3841, %v3845
    %v3850 = vand.u32 2147483647, %v3840
    %vm3851 = vcmp.eq.f32.partialorder %v3850, 8.507059e+37
    %v3852 = vand.u32 %v3840, 2147483648
    %v3853 = vor.u32 1.1754944e-38, %v3852
    %v3854 = vsel %vm3851, %v3853, %v3849
    %v3855 = vmul.f32 1.0, %v3854
    %v3856 = vxor.u32 %v3794, 2147483648
    %v3857 = vmul.f32 %v3856, 1.442695
    %v3858 = vpow.pop %v3857
    %v3859 = vadd.f32 %v3858, 1.0
    %v3860 = vrcp.pop %v3859
    %v3861 = vmul.f32 %v3859, %v3860
    %v3862 = vsub.f32 1.0, %v3861
    %v3863 = vmul.f32 %v3860, %v3862
    %v3864 = vadd.f32 %v3860, %v3863
    %vm3865 = vweird.f32 %v3859
    %vm3866 = vweird.f32 %v3860
    %vm3867 = vmor %vm3865, %vm3866
    %v3868 = vsel %vm3867, %v3860, %v3864
    %v3869 = vand.u32 2147483647, %v3859
    %vm3870 = vcmp.eq.f32.partialorder %v3869, 8.507059e+37
    %v3871 = vand.u32 %v3859, 2147483648
    %v3872 = vor.u32 1.1754944e-38, %v3871
    %v3873 = vsel %vm3870, %v3872, %v3868
    %v3874 = vmul.f32 1.0, %v3873
    %v3875 = vxor.u32 %v3795, 2147483648
    %v3876 = vmul.f32 %v3875, 1.442695
    %v3877 = vpow.pop %v3876
    %v3878 = vadd.f32 %v3877, 1.0
    %v3879 = vrcp.pop %v3878
    %v3880 = vmul.f32 %v3878, %v3879
    %v3881 = vsub.f32 1.0, %v3880
    %v3882 = vmul.f32 %v3879, %v3881
    %v3883 = vadd.f32 %v3879, %v3882
    %vm3884 = vweird.f32 %v3878
    %vm3885 = vweird.f32 %v3879
    %vm3886 = vmor %vm3884, %vm3885
    %v3887 = vsel %vm3886, %v3879, %v3883
    %v3888 = vand.u32 2147483647, %v3878
    %vm3889 = vcmp.eq.f32.partialorder %v3888, 8.507059e+37
    %v3890 = vand.u32 %v3878, 2147483648
    %v3891 = vor.u32 1.1754944e-38, %v3890
    %v3892 = vsel %vm3889, %v3891, %v3887
    %v3893 = vmul.f32 1.0, %v3892
    %v3894 = vtanh.pop %v3796
    %v3895 = vxor.u32 %v3797, 2147483648
    %v3896 = vmul.f32 %v3895, 1.442695
    %v3897 = vpow.pop %v3896
    %v3898 = vadd.f32 %v3897, 1.0
    %v3899 = vrcp.pop %v3898
    %v3900 = vmul.f32 %v3898, %v3899
    %v3901 = vsub.f32 1.0, %v3900
    %v3902 = vmul.f32 %v3899, %v3901
    %v3903 = vadd.f32 %v3899, %v3902
    %vm3904 = vweird.f32 %v3898
    %vm3905 = vweird.f32 %v3899
    %vm3906 = vmor %vm3904, %vm3905
    %v3907 = vsel %vm3906, %v3899, %v3903
    %v3908 = vand.u32 2147483647, %v3898
    %vm3909 = vcmp.eq.f32.partialorder %v3908, 8.507059e+37
    %v3910 = vand.u32 %v3898, 2147483648
    %v3911 = vor.u32 1.1754944e-38, %v3910
    %v3912 = vsel %vm3909, %v3911, %v3907
    %v3913 = vmul.f32 1.0, %v3912
    %v3915 = vrot.slane %v3635, 4
    %v3917 = vmul.f32 %v3835, %v3915
    %v3918 = vmul.f32 %v3816, %v3836
    %v3919 = vadd.f32 %v3917, %v3918
    %v3920 = vtanh.pop %v3919
    %v3921 = vmul.f32 %v3855, %v3920
    %v3923 = vrot.slane %v3647, 6
    %v3925 = vmul.f32 %v3893, %v3923
    %v3926 = vmul.f32 %v3874, %v3894
    %v3927 = vadd.f32 %v3925, %v3926
    %v3928 = vtanh.pop %v3927
    %v3929 = vmul.f32 %v3913, %v3928
    %s3930 = scalar_lea.vmem %s7, 2
    %v3931 = vld [vmem:[%s3930] sm:$0x3]
    %v3933 = vrot.slane %v3921, 4
    %v3935 = vmul.f32 %v2417, %v3933
    %v3936 = vmul.f32 %v2437, %v3629
    %v3937 = vadd.f32 %v3935, %v3936
    %v3939 = vrot.slane %v3919, 4
    %v3941 = vmul.f32 %v2417, %v3939
    %v3942 = vmul.f32 %v2437, %v3635
    %v3943 = vadd.f32 %v3941, %v3942
    %v3945 = vrot.slane %v3929, 2
    %v3947 = vmul.f32 %v2415, %v3945
    %v3948 = vmul.f32 %v2424, %v3641
    %v3949 = vadd.f32 %v3947, %v3948
    %v3951 = vrot.slane %v3927, 2
    %v3953 = vmul.f32 %v2415, %v3951
    %v3954 = vmul.f32 %v2424, %v3647
    %v3955 = vadd.f32 %v3953, %v3954
    %v3956 = vmul.f32 %v3931, %v3949
    %v3957 = vsub.f32 1.0, %v3931
    %v3958 = vmul.f32 %v3957, %v3651
    %v3959 = vadd.f32 %v3956, %v3958
    %v3960 = vld [vmem:[#allocation2 + $0x40] sm:$0xc0]
    %v3961 = vld [vmem:[#allocation2 + $0x48] sm:$0xc0]
    %v3962 = vld [vmem:[#allocation2 + $0x50] sm:$0xc0]
    %v3963 = vld [vmem:[#allocation2 + $0x58] sm:$0xc0]
    %v3964 = vpack.c.bf16 %v3937, %v3937
    %3965 = vmatpush.bf16.msra.mxu0 %v1627
    %3966 = vmatpush.bf16.msra.mxu0 %v1623
    %3967 = vmatpush.bf16.msra.mxu0 %v1619
    %3968 = vmatpush.bf16.msra.mxu0 %v1615
    %3969 = vmatpush.bf16.msra.mxu0 %v1611
    %3970 = vmatpush.bf16.msra.mxu0 %v1607
    %3971 = vmatpush.bf16.msra.mxu0 %v1603
    %3972 = vmatpush.bf16.msra.mxu0 %v1599
    %3973 = vmatmul.bf16.gmra.mxu0 %v3964
    %v3974 = vpop.f32.mrf.mxu0
    %v3975 = vadd.f32 0.0, %v3974
    %v3976 = vpop.f32.mrf.mxu0
    %3977 = vdwg.mxu0
    %3978 = vmatpush.bf16.msra.mxu0 %v1628
    %3979 = vmatpush.bf16.msra.mxu0 %v1624
    %3980 = vmatpush.bf16.msra.mxu0 %v1620
    %3981 = vmatpush.bf16.msra.mxu0 %v1616
    %3982 = vmatpush.bf16.msra.mxu0 %v1612
    %3983 = vmatpush.bf16.msra.mxu0 %v1608
    %3984 = vmatpush.bf16.msra.mxu0 %v1604
    %3985 = vmatpush.bf16.msra.mxu0 %v1600
    %3986 = vmatmul.bf16.gmra.mxu0 %v3964
    %v3987 = vpop.f32.mrf.mxu0
    %v3988 = vadd.f32 0.0, %v3987
    %v3989 = vpop.f32.mrf.mxu0
    %3990 = vdwg.mxu0
    %3991 = vmatpush.bf16.msra.mxu0 %v1629
    %3992 = vmatpush.bf16.msra.mxu0 %v1625
    %3993 = vmatpush.bf16.msra.mxu0 %v1621
    %3994 = vmatpush.bf16.msra.mxu0 %v1617
    %3995 = vmatpush.bf16.msra.mxu0 %v1613
    %3996 = vmatpush.bf16.msra.mxu0 %v1609
    %3997 = vmatpush.bf16.msra.mxu0 %v1605
    %3998 = vmatpush.bf16.msra.mxu0 %v1601
    %3999 = vmatmul.bf16.gmra.mxu0 %v3964
    %v4000 = vpop.f32.mrf.mxu0
    %v4001 = vadd.f32 0.0, %v4000
    %v4002 = vpop.f32.mrf.mxu0
    %4003 = vdwg.mxu0
    %4004 = vmatpush.bf16.msra.mxu0 %v1630
    %4005 = vmatpush.bf16.msra.mxu0 %v1626
    %4006 = vmatpush.bf16.msra.mxu0 %v1622
    %4007 = vmatpush.bf16.msra.mxu0 %v1618
    %4008 = vmatpush.bf16.msra.mxu0 %v1614
    %4009 = vmatpush.bf16.msra.mxu0 %v1610
    %4010 = vmatpush.bf16.msra.mxu0 %v1606
    %4011 = vmatpush.bf16.msra.mxu0 %v1602
    %4012 = vmatmul.bf16.gmra.mxu0 %v3964
    %v4013 = vpop.f32.mrf.mxu0
    %v4014 = vadd.f32 0.0, %v4013
    %v4015 = vpop.f32.mrf.mxu0
    %4016 = vdwg.mxu0
    %v4021 = vrot.slane %v3975, 2
    %v4022 = vrot.slane %v3988, 2
    %v4023 = vrot.slane %v4001, 2
    %v4024 = vrot.slane %v4014, 2
    %v4029 = vadd.f32 %v3960, %v4021
    %v4030 = vadd.f32 %v3961, %v4022
    %v4031 = vadd.f32 %v3962, %v4023
    %v4032 = vadd.f32 %v3963, %v4024
    %v4033 = vld [vmem:[#allocation2 + $0x20] sm:$0x3]
    %v4034 = vld [vmem:[#allocation2 + $0x28] sm:$0x3]
    %v4035 = vld [vmem:[#allocation2 + $0x30] sm:$0x3]
    %v4036 = vld [vmem:[#allocation2 + $0x38] sm:$0x3]
    %v4037 = vpack.c.bf16 %v3949, %v3949
    %4038 = vmatpush.bf16.msra.mxu0 %v1879
    %4039 = vmatpush.bf16.msra.mxu0 %v1875
    %4040 = vmatpush.bf16.msra.mxu0 %v1871
    %4041 = vmatpush.bf16.msra.mxu0 %v1867
    %4042 = vmatpush.bf16.msra.mxu0 %v1863
    %4043 = vmatpush.bf16.msra.mxu0 %v1859
    %4044 = vmatpush.bf16.msra.mxu0 %v1855
    %4045 = vmatpush.bf16.msra.mxu0 %v1851
    %4046 = vmatmul.bf16.gmra.mxu0 %v4037
    %v4047 = vpop.f32.mrf.mxu0
    %v4048 = vadd.f32 0.0, %v4047
    %v4049 = vpop.f32.mrf.mxu0
    %4050 = vdwg.mxu0
    %4051 = vmatpush.bf16.msra.mxu0 %v1880
    %4052 = vmatpush.bf16.msra.mxu0 %v1876
    %4053 = vmatpush.bf16.msra.mxu0 %v1872
    %4054 = vmatpush.bf16.msra.mxu0 %v1868
    %4055 = vmatpush.bf16.msra.mxu0 %v1864
    %4056 = vmatpush.bf16.msra.mxu0 %v1860
    %4057 = vmatpush.bf16.msra.mxu0 %v1856
    %4058 = vmatpush.bf16.msra.mxu0 %v1852
    %4059 = vmatmul.bf16.gmra.mxu0 %v4037
    %v4060 = vpop.f32.mrf.mxu0
    %v4061 = vadd.f32 0.0, %v4060
    %v4062 = vpop.f32.mrf.mxu0
    %4063 = vdwg.mxu0
    %4064 = vmatpush.bf16.msra.mxu0 %v1881
    %4065 = vmatpush.bf16.msra.mxu0 %v1877
    %4066 = vmatpush.bf16.msra.mxu0 %v1873
    %4067 = vmatpush.bf16.msra.mxu0 %v1869
    %4068 = vmatpush.bf16.msra.mxu0 %v1865
    %4069 = vmatpush.bf16.msra.mxu0 %v1861
    %4070 = vmatpush.bf16.msra.mxu0 %v1857
    %4071 = vmatpush.bf16.msra.mxu0 %v1853
    %4072 = vmatmul.bf16.gmra.mxu0 %v4037
    %v4073 = vpop.f32.mrf.mxu0
    %v4074 = vadd.f32 0.0, %v4073
    %v4075 = vpop.f32.mrf.mxu0
    %4076 = vdwg.mxu0
    %4077 = vmatpush.bf16.msra.mxu0 %v1882
    %4078 = vmatpush.bf16.msra.mxu0 %v1878
    %4079 = vmatpush.bf16.msra.mxu0 %v1874
    %4080 = vmatpush.bf16.msra.mxu0 %v1870
    %4081 = vmatpush.bf16.msra.mxu0 %v1866
    %4082 = vmatpush.bf16.msra.mxu0 %v1862
    %4083 = vmatpush.bf16.msra.mxu0 %v1858
    %4084 = vmatpush.bf16.msra.mxu0 %v1854
    %4085 = vmatmul.bf16.gmra.mxu0 %v4037
    %v4086 = vpop.f32.mrf.mxu0
    %v4087 = vadd.f32 0.0, %v4086
    %v4088 = vpop.f32.mrf.mxu0
    %4089 = vdwg.mxu0
    %v4090 = vadd.f32 %v4033, %v4048
    %v4091 = vadd.f32 %v4034, %v4061
    %v4092 = vadd.f32 %v4035, %v4074
    %v4093 = vadd.f32 %v4036, %v4087
    %v4094 = vxor.u32 %v4029, 2147483648
    %v4095 = vmul.f32 %v4094, 1.442695
    %v4096 = vpow.pop %v4095
    %v4097 = vadd.f32 %v4096, 1.0
    %v4098 = vrcp.pop %v4097
    %v4099 = vmul.f32 %v4097, %v4098
    %v4100 = vsub.f32 1.0, %v4099
    %v4101 = vmul.f32 %v4098, %v4100
    %v4102 = vadd.f32 %v4098, %v4101
    %vm4103 = vweird.f32 %v4097
    %vm4104 = vweird.f32 %v4098
    %vm4105 = vmor %vm4103, %vm4104
    %v4106 = vsel %vm4105, %v4098, %v4102
    %v4107 = vand.u32 2147483647, %v4097
    %vm4108 = vcmp.eq.f32.partialorder %v4107, 8.507059e+37
    %v4109 = vand.u32 %v4097, 2147483648
    %v4110 = vor.u32 1.1754944e-38, %v4109
    %v4111 = vsel %vm4108, %v4110, %v4106
    %v4112 = vmul.f32 1.0, %v4111
    %v4113 = vxor.u32 %v4030, 2147483648
    %v4114 = vmul.f32 %v4113, 1.442695
    %v4115 = vpow.pop %v4114
    %v4116 = vadd.f32 %v4115, 1.0
    %v4117 = vrcp.pop %v4116
    %v4118 = vmul.f32 %v4116, %v4117
    %v4119 = vsub.f32 1.0, %v4118
    %v4120 = vmul.f32 %v4117, %v4119
    %v4121 = vadd.f32 %v4117, %v4120
    %vm4122 = vweird.f32 %v4116
    %vm4123 = vweird.f32 %v4117
    %vm4124 = vmor %vm4122, %vm4123
    %v4125 = vsel %vm4124, %v4117, %v4121
    %v4126 = vand.u32 2147483647, %v4116
    %vm4127 = vcmp.eq.f32.partialorder %v4126, 8.507059e+37
    %v4128 = vand.u32 %v4116, 2147483648
    %v4129 = vor.u32 1.1754944e-38, %v4128
    %v4130 = vsel %vm4127, %v4129, %v4125
    %v4131 = vmul.f32 1.0, %v4130
    %v4132 = vtanh.pop %v4031
    %v4133 = vxor.u32 %v4032, 2147483648
    %v4134 = vmul.f32 %v4133, 1.442695
    %v4135 = vpow.pop %v4134
    %v4136 = vadd.f32 %v4135, 1.0
    %v4137 = vrcp.pop %v4136
    %v4138 = vmul.f32 %v4136, %v4137
    %v4139 = vsub.f32 1.0, %v4138
    %v4140 = vmul.f32 %v4137, %v4139
    %v4141 = vadd.f32 %v4137, %v4140
    %vm4142 = vweird.f32 %v4136
    %vm4143 = vweird.f32 %v4137
    %vm4144 = vmor %vm4142, %vm4143
    %v4145 = vsel %vm4144, %v4137, %v4141
    %v4146 = vand.u32 2147483647, %v4136
    %vm4147 = vcmp.eq.f32.partialorder %v4146, 8.507059e+37
    %v4148 = vand.u32 %v4136, 2147483648
    %v4149 = vor.u32 1.1754944e-38, %v4148
    %v4150 = vsel %vm4147, %v4149, %v4145
    %v4151 = vmul.f32 1.0, %v4150
    %v4152 = vxor.u32 %v4090, 2147483648
    %v4153 = vmul.f32 %v4152, 1.442695
    %v4154 = vpow.pop %v4153
    %v4155 = vadd.f32 %v4154, 1.0
    %v4156 = vrcp.pop %v4155
    %v4157 = vmul.f32 %v4155, %v4156
    %v4158 = vsub.f32 1.0, %v4157
    %v4159 = vmul.f32 %v4156, %v4158
    %v4160 = vadd.f32 %v4156, %v4159
    %vm4161 = vweird.f32 %v4155
    %vm4162 = vweird.f32 %v4156
    %vm4163 = vmor %vm4161, %vm4162
    %v4164 = vsel %vm4163, %v4156, %v4160
    %v4165 = vand.u32 2147483647, %v4155
    %vm4166 = vcmp.eq.f32.partialorder %v4165, 8.507059e+37
    %v4167 = vand.u32 %v4155, 2147483648
    %v4168 = vor.u32 1.1754944e-38, %v4167
    %v4169 = vsel %vm4166, %v4168, %v4164
    %v4170 = vmul.f32 1.0, %v4169
    %v4171 = vxor.u32 %v4091, 2147483648
    %v4172 = vmul.f32 %v4171, 1.442695
    %v4173 = vpow.pop %v4172
    %v4174 = vadd.f32 %v4173, 1.0
    %v4175 = vrcp.pop %v4174
    %v4176 = vmul.f32 %v4174, %v4175
    %v4177 = vsub.f32 1.0, %v4176
    %v4178 = vmul.f32 %v4175, %v4177
    %v4179 = vadd.f32 %v4175, %v4178
    %vm4180 = vweird.f32 %v4174
    %vm4181 = vweird.f32 %v4175
    %vm4182 = vmor %vm4180, %vm4181
    %v4183 = vsel %vm4182, %v4175, %v4179
    %v4184 = vand.u32 2147483647, %v4174
    %vm4185 = vcmp.eq.f32.partialorder %v4184, 8.507059e+37
    %v4186 = vand.u32 %v4174, 2147483648
    %v4187 = vor.u32 1.1754944e-38, %v4186
    %v4188 = vsel %vm4185, %v4187, %v4183
    %v4189 = vmul.f32 1.0, %v4188
    %v4190 = vtanh.pop %v4092
    %v4191 = vxor.u32 %v4093, 2147483648
    %v4192 = vmul.f32 %v4191, 1.442695
    %v4193 = vpow.pop %v4192
    %v4194 = vadd.f32 %v4193, 1.0
    %v4195 = vrcp.pop %v4194
    %v4196 = vmul.f32 %v4194, %v4195
    %v4197 = vsub.f32 1.0, %v4196
    %v4198 = vmul.f32 %v4195, %v4197
    %v4199 = vadd.f32 %v4195, %v4198
    %vm4200 = vweird.f32 %v4194
    %vm4201 = vweird.f32 %v4195
    %vm4202 = vmor %vm4200, %vm4201
    %v4203 = vsel %vm4202, %v4195, %v4199
    %v4204 = vand.u32 2147483647, %v4194
    %vm4205 = vcmp.eq.f32.partialorder %v4204, 8.507059e+37
    %v4206 = vand.u32 %v4194, 2147483648
    %v4207 = vor.u32 1.1754944e-38, %v4206
    %v4208 = vsel %vm4205, %v4207, %v4203
    %v4209 = vmul.f32 1.0, %v4208
    %v4211 = vrot.slane %v3943, 2
    %v4213 = vmul.f32 %v4131, %v4211
    %v4214 = vmul.f32 %v4112, %v4132
    %v4215 = vadd.f32 %v4213, %v4214
    %v4216 = vtanh.pop %v4215
    %v4217 = vmul.f32 %v4151, %v4216
    %v4218 = vmul.f32 %v4189, %v3955
    %v4219 = vmul.f32 %v4170, %v4190
    %v4220 = vadd.f32 %v4218, %v4219
    %v4221 = vtanh.pop %v4220
    %v4222 = vmul.f32 %v4209, %v4221
    %v4223 = vld [vmem:[%s7] sm:$0x3]
    %v4225 = vrot.slane %v4217, 6
    %v4227 = vmul.f32 %v2111, %v4225
    %v4228 = vmul.f32 %v2124, %v3937
    %v4229 = vadd.f32 %v4227, %v4228
    %v4230 = vmul.f32 %v2109, %v4222
    %v4231 = vmul.f32 %v2115, %v3949
    %v4232 = vadd.f32 %v4230, %v4231
    %v4233 = vmul.f32 %v4223, %v4232
    %v4234 = vsub.f32 1.0, %v4223
    %v4235 = vmul.f32 %v4234, %v3959
    %v4236 = vadd.f32 %v4233, %v4235
    %v4237 = vld [vmem:[%s9] sm:$0x3]
    %v4238 = vpack.c.bf16 %v4237, %v4237
    %v4239 = vld [vmem:[%s45] sm:$0xf]
    %v4240 = vld [vmem:[%s45 + $0x4] sm:$0xf]
    %v4241 = vld [vmem:[%s45 + $0x8] sm:$0xf]
    %v4242 = vld [vmem:[%s45 + $0xc] sm:$0xf]
    %v4243 = vld [vmem:[%s47] sm:$0x1]
    %v4245 = vperm.slane %v4243, 0
    %v4251 = vunpack.c.l.b16 %v4239
    %v4252 = vunpack.c.l.b16 %v4240
    %v4253 = vunpack.c.l.b16 %v4241
    %v4254 = vunpack.c.l.b16 %v4242
    %v4255 = vpack.c.b16 %v4252, %v4251
    %v4256 = vpack.c.b16 %v4254, %v4253
    %vm4259 = vcmask 261120
    %v4261 = vsel %vm4259, %v4238, 0
    %4263 = vmatpush.bf16.msra.mxu0 0
    %4264 = vmatpush.bf16.msra.mxu0 0
    %4265 = vmatpush.bf16.msra.mxu0 0
    %4266 = vmatpush.bf16.msra.mxu0 0
    %4267 = vmatpush.bf16.msra.mxu0 0
    %4268 = vmatpush.bf16.msra.mxu0 0
    %4269 = vmatpush.bf16.msra.mxu0 %v4256
    %4270 = vmatpush.bf16.msra.mxu0 %v4255
    %4271 = vmatmul.bf16.gmra.mxu0 %v4261
    %v4272 = vpop.f32.mrf.mxu0
    %v4273 = vadd.f32 %v4245, %v4272
    %v4274 = vpop.f32.mrf.mxu0
    %4275 = vdwg.mxu0
    %v4276 = vld [vmem:[%s11] sm:$0x3]
    %v4277 = vld [vmem:[%s49] sm:$0x1]
    %v4279 = vperm.slane %v4277, 0
    %v4281 = vmul.f32 %v4276, %v4279
    %v4282 = vld [vmem:[%s51] sm:$0x1]
    %v4284 = vperm.slane %v4282, 0
    %v4286 = vadd.f32 %v4281, %v4284
    %v4287 = vpack.c.bf16 %v4229, %v4229
    %v4288 = vld [vmem:[%s53] sm:$0xff]
    %v4289 = vld [vmem:[%s53 + $0x8] sm:$0xff]
    %v4290 = vld [vmem:[%s53 + $0x10] sm:$0xff]
    %v4291 = vld [vmem:[%s53 + $0x18] sm:$0xff]
    %v4292 = vld [vmem:[%s53 + $0x20] sm:$0xff]
    %v4293 = vld [vmem:[%s53 + $0x28] sm:$0xff]
    %v4294 = vld [vmem:[%s53 + $0x30] sm:$0xff]
    %v4295 = vld [vmem:[%s53 + $0x38] sm:$0xff]
    %v4296 = vld [vmem:[%s53 + $0x40] sm:$0xff]
    %v4297 = vld [vmem:[%s53 + $0x48] sm:$0xff]
    %v4298 = vld [vmem:[%s53 + $0x50] sm:$0xff]
    %v4299 = vld [vmem:[%s53 + $0x58] sm:$0xff]
    %v4300 = vld [vmem:[%s53 + $0x60] sm:$0xff]
    %v4301 = vld [vmem:[%s53 + $0x68] sm:$0xff]
    %v4302 = vld [vmem:[%s53 + $0x70] sm:$0xff]
    %v4303 = vld [vmem:[%s53 + $0x78] sm:$0xff]
    %v4304 = vpack.c.bf16 %v4236, %v4236
    %v4305 = vld [vmem:[%s55] sm:$0xff]
    %v4306 = vld [vmem:[%s55 + $0x8] sm:$0xff]
    %v4307 = vld [vmem:[%s55 + $0x10] sm:$0xff]
    %v4308 = vld [vmem:[%s55 + $0x18] sm:$0xff]
    %v4309 = vld [vmem:[%s55 + $0x20] sm:$0xff]
    %v4310 = vld [vmem:[%s55 + $0x28] sm:$0xff]
    %v4311 = vld [vmem:[%s55 + $0x30] sm:$0xff]
    %v4312 = vld [vmem:[%s55 + $0x38] sm:$0xff]
    %v4313 = vld [vmem:[%s55 + $0x40] sm:$0xff]
    %v4314 = vld [vmem:[%s55 + $0x48] sm:$0xff]
    %v4315 = vld [vmem:[%s55 + $0x50] sm:$0xff]
    %v4316 = vld [vmem:[%s55 + $0x58] sm:$0xff]
    %v4317 = vld [vmem:[%s55 + $0x60] sm:$0xff]
    %v4318 = vld [vmem:[%s55 + $0x68] sm:$0xff]
    %v4319 = vld [vmem:[%s55 + $0x70] sm:$0xff]
    %v4320 = vld [vmem:[%s55 + $0x78] sm:$0xff]
    %v4337 = vunpack.c.l.b16 %v4305
    %v4338 = vunpack.c.h.b16 %v4305
    %v4339 = vunpack.c.l.b16 %v4306
    %v4340 = vunpack.c.h.b16 %v4306
    %v4341 = vunpack.c.l.b16 %v4307
    %v4342 = vunpack.c.h.b16 %v4307
    %v4343 = vunpack.c.l.b16 %v4308
    %v4344 = vunpack.c.h.b16 %v4308
    %v4345 = vunpack.c.l.b16 %v4309
    %v4346 = vunpack.c.h.b16 %v4309
    %v4347 = vunpack.c.l.b16 %v4310
    %v4348 = vunpack.c.h.b16 %v4310
    %v4349 = vunpack.c.l.b16 %v4311
    %v4350 = vunpack.c.h.b16 %v4311
    %v4351 = vunpack.c.l.b16 %v4312
    %v4352 = vunpack.c.h.b16 %v4312
    %v4353 = vunpack.c.l.b16 %v4313
    %v4354 = vunpack.c.h.b16 %v4313
    %v4355 = vunpack.c.l.b16 %v4314
    %v4356 = vunpack.c.h.b16 %v4314
    %v4357 = vunpack.c.l.b16 %v4315
    %v4358 = vunpack.c.h.b16 %v4315
    %v4359 = vunpack.c.l.b16 %v4316
    %v4360 = vunpack.c.h.b16 %v4316
    %v4361 = vunpack.c.l.b16 %v4317
    %v4362 = vunpack.c.h.b16 %v4317
    %v4363 = vunpack.c.l.b16 %v4318
    %v4364 = vunpack.c.h.b16 %v4318
    %v4365 = vunpack.c.l.b16 %v4319
    %v4366 = vunpack.c.h.b16 %v4319
    %v4367 = vunpack.c.l.b16 %v4320
    %v4368 = vunpack.c.h.b16 %v4320
    %v4369 = vpack.c.b16 %v4339, %v4337
    %v4370 = vpack.c.b16 %v4340, %v4338
    %v4371 = vpack.c.b16 %v4343, %v4341
    %v4372 = vpack.c.b16 %v4344, %v4342
    %v4373 = vpack.c.b16 %v4347, %v4345
    %v4374 = vpack.c.b16 %v4348, %v4346
    %v4375 = vpack.c.b16 %v4351, %v4349
    %v4376 = vpack.c.b16 %v4352, %v4350
    %v4377 = vpack.c.b16 %v4355, %v4353
    %v4378 = vpack.c.b16 %v4356, %v4354
    %v4379 = vpack.c.b16 %v4359, %v4357
    %v4380 = vpack.c.b16 %v4360, %v4358
    %v4381 = vpack.c.b16 %v4363, %v4361
    %v4382 = vpack.c.b16 %v4364, %v4362
    %v4383 = vpack.c.b16 %v4367, %v4365
    %v4384 = vpack.c.b16 %v4368, %v4366
    %4401 = vmatpush.bf16.msra.mxu0 %v4383
    %4402 = vmatpush.bf16.msra.mxu0 %v4381
    %4403 = vmatpush.bf16.msra.mxu0 %v4379
    %4404 = vmatpush.bf16.msra.mxu0 %v4377
    %4405 = vmatpush.bf16.msra.mxu0 %v4375
    %4406 = vmatpush.bf16.msra.mxu0 %v4373
    %4407 = vmatpush.bf16.msra.mxu0 %v4371
    %4408 = vmatpush.bf16.msra.mxu0 %v4369
    %4409 = vmatmul.bf16.gmra.mxu0 %v4304
    %v4410 = vpop.f32.mrf.mxu0
    %v4411 = vadd.f32 0.0, %v4410
    %v4412 = vpop.f32.mrf.mxu0
    %4413 = vdwg.mxu0
    %4414 = vmatpush.bf16.msra.mxu0 %v4384
    %4415 = vmatpush.bf16.msra.mxu0 %v4382
    %4416 = vmatpush.bf16.msra.mxu0 %v4380
    %4417 = vmatpush.bf16.msra.mxu0 %v4378
    %4418 = vmatpush.bf16.msra.mxu0 %v4376
    %4419 = vmatpush.bf16.msra.mxu0 %v4374
    %4420 = vmatpush.bf16.msra.mxu0 %v4372
    %4421 = vmatpush.bf16.msra.mxu0 %v4370
    %4422 = vmatmul.bf16.gmra.mxu0 %v4304
    %v4423 = vpop.f32.mrf.mxu0
    %v4424 = vadd.f32 0.0, %v4423
    %v4425 = vpop.f32.mrf.mxu0
    %4426 = vdwg.mxu0
    %v4443 = vunpack.c.l.b16 %v4288
    %v4444 = vunpack.c.h.b16 %v4288
    %v4445 = vunpack.c.l.b16 %v4289
    %v4446 = vunpack.c.h.b16 %v4289
    %v4447 = vunpack.c.l.b16 %v4290
    %v4448 = vunpack.c.h.b16 %v4290
    %v4449 = vunpack.c.l.b16 %v4291
    %v4450 = vunpack.c.h.b16 %v4291
    %v4451 = vunpack.c.l.b16 %v4292
    %v4452 = vunpack.c.h.b16 %v4292
    %v4453 = vunpack.c.l.b16 %v4293
    %v4454 = vunpack.c.h.b16 %v4293
    %v4455 = vunpack.c.l.b16 %v4294
    %v4456 = vunpack.c.h.b16 %v4294
    %v4457 = vunpack.c.l.b16 %v4295
    %v4458 = vunpack.c.h.b16 %v4295
    %v4459 = vunpack.c.l.b16 %v4296
    %v4460 = vunpack.c.h.b16 %v4296
    %v4461 = vunpack.c.l.b16 %v4297
    %v4462 = vunpack.c.h.b16 %v4297
    %v4463 = vunpack.c.l.b16 %v4298
    %v4464 = vunpack.c.h.b16 %v4298
    %v4465 = vunpack.c.l.b16 %v4299
    %v4466 = vunpack.c.h.b16 %v4299
    %v4467 = vunpack.c.l.b16 %v4300
    %v4468 = vunpack.c.h.b16 %v4300
    %v4469 = vunpack.c.l.b16 %v4301
    %v4470 = vunpack.c.h.b16 %v4301
    %v4471 = vunpack.c.l.b16 %v4302
    %v4472 = vunpack.c.h.b16 %v4302
    %v4473 = vunpack.c.l.b16 %v4303
    %v4474 = vunpack.c.h.b16 %v4303
    %v4475 = vpack.c.b16 %v4445, %v4443
    %v4476 = vpack.c.b16 %v4446, %v4444
    %v4477 = vpack.c.b16 %v4449, %v4447
    %v4478 = vpack.c.b16 %v4450, %v4448
    %v4479 = vpack.c.b16 %v4453, %v4451
    %v4480 = vpack.c.b16 %v4454, %v4452
    %v4481 = vpack.c.b16 %v4457, %v4455
    %v4482 = vpack.c.b16 %v4458, %v4456
    %v4483 = vpack.c.b16 %v4461, %v4459
    %v4484 = vpack.c.b16 %v4462, %v4460
    %v4485 = vpack.c.b16 %v4465, %v4463
    %v4486 = vpack.c.b16 %v4466, %v4464
    %v4487 = vpack.c.b16 %v4469, %v4467
    %v4488 = vpack.c.b16 %v4470, %v4468
    %v4489 = vpack.c.b16 %v4473, %v4471
    %v4490 = vpack.c.b16 %v4474, %v4472
    %4507 = vmatpush.bf16.msra.mxu0 %v4489
    %4508 = vmatpush.bf16.msra.mxu0 %v4487
    %4509 = vmatpush.bf16.msra.mxu0 %v4485
    %4510 = vmatpush.bf16.msra.mxu0 %v4483
    %4511 = vmatpush.bf16.msra.mxu0 %v4481
    %4512 = vmatpush.bf16.msra.mxu0 %v4479
    %4513 = vmatpush.bf16.msra.mxu0 %v4477
    %4514 = vmatpush.bf16.msra.mxu0 %v4475
    %4515 = vmatmul.bf16.gmra.mxu0 %v4287
    %v4516 = vpop.f32.mrf.mxu0
    %v4517 = vadd.f32 %v4411, %v4516
    %v4518 = vpop.f32.mrf.mxu0
    %4519 = vdwg.mxu0
    %4520 = vmatpush.bf16.msra.mxu0 %v4490
    %4521 = vmatpush.bf16.msra.mxu0 %v4488
    %4522 = vmatpush.bf16.msra.mxu0 %v4486
    %4523 = vmatpush.bf16.msra.mxu0 %v4484
    %4524 = vmatpush.bf16.msra.mxu0 %v4482
    %4525 = vmatpush.bf16.msra.mxu0 %v4480
    %4526 = vmatpush.bf16.msra.mxu0 %v4478
    %4527 = vmatpush.bf16.msra.mxu0 %v4476
    %4528 = vmatmul.bf16.gmra.mxu0 %v4287
    %v4529 = vpop.f32.mrf.mxu0
    %v4530 = vadd.f32 %v4424, %v4529
    %v4531 = vpop.f32.mrf.mxu0
    %4532 = vdwg.mxu0
    %v4533 = vpack.c.bf16 %v4273, %v4273
    %v4534 = vld [vmem:[%s57] sm:$0xff]
    %v4535 = vld [vmem:[%s57 + $0x8] sm:$0xff]
    %v4536 = vld [vmem:[%s57 + $0x10] sm:$0xff]
    %v4537 = vld [vmem:[%s57 + $0x18] sm:$0xff]
    %v4538 = vld [vmem:[%s57 + $0x20] sm:$0xff]
    %v4539 = vld [vmem:[%s57 + $0x28] sm:$0xff]
    %v4540 = vld [vmem:[%s57 + $0x30] sm:$0xff]
    %v4541 = vld [vmem:[%s57 + $0x38] sm:$0xff]
    %v4550 = vunpack.c.l.b16 %v4534
    %v4551 = vunpack.c.h.b16 %v4534
    %v4552 = vunpack.c.l.b16 %v4535
    %v4553 = vunpack.c.h.b16 %v4535
    %v4554 = vunpack.c.l.b16 %v4536
    %v4555 = vunpack.c.h.b16 %v4536
    %v4556 = vunpack.c.l.b16 %v4537
    %v4557 = vunpack.c.h.b16 %v4537
    %v4558 = vunpack.c.l.b16 %v4538
    %v4559 = vunpack.c.h.b16 %v4538
    %v4560 = vunpack.c.l.b16 %v4539
    %v4561 = vunpack.c.h.b16 %v4539
    %v4562 = vunpack.c.l.b16 %v4540
    %v4563 = vunpack.c.h.b16 %v4540
    %v4564 = vunpack.c.l.b16 %v4541
    %v4565 = vunpack.c.h.b16 %v4541
    %v4566 = vpack.c.b16 %v4552, %v4550
    %v4567 = vpack.c.b16 %v4553, %v4551
    %v4568 = vpack.c.b16 %v4556, %v4554
    %v4569 = vpack.c.b16 %v4557, %v4555
    %v4570 = vpack.c.b16 %v4560, %v4558
    %v4571 = vpack.c.b16 %v4561, %v4559
    %v4572 = vpack.c.b16 %v4564, %v4562
    %v4573 = vpack.c.b16 %v4565, %v4563
    %vm4582 = vcmask 523264
    %v4584 = vsel %vm4582, %v4533, 0
    %4586 = vmatpush.bf16.msra.mxu0 0
    %4587 = vmatpush.bf16.msra.mxu0 0
    %4588 = vmatpush.bf16.msra.mxu0 0
    %4589 = vmatpush.bf16.msra.mxu0 0
    %4590 = vmatpush.bf16.msra.mxu0 %v4572
    %4591 = vmatpush.bf16.msra.mxu0 %v4570
    %4592 = vmatpush.bf16.msra.mxu0 %v4568
    %4593 = vmatpush.bf16.msra.mxu0 %v4566
    %4594 = vmatmul.bf16.gmra.mxu0 %v4584
    %v4595 = vpop.f32.mrf.mxu0
    %v4596 = vadd.f32 0.0, %v4595
    %v4597 = vpop.f32.mrf.mxu0
    %4598 = vdwg.mxu0
    %4599 = vmatpush.bf16.msra.mxu0 0
    %4600 = vmatpush.bf16.msra.mxu0 0
    %4601 = vmatpush.bf16.msra.mxu0 0
    %4602 = vmatpush.bf16.msra.mxu0 0
    %4603 = vmatpush.bf16.msra.mxu0 %v4573
    %4604 = vmatpush.bf16.msra.mxu0 %v4571
    %4605 = vmatpush.bf16.msra.mxu0 %v4569
    %4606 = vmatpush.bf16.msra.mxu0 %v4567
    %4607 = vmatmul.bf16.gmra.mxu0 %v4584
    %v4608 = vpop.f32.mrf.mxu0
    %v4609 = vadd.f32 0.0, %v4608
    %v4610 = vpop.f32.mrf.mxu0
    %4611 = vdwg.mxu0
    %v4612 = vadd.f32 %v4517, %v4596
    %v4613 = vadd.f32 %v4530, %v4609
    %v4614 = vpack.c.bf16 %v4286, %v4286
    %v4615 = vld [vmem:[%s59] sm:$0xff]
    %v4616 = vld [vmem:[%s59 + $0x8] sm:$0xff]
    %v4617 = vld [vmem:[%s59 + $0x10] sm:$0xff]
    %v4618 = vld [vmem:[%s59 + $0x18] sm:$0xff]
    %v4619 = vld [vmem:[%s59 + $0x20] sm:$0xff]
    %v4620 = vld [vmem:[%s59 + $0x28] sm:$0xff]
    %v4621 = vld [vmem:[%s59 + $0x30] sm:$0xff]
    %v4622 = vld [vmem:[%s59 + $0x38] sm:$0xff]
    %v4631 = vunpack.c.l.b16 %v4615
    %v4632 = vunpack.c.h.b16 %v4615
    %v4633 = vunpack.c.l.b16 %v4616
    %v4634 = vunpack.c.h.b16 %v4616
    %v4635 = vunpack.c.l.b16 %v4617
    %v4636 = vunpack.c.h.b16 %v4617
    %v4637 = vunpack.c.l.b16 %v4618
    %v4638 = vunpack.c.h.b16 %v4618
    %v4639 = vunpack.c.l.b16 %v4619
    %v4640 = vunpack.c.h.b16 %v4619
    %v4641 = vunpack.c.l.b16 %v4620
    %v4642 = vunpack.c.h.b16 %v4620
    %v4643 = vunpack.c.l.b16 %v4621
    %v4644 = vunpack.c.h.b16 %v4621
    %v4645 = vunpack.c.l.b16 %v4622
    %v4646 = vunpack.c.h.b16 %v4622
    %v4647 = vpack.c.b16 %v4633, %v4631
    %v4648 = vpack.c.b16 %v4634, %v4632
    %v4649 = vpack.c.b16 %v4637, %v4635
    %v4650 = vpack.c.b16 %v4638, %v4636
    %v4651 = vpack.c.b16 %v4641, %v4639
    %v4652 = vpack.c.b16 %v4642, %v4640
    %v4653 = vpack.c.b16 %v4645, %v4643
    %v4654 = vpack.c.b16 %v4646, %v4644
    %v4664 = vsel %vm4582, %v4614, 0
    %4666 = vmatpush.bf16.msra.mxu0 0
    %4667 = vmatpush.bf16.msra.mxu0 0
    %4668 = vmatpush.bf16.msra.mxu0 0
    %4669 = vmatpush.bf16.msra.mxu0 0
    %4670 = vmatpush.bf16.msra.mxu0 %v4653
    %4671 = vmatpush.bf16.msra.mxu0 %v4651
    %4672 = vmatpush.bf16.msra.mxu0 %v4649
    %4673 = vmatpush.bf16.msra.mxu0 %v4647
    %4674 = vmatmul.bf16.gmra.mxu0 %v4664
    %v4675 = vpop.f32.mrf.mxu0
    %v4676 = vadd.f32 0.0, %v4675
    %v4677 = vpop.f32.mrf.mxu0
    %4678 = vdwg.mxu0
    %4679 = vmatpush.bf16.msra.mxu0 0
    %4680 = vmatpush.bf16.msra.mxu0 0
    %4681 = vmatpush.bf16.msra.mxu0 0
    %4682 = vmatpush.bf16.msra.mxu0 0
    %4683 = vmatpush.bf16.msra.mxu0 %v4654
    %4684 = vmatpush.bf16.msra.mxu0 %v4652
    %4685 = vmatpush.bf16.msra.mxu0 %v4650
    %4686 = vmatpush.bf16.msra.mxu0 %v4648
    %4687 = vmatmul.bf16.gmra.mxu0 %v4664
    %v4688 = vpop.f32.mrf.mxu0
    %v4689 = vadd.f32 0.0, %v4688
    %v4690 = vpop.f32.mrf.mxu0
    %4691 = vdwg.mxu0
    %v4692 = vadd.f32 %v4612, %v4676
    %v4693 = vadd.f32 %v4613, %v4689
    %v4694 = vld [vmem:[%s61] sm:$0x3]
    %v4696 = vperm.slane %v4694, 0
    %v4697 = vperm.slane %v4694, 1
    %v4700 = vadd.f32 %v4692, %v4696
    %v4701 = vadd.f32 %v4693, %v4697
    %v4704 = vrot.slane %v4701, 6
    %vm4705 = vcmask 1041408
    %v4706 = vsel %vm4705, %v4700, %v4704
    %4708 = vst [vmem:[#allocation3] sm:$0xf] %v4706
    // Predicated region
    $region126: #{text_branch_forward.1} parent=1 // pred_check
      _
    $region127: #{text_branch_forward.1} parent=1 // pred_check_branch
      %4710 = sbr.rel (0) target = $region129
    $region128: #{text_branch_forward.1} parent=1 // pred_region
      %4712 = vsyncadd [#allocation4], 0
      %s4714 = sshll.u32 [#allocation3], 4
      %s4715 = int_to_ptr.vmem [resolvable:$true] %s4714
      %s4716 = sshll.u32 %s63, 4
      %s4717 = int_to_ptr.hbm [resolvable:$true] %s4716
      %4719 = dma.vmem_to_hbm [thread:$0]  %s4715, 64, %s4717, [#allocation4]
    $region129: #{text_branch_forward.1} parent=1 // pred_fallthru
      _
    // Predicated region
    $region130: #{text_branch_forward.1} parent=1 // pred_check
      _
    $region131: #{text_branch_forward.1} parent=1 // pred_check_branch
      %4721 = sbr.rel (0) target = $region133
    $region132: #{text_branch_forward.1} parent=1 // pred_region
      %4723 = dma.done [#allocation4], 64
    $region133: #{text_branch_forward.1} parent=1 // pred_fallthru
      _
    %4724 = vsyncpa [#allocation4], 1

</llo_original>
